<compile_context>
chip_gen: v5e
topology: v5e:2x2
jax: 0.10.0
libtpu: 0.0.40
codegen_flags: <defaults>
</compile_context>

<pallas_src>
import functools
import math

import jax
import jax.numpy as jnp
from jax.experimental import pallas as pl
from jax.experimental.pallas import tpu as pltpu

LANE = 128
LEAD = 16   # scratch rows before the data region (>= halo, multiple of 16 so
            # the per-layer bf16 stores start sublane-aligned)


def _round_up(n, m):
    return ((n + m - 1) // m) * m


def _vmem_block_bytes(shape, dtype):
    """Bytes one VMEM buffer of `shape` occupies after (sublane, lane) tiling."""
    itemsize = jnp.dtype(dtype).itemsize
    dims = list(shape)
    if len(dims) >= 1:
        dims[-1] = _round_up(dims[-1], LANE)
    if len(dims) >= 2:
        dims[-2] = _round_up(dims[-2], 8 * (4 // itemsize))  # 8 f32 / 16 bf16
    n = 1
    for d in dims:
        n *= d
    return n * itemsize


# ---------------------------------------------------------------------------
# Fused Pallas kernel: 5 x (conv1d + folded-BN + optional tanh) in one pass.
# ---------------------------------------------------------------------------
def fused_postnet_kernel(*refs, T, c_in, K, layer_specs):
    """refs = (x, w0, shift0, ..., w4, shift4, out, buf_a, buf_b)

    x_ref:        (1, T, c_in)            f32   one batch row, channels-last
    w_ref[l]:     (K, Cin_pad, Cout_pad)  bf16  per-tap weights, BN scale folded
    shift_ref[l]: (1, Cout_pad)           f32   beta + scale * (bias - mean)
    o_ref:        (1, T, Cout_last_pad)   f32
    buf_a/buf_b:  (LEAD + T + pad, Cmax)  bf16  ping-pong activation scratch
    """
    n_layers = len(layer_specs)
    x_ref = refs[0]
    w_refs = [refs[1 + 2 * l] for l in range(n_layers)]
    shift_refs = [refs[2 + 2 * l] for l in range(n_layers)]
    o_ref = refs[1 + 2 * n_layers]
    buf_a = refs[2 + 2 * n_layers]
    buf_b = refs[3 + 2 * n_layers]
    bufs = [buf_a, buf_b]
    pad = (K - 1) // 2
    cmax = buf_a.shape[1]

    # Zero the halo rows of both scratch buffers: this realizes the per-layer
    # 'same' zero padding. Layers only write rows [LEAD, LEAD + T), so the
    # halos stay zero; doing it every grid step is cheap and megacore-safe.
    zrow = jnp.zeros((pad, cmax), buf_a.dtype)
    buf_a[LEAD - pad:LEAD, :] = zrow
    buf_a[LEAD + T:LEAD + T + pad, :] = zrow
    buf_b[LEAD - pad:LEAD, :] = zrow
    buf_b[LEAD + T:LEAD + T + pad, :] = zrow

    # Load this batch row (as bf16) and zero-extend the channels to the first
    # layer's lane-padded width: one dense zero store + one narrow masked
    # store of the real c_in lanes.
    cin0 = layer_specs[0][0]
    if c_in < cin0:
        buf_a[LEAD:LEAD + T, :cin0] = jnp.zeros((T, cin0), jnp.bfloat16)
    buf_a[LEAD:LEAD + T, :c_in] = x_ref[0].astype(jnp.bfloat16)

    for l, (cin, cout, do_tanh) in enumerate(layer_specs):
        src = bufs[l % 2]
        w = w_refs[l]
        # K accumulating per-tap MXU matmuls (bf16 operands, f32 accumulate);
        # no (T, K*Cin) stacked temporary is materialized.
        acc = jnp.dot(src[LEAD - pad:LEAD - pad + T, :cin], w[0],
                      preferred_element_type=jnp.float32)
        for k in range(1, K):
            acc = acc + jnp.dot(
                src[LEAD - pad + k:LEAD - pad + k + T, :cin], w[k],
                preferred_element_type=jnp.float32)
        y = acc + shift_refs[l][...]          # BN scale already folded into w
        if do_tanh:
            y = jnp.tanh(y)                   # f32 epilogue (safe on v5e too)
        if l == n_layers - 1:
            o_ref[0] = y.astype(o_ref.dtype)  # lane-dense full-width store
        else:
            bufs[(l + 1) % 2][LEAD:LEAD + T, :cout] = y.astype(jnp.bfloat16)


# ---------------------------------------------------------------------------
# Wrapper: PyTorch-compatible interface, x is (B, n_mel, T).
# ---------------------------------------------------------------------------
def postnet_forward(params, x_ncl):
    # TODO(synk): training-mode dropout (p=0.5) not implemented; this is the
    # eval-mode forward where F.dropout is identity.
    x = jnp.transpose(x_ncl, (0, 2, 1)).astype(jnp.float32)  # (B,C,T)->(B,T,C)
    B, T, c_in = x.shape
    K = params[0]['w'].shape[0]
    pad = (K - 1) // 2
    n_mel_out = params[-1]['w'].shape[2]

    # Per-layer operands: per-tap bf16 weights with the BN scale folded in
    # (zero-padded to 128-lane multiples, so padded slots contribute nothing)
    # plus an f32 shift vector.
    inputs = [x]
    layer_specs = []
    layer_operand_shapes = []
    cmax = _round_up(c_in, LANE)
    for p in params:
        k_sz, cin, cout = p['w'].shape
        cin_pad = _round_up(cin, LANE)
        cout_pad = _round_up(cout, LANE)
        cmax = max(cmax, cin_pad, cout_pad)
        w_scaled = (p['w'] * p['scale']).astype(jnp.bfloat16)   # fold BN scale
        w_bf16 = jnp.pad(w_scaled,
                         ((0, 0), (0, cin_pad - cin), (0, cout_pad - cout)))
        shift = jnp.pad(p['shift'], ((0, 0), (0, cout_pad - cout)))
        inputs += [w_bf16, shift]
        layer_operand_shapes.append(((k_sz, cin_pad, cout_pad), (1, cout_pad)))
        layer_specs.append((cin_pad, cout_pad, bool(p['apply_tanh'])))

    cout_last_pad = layer_specs[-1][1]
    scratch_rows = LEAD + T + pad
    kernel = functools.partial(fused_postnet_kernel, T=T, c_in=c_in, K=K,
                               layer_specs=tuple(layer_specs))

    # VMEM budget derived from the actual footprint (bf16 scratch, single-
    # buffered weights) + margin for the f32 accumulators / compiler scratch.
    footprint = 2 * _vmem_block_bytes((1, T, c_in), jnp.float32)            # x
    footprint += 2 * _vmem_block_bytes((1, T, cout_last_pad), jnp.float32)  # out
    for w_shape, s_shape in layer_operand_shapes:
        footprint += _vmem_block_bytes(w_shape, jnp.bfloat16)
        footprint += _vmem_block_bytes(s_shape, jnp.float32)
    footprint += 2 * _vmem_block_bytes((scratch_rows, cmax), jnp.bfloat16)
    footprint += 2 * _vmem_block_bytes((T, cmax), jnp.float32)              # acc
    vmem_limit = min(max(int(footprint * 1.25) + (8 << 20), 16 << 20), 128 << 20)

    def build_call(single_buffer_consts):
        const_kw = ({'pipeline_mode': pl.Buffered(1)}
                    if single_buffer_consts else {})
        in_specs = [pl.BlockSpec((1, T, c_in), lambda b: (b, 0, 0))]
        for w_shape, s_shape in layer_operand_shapes:
            in_specs.append(pl.BlockSpec(w_shape, lambda b: (0, 0, 0),
                                         **const_kw))
            in_specs.append(pl.BlockSpec(s_shape, lambda b: (0, 0),
                                         **const_kw))
        return pl.pallas_call(
            kernel,
            out_shape=jax.ShapeDtypeStruct((B, T, cout_last_pad), jnp.float32),
            grid_spec=pltpu.PrefetchScalarGridSpec(
                num_scalar_prefetch=0,
                grid=(B,),
                in_specs=in_specs,
                out_specs=pl.BlockSpec((1, T, cout_last_pad),
                                       lambda b: (b, 0, 0)),
                scratch_shapes=[
                    pltpu.VMEM((scratch_rows, cmax), jnp.bfloat16),
                    pltpu.VMEM((scratch_rows, cmax), jnp.bfloat16),
                ]),
            compiler_params=pltpu.CompilerParams(
                dimension_semantics=("parallel",),
                vmem_limit_bytes=vmem_limit),
        )

    # Grid-invariant operands (weights / shifts) are requested single-buffered
    # (pl.Buffered(1)); fall back to default double buffering if the installed
    # JAX rejects per-BlockSpec pipeline_mode.
    try:
        out_padded = build_call(True)(*inputs)
    except Exception:
        out_padded = build_call(False)(*inputs)

    out = out_padded[:, :, :n_mel_out]          # drop the lane padding
    return jnp.transpose(out, (0, 2, 1))        # back to (B, n_mel, T)


# ---------------------------------------------------------------------------
# Parameter construction (deterministic, mirrors Postnet.__init__ shapes).
# ---------------------------------------------------------------------------
def make_postnet_params(key, n_mel, embed, kernel_size, n_convs):
    """Returns a list of per-layer dicts with conv + BN (eval) parameters."""
    eps = 1e-5
    layer_io = [(n_mel, embed, 'tanh')]
    for _ in range(1, n_convs - 1):
        layer_io.append((embed, embed, 'tanh'))
    layer_io.append((embed, n_mel, 'linear'))

    params = []
    for (cin, cout, gain_name) in layer_io:
        key, kw, kb, kg, kbt, km, kv = jax.random.split(key, 7)
        gain = 5.0 / 3.0 if gain_name == 'tanh' else 1.0
        fan_in = cin * kernel_size
        fan_out = cout * kernel_size
        limit = gain * math.sqrt(6.0 / (fan_in + fan_out))  # xavier_uniform
        # taps stored as (K, Cin, Cout)  (PyTorch stores (Cout, Cin, K))
        w = jax.random.uniform(kw, (kernel_size, cin, cout), jnp.float32,
                               -limit, limit)
        b_lim = 1.0 / math.sqrt(fan_in)
        bias = jax.random.uniform(kb, (cout,), jnp.float32, -b_lim, b_lim)
        # BatchNorm1d (eval mode) running stats / affine, made non-trivial:
        gamma = 1.0 + 0.1 * jax.random.normal(kg, (cout,), jnp.float32)
        beta = 0.1 * jax.random.normal(kbt, (cout,), jnp.float32)
        mean = 0.1 * jax.random.normal(km, (cout,), jnp.float32)
        var = 1.0 + 0.1 * jax.random.uniform(kv, (cout,), jnp.float32)
        scale = gamma / jnp.sqrt(var + eps)
        shift = beta + scale * (bias - mean)
        params.append(dict(w=w,
                           scale=scale.reshape(1, cout),
                           shift=shift.reshape(1, cout),
                           apply_tanh=(gain_name == 'tanh')))
    return params


# ---------------------------------------------------------------------------
# Pure-JAX reference (same precision model: BN scale folded into bf16 weights,
# bf16 activations as matmul operands, f32 accumulate / epilogue).
# ---------------------------------------------------------------------------
def postnet_reference(params, x_ncl):
    x = jnp.transpose(x_ncl, (0, 2, 1)).astype(jnp.float32)
    B, T, _ = x.shape
    for p in params:
        K = p['w'].shape[0]
        pad = (K - 1) // 2
        xp = jnp.pad(x, ((0, 0), (pad, pad), (0, 0))).astype(jnp.bfloat16)
        w_bf16 = (p['w'] * p['scale']).astype(jnp.bfloat16)
        acc = jnp.zeros((B, T, p['w'].shape[2]), jnp.float32)
        for k in range(K):
            acc += jnp.einsum('btc,cd->btd', xp[:, k:k + T, :], w_bf16[k],
                              preferred_element_type=jnp.float32)
        y = acc + p['shift'][None]
        x = jnp.tanh(y) if p['apply_tanh'] else y
    return jnp.transpose(x, (0, 2, 1))


if __name__ == "__main__":
    # Small hparams consistent with the module:
    #   n_mel_channels=8, postnet_embedding_dim=32,
    #   postnet_kernel_size=5, postnet_n_convolutions=5
    B, N_MEL, T = 2, 8, 16
    EMBED, KSIZE, NCONV = 32, 5, 5

    key = jax.random.PRNGKey(0)
    key, kx = jax.random.split(key)
    x = jax.random.normal(kx, (B, N_MEL, T), jnp.float32)  # PyTorch NCL layout

    params = make_postnet_params(key, N_MEL, EMBED, KSIZE, NCONV)

    out = postnet_forward(params, x)
    out = jax.block_until_ready(out)

    ref = postnet_reference(params, x)
    assert out.shape == (B, N_MEL, T), out.shape
    assert jnp.allclose(out, ref, rtol=2e-3, atol=2e-3), (
        float(jnp.max(jnp.abs(out - ref))))

    print("KERNEL_OK")
</pallas_src>

<mosaic_0001>
module attributes {stable_mosaic.version = 11 : i64} {
  func.func @fused_postnet_kernel(%arg0: i32, %arg1: memref<1x16x8xf32, #tpu.memory_space<vmem>>, %arg2: memref<5x128x128xbf16, #tpu.memory_space<vmem>>, %arg3: memref<1x128xf32, #tpu.memory_space<vmem>>, %arg4: memref<5x128x128xbf16, #tpu.memory_space<vmem>>, %arg5: memref<1x128xf32, #tpu.memory_space<vmem>>, %arg6: memref<5x128x128xbf16, #tpu.memory_space<vmem>>, %arg7: memref<1x128xf32, #tpu.memory_space<vmem>>, %arg8: memref<5x128x128xbf16, #tpu.memory_space<vmem>>, %arg9: memref<1x128xf32, #tpu.memory_space<vmem>>, %arg10: memref<5x128x128xbf16, #tpu.memory_space<vmem>>, %arg11: memref<1x128xf32, #tpu.memory_space<vmem>>, %arg12: memref<1x16x128xf32, #tpu.memory_space<vmem>>, %arg13: memref<34x128xbf16, #tpu.memory_space<vmem>>, %arg14: memref<34x128xbf16, #tpu.memory_space<vmem>>) attributes {dimension_semantics = [#tpu.dimension_semantics<parallel>], iteration_bounds = array<i64: 2>, scalar_prefetch = 0 : i64, scratch_operands = 2 : i64, tpu.core_type = #tpu.core_type<tc>, window_params = [{transform_indices = @transform_0, window_bounds = array<i64: 1, 16, 8>}, {pipeline_mode = #tpu.pipeline_mode<synchronous>, transform_indices = @transform_1, window_bounds = array<i64: 5, 128, 128>}, {pipeline_mode = #tpu.pipeline_mode<synchronous>, transform_indices = @transform_2, window_bounds = array<i64: 1, 128>}, {pipeline_mode = #tpu.pipeline_mode<synchronous>, transform_indices = @transform_3, window_bounds = array<i64: 5, 128, 128>}, {pipeline_mode = #tpu.pipeline_mode<synchronous>, transform_indices = @transform_4, window_bounds = array<i64: 1, 128>}, {pipeline_mode = #tpu.pipeline_mode<synchronous>, transform_indices = @transform_5, window_bounds = array<i64: 5, 128, 128>}, {pipeline_mode = #tpu.pipeline_mode<synchronous>, transform_indices = @transform_6, window_bounds = array<i64: 1, 128>}, {pipeline_mode = #tpu.pipeline_mode<synchronous>, transform_indices = @transform_7, window_bounds = array<i64: 5, 128, 128>}, {pipeline_mode = #tpu.pipeline_mode<synchronous>, transform_indices = @transform_8, window_bounds = array<i64: 1, 128>}, {pipeline_mode = #tpu.pipeline_mode<synchronous>, transform_indices = @transform_9, window_bounds = array<i64: 5, 128, 128>}, {pipeline_mode = #tpu.pipeline_mode<synchronous>, transform_indices = @transform_10, window_bounds = array<i64: 1, 128>}, {transform_indices = @transform_11, window_bounds = array<i64: 1, 16, 128>}]} {
    %cst = arith.constant 0.000000e+00 : bf16
    %0 = vector.broadcast %cst : bf16 to vector<2x128xbf16>
    %c14 = arith.constant 14 : index
    %c0 = arith.constant 0 : index
    %1 = vector.load %arg13[%c14, %c0] : memref<34x128xbf16, #tpu.memory_space<vmem>>, vector<2x128xbf16>
    tpu.vector_store %arg13[%c14, %c0], %0 {strides = array<i32>} : memref<34x128xbf16, #tpu.memory_space<vmem>>, vector<2x128xbf16>,
    %c32 = arith.constant 32 : index
    %c0_0 = arith.constant 0 : index
    %2 = vector.load %arg13[%c32, %c0_0] : memref<34x128xbf16, #tpu.memory_space<vmem>>, vector<2x128xbf16>
    tpu.vector_store %arg13[%c32, %c0_0], %0 {strides = array<i32>} : memref<34x128xbf16, #tpu.memory_space<vmem>>, vector<2x128xbf16>,
    %c14_1 = arith.constant 14 : index
    %c0_2 = arith.constant 0 : index
    %3 = vector.load %arg14[%c14_1, %c0_2] : memref<34x128xbf16, #tpu.memory_space<vmem>>, vector<2x128xbf16>
    tpu.vector_store %arg14[%c14_1, %c0_2], %0 {strides = array<i32>} : memref<34x128xbf16, #tpu.memory_space<vmem>>, vector<2x128xbf16>,
    %c32_3 = arith.constant 32 : index
    %c0_4 = arith.constant 0 : index
    %4 = vector.load %arg14[%c32_3, %c0_4] : memref<34x128xbf16, #tpu.memory_space<vmem>>, vector<2x128xbf16>
    tpu.vector_store %arg14[%c32_3, %c0_4], %0 {strides = array<i32>} : memref<34x128xbf16, #tpu.memory_space<vmem>>, vector<2x128xbf16>,
    %cst_5 = arith.constant 0.000000e+00 : bf16
    %5 = vector.broadcast %cst_5 : bf16 to vector<16x128xbf16>
    %c16 = arith.constant 16 : index
    %c0_6 = arith.constant 0 : index
    %6 = vector.load %arg13[%c16, %c0_6] : memref<34x128xbf16, #tpu.memory_space<vmem>>, vector<16x128xbf16>
    tpu.vector_store %arg13[%c16, %c0_6], %5 {strides = array<i32>} : memref<34x128xbf16, #tpu.memory_space<vmem>>, vector<16x128xbf16>,
    %c0_7 = arith.constant 0 : index
    %c0_8 = arith.constant 0 : index
    %c0_9 = arith.constant 0 : index
    %7 = vector.load %arg1[%c0_7, %c0_8, %c0_9] : memref<1x16x8xf32, #tpu.memory_space<vmem>>, vector<1x16x8xf32>
    %8 = vector.shape_cast %7 : vector<1x16x8xf32> to vector<16x8xf32>
    %9 = arith.truncf %8 : vector<16x8xf32> to vector<16x8xbf16>
    %c16_10 = arith.constant 16 : index
    %c0_11 = arith.constant 0 : index
    %10 = vector.load %arg13[%c16_10, %c0_11] : memref<34x128xbf16, #tpu.memory_space<vmem>>, vector<16x8xbf16>
    tpu.vector_store %arg13[%c16_10, %c0_11], %9 {strides = array<i32>} : memref<34x128xbf16, #tpu.memory_space<vmem>>, vector<16x8xbf16>,
    %c14_12 = arith.constant 14 : index
    %c0_13 = arith.constant 0 : index
    %11 = vector.load %arg13[%c14_12, %c0_13] : memref<34x128xbf16, #tpu.memory_space<vmem>>, vector<16x128xbf16>
    %c0_14 = arith.constant 0 : index
    %c0_15 = arith.constant 0 : index
    %c0_16 = arith.constant 0 : index
    %12 = vector.load %arg2[%c0_14, %c0_15, %c0_16] : memref<5x128x128xbf16, #tpu.memory_space<vmem>>, vector<1x128x128xbf16>
    %13 = vector.shape_cast %12 : vector<1x128x128xbf16> to vector<128x128xbf16>
    %cst_17 = arith.constant dense<0.000000e+00> : vector<16x128xf32>
    %14 = tpu.matmul %11, %13, %cst_17 {dimension_numbers = #tpu.dot_dimension_numbers<[1], [0], [0], [1], [0, 0, 1, 1], [], []>} : vector<16x128xbf16>, vector<128x128xbf16>, vector<16x128xf32> -> vector<16x128xf32>
    %c15 = arith.constant 15 : index
    %c0_18 = arith.constant 0 : index
    %15 = vector.load %arg13[%c15, %c0_18] : memref<34x128xbf16, #tpu.memory_space<vmem>>, vector<16x128xbf16>
    %c1 = arith.constant 1 : index
    %c0_19 = arith.constant 0 : index
    %c0_20 = arith.constant 0 : index
    %16 = vector.load %arg2[%c1, %c0_19, %c0_20] : memref<5x128x128xbf16, #tpu.memory_space<vmem>>, vector<1x128x128xbf16>
    %17 = vector.shape_cast %16 : vector<1x128x128xbf16> to vector<128x128xbf16>
    %cst_21 = arith.constant dense<0.000000e+00> : vector<16x128xf32>
    %18 = tpu.matmul %15, %17, %cst_21 {dimension_numbers = #tpu.dot_dimension_numbers<[1], [0], [0], [1], [0, 0, 1, 1], [], []>} : vector<16x128xbf16>, vector<128x128xbf16>, vector<16x128xf32> -> vector<16x128xf32>
    %19 = arith.addf %14, %18 : vector<16x128xf32>
    %c16_22 = arith.constant 16 : index
    %c0_23 = arith.constant 0 : index
    %20 = vector.load %arg13[%c16_22, %c0_23] : memref<34x128xbf16, #tpu.memory_space<vmem>>, vector<16x128xbf16>
    %c2 = arith.constant 2 : index
    %c0_24 = arith.constant 0 : index
    %c0_25 = arith.constant 0 : index
    %21 = vector.load %arg2[%c2, %c0_24, %c0_25] : memref<5x128x128xbf16, #tpu.memory_space<vmem>>, vector<1x128x128xbf16>
    %22 = vector.shape_cast %21 : vector<1x128x128xbf16> to vector<128x128xbf16>
    %cst_26 = arith.constant dense<0.000000e+00> : vector<16x128xf32>
    %23 = tpu.matmul %20, %22, %cst_26 {dimension_numbers = #tpu.dot_dimension_numbers<[1], [0], [0], [1], [0, 0, 1, 1], [], []>} : vector<16x128xbf16>, vector<128x128xbf16>, vector<16x128xf32> -> vector<16x128xf32>
    %24 = arith.addf %19, %23 : vector<16x128xf32>
    %c17 = arith.constant 17 : index
    %c0_27 = arith.constant 0 : index
    %25 = vector.load %arg13[%c17, %c0_27] : memref<34x128xbf16, #tpu.memory_space<vmem>>, vector<16x128xbf16>
    %c3 = arith.constant 3 : index
    %c0_28 = arith.constant 0 : index
    %c0_29 = arith.constant 0 : index
    %26 = vector.load %arg2[%c3, %c0_28, %c0_29] : memref<5x128x128xbf16, #tpu.memory_space<vmem>>, vector<1x128x128xbf16>
    %27 = vector.shape_cast %26 : vector<1x128x128xbf16> to vector<128x128xbf16>
    %cst_30 = arith.constant dense<0.000000e+00> : vector<16x128xf32>
    %28 = tpu.matmul %25, %27, %cst_30 {dimension_numbers = #tpu.dot_dimension_numbers<[1], [0], [0], [1], [0, 0, 1, 1], [], []>} : vector<16x128xbf16>, vector<128x128xbf16>, vector<16x128xf32> -> vector<16x128xf32>
    %29 = arith.addf %24, %28 : vector<16x128xf32>
    %c18 = arith.constant 18 : index
    %c0_31 = arith.constant 0 : index
    %30 = vector.load %arg13[%c18, %c0_31] : memref<34x128xbf16, #tpu.memory_space<vmem>>, vector<16x128xbf16>
    %c4 = arith.constant 4 : index
    %c0_32 = arith.constant 0 : index
    %c0_33 = arith.constant 0 : index
    %31 = vector.load %arg2[%c4, %c0_32, %c0_33] : memref<5x128x128xbf16, #tpu.memory_space<vmem>>, vector<1x128x128xbf16>
    %32 = vector.shape_cast %31 : vector<1x128x128xbf16> to vector<128x128xbf16>
    %cst_34 = arith.constant dense<0.000000e+00> : vector<16x128xf32>
    %33 = tpu.matmul %30, %32, %cst_34 {dimension_numbers = #tpu.dot_dimension_numbers<[1], [0], [0], [1], [0, 0, 1, 1], [], []>} : vector<16x128xbf16>, vector<128x128xbf16>, vector<16x128xf32> -> vector<16x128xf32>
    %34 = arith.addf %29, %33 : vector<16x128xf32>
    %c0_35 = arith.constant 0 : index
    %c0_36 = arith.constant 0 : index
    %35 = vector.load %arg3[%c0_35, %c0_36] : memref<1x128xf32, #tpu.memory_space<vmem>>, vector<1x128xf32>
    %36 = vector.broadcast %35 : vector<1x128xf32> to vector<16x128xf32>
    %37 = arith.addf %34, %36 : vector<16x128xf32>
    %38 = math.tanh %37 : vector<16x128xf32>
    %39 = arith.truncf %38 : vector<16x128xf32> to vector<16x128xbf16>
    %c16_37 = arith.constant 16 : index
    %c0_38 = arith.constant 0 : index
    %40 = vector.load %arg14[%c16_37, %c0_38] : memref<34x128xbf16, #tpu.memory_space<vmem>>, vector<16x128xbf16>
    tpu.vector_store %arg14[%c16_37, %c0_38], %39 {strides = array<i32>} : memref<34x128xbf16, #tpu.memory_space<vmem>>, vector<16x128xbf16>,
    %c14_39 = arith.constant 14 : index
    %c0_40 = arith.constant 0 : index
    %41 = vector.load %arg14[%c14_39, %c0_40] : memref<34x128xbf16, #tpu.memory_space<vmem>>, vector<16x128xbf16>
    %c0_41 = arith.constant 0 : index
    %c0_42 = arith.constant 0 : index
    %c0_43 = arith.constant 0 : index
    %42 = vector.load %arg4[%c0_41, %c0_42, %c0_43] : memref<5x128x128xbf16, #tpu.memory_space<vmem>>, vector<1x128x128xbf16>
    %43 = vector.shape_cast %42 : vector<1x128x128xbf16> to vector<128x128xbf16>
    %cst_44 = arith.constant dense<0.000000e+00> : vector<16x128xf32>
    %44 = tpu.matmul %41, %43, %cst_44 {dimension_numbers = #tpu.dot_dimension_numbers<[1], [0], [0], [1], [0, 0, 1, 1], [], []>} : vector<16x128xbf16>, vector<128x128xbf16>, vector<16x128xf32> -> vector<16x128xf32>
    %c15_45 = arith.constant 15 : index
    %c0_46 = arith.constant 0 : index
    %45 = vector.load %arg14[%c15_45, %c0_46] : memref<34x128xbf16, #tpu.memory_space<vmem>>, vector<16x128xbf16>
    %c1_47 = arith.constant 1 : index
    %c0_48 = arith.constant 0 : index
    %c0_49 = arith.constant 0 : index
    %46 = vector.load %arg4[%c1_47, %c0_48, %c0_49] : memref<5x128x128xbf16, #tpu.memory_space<vmem>>, vector<1x128x128xbf16>
    %47 = vector.shape_cast %46 : vector<1x128x128xbf16> to vector<128x128xbf16>
    %cst_50 = arith.constant dense<0.000000e+00> : vector<16x128xf32>
    %48 = tpu.matmul %45, %47, %cst_50 {dimension_numbers = #tpu.dot_dimension_numbers<[1], [0], [0], [1], [0, 0, 1, 1], [], []>} : vector<16x128xbf16>, vector<128x128xbf16>, vector<16x128xf32> -> vector<16x128xf32>
    %49 = arith.addf %44, %48 : vector<16x128xf32>
    %c16_51 = arith.constant 16 : index
    %c0_52 = arith.constant 0 : index
    %50 = vector.load %arg14[%c16_51, %c0_52] : memref<34x128xbf16, #tpu.memory_space<vmem>>, vector<16x128xbf16>
    %c2_53 = arith.constant 2 : index
    %c0_54 = arith.constant 0 : index
    %c0_55 = arith.constant 0 : index
    %51 = vector.load %arg4[%c2_53, %c0_54, %c0_55] : memref<5x128x128xbf16, #tpu.memory_space<vmem>>, vector<1x128x128xbf16>
    %52 = vector.shape_cast %51 : vector<1x128x128xbf16> to vector<128x128xbf16>
    %cst_56 = arith.constant dense<0.000000e+00> : vector<16x128xf32>
    %53 = tpu.matmul %50, %52, %cst_56 {dimension_numbers = #tpu.dot_dimension_numbers<[1], [0], [0], [1], [0, 0, 1, 1], [], []>} : vector<16x128xbf16>, vector<128x128xbf16>, vector<16x128xf32> -> vector<16x128xf32>
    %54 = arith.addf %49, %53 : vector<16x128xf32>
    %c17_57 = arith.constant 17 : index
    %c0_58 = arith.constant 0 : index
    %55 = vector.load %arg14[%c17_57, %c0_58] : memref<34x128xbf16, #tpu.memory_space<vmem>>, vector<16x128xbf16>
    %c3_59 = arith.constant 3 : index
    %c0_60 = arith.constant 0 : index
    %c0_61 = arith.constant 0 : index
    %56 = vector.load %arg4[%c3_59, %c0_60, %c0_61] : memref<5x128x128xbf16, #tpu.memory_space<vmem>>, vector<1x128x128xbf16>
    %57 = vector.shape_cast %56 : vector<1x128x128xbf16> to vector<128x128xbf16>
    %cst_62 = arith.constant dense<0.000000e+00> : vector<16x128xf32>
    %58 = tpu.matmul %55, %57, %cst_62 {dimension_numbers = #tpu.dot_dimension_numbers<[1], [0], [0], [1], [0, 0, 1, 1], [], []>} : vector<16x128xbf16>, vector<128x128xbf16>, vector<16x128xf32> -> vector<16x128xf32>
    %59 = arith.addf %54, %58 : vector<16x128xf32>
    %c18_63 = arith.constant 18 : index
    %c0_64 = arith.constant 0 : index
    %60 = vector.load %arg14[%c18_63, %c0_64] : memref<34x128xbf16, #tpu.memory_space<vmem>>, vector<16x128xbf16>
    %c4_65 = arith.constant 4 : index
    %c0_66 = arith.constant 0 : index
    %c0_67 = arith.constant 0 : index
    %61 = vector.load %arg4[%c4_65, %c0_66, %c0_67] : memref<5x128x128xbf16, #tpu.memory_space<vmem>>, vector<1x128x128xbf16>
    %62 = vector.shape_cast %61 : vector<1x128x128xbf16> to vector<128x128xbf16>
    %cst_68 = arith.constant dense<0.000000e+00> : vector<16x128xf32>
    %63 = tpu.matmul %60, %62, %cst_68 {dimension_numbers = #tpu.dot_dimension_numbers<[1], [0], [0], [1], [0, 0, 1, 1], [], []>} : vector<16x128xbf16>, vector<128x128xbf16>, vector<16x128xf32> -> vector<16x128xf32>
    %64 = arith.addf %59, %63 : vector<16x128xf32>
    %c0_69 = arith.constant 0 : index
    %c0_70 = arith.constant 0 : index
    %65 = vector.load %arg5[%c0_69, %c0_70] : memref<1x128xf32, #tpu.memory_space<vmem>>, vector<1x128xf32>
    %66 = vector.broadcast %65 : vector<1x128xf32> to vector<16x128xf32>
    %67 = arith.addf %64, %66 : vector<16x128xf32>
    %68 = math.tanh %67 : vector<16x128xf32>
    %69 = arith.truncf %68 : vector<16x128xf32> to vector<16x128xbf16>
    %c16_71 = arith.constant 16 : index
    %c0_72 = arith.constant 0 : index
    %70 = vector.load %arg13[%c16_71, %c0_72] : memref<34x128xbf16, #tpu.memory_space<vmem>>, vector<16x128xbf16>
    tpu.vector_store %arg13[%c16_71, %c0_72], %69 {strides = array<i32>} : memref<34x128xbf16, #tpu.memory_space<vmem>>, vector<16x128xbf16>,
    %c14_73 = arith.constant 14 : index
    %c0_74 = arith.constant 0 : index
    %71 = vector.load %arg13[%c14_73, %c0_74] : memref<34x128xbf16, #tpu.memory_space<vmem>>, vector<16x128xbf16>
    %c0_75 = arith.constant 0 : index
    %c0_76 = arith.constant 0 : index
    %c0_77 = arith.constant 0 : index
    %72 = vector.load %arg6[%c0_75, %c0_76, %c0_77] : memref<5x128x128xbf16, #tpu.memory_space<vmem>>, vector<1x128x128xbf16>
    %73 = vector.shape_cast %72 : vector<1x128x128xbf16> to vector<128x128xbf16>
    %cst_78 = arith.constant dense<0.000000e+00> : vector<16x128xf32>
    %74 = tpu.matmul %71, %73, %cst_78 {dimension_numbers = #tpu.dot_dimension_numbers<[1], [0], [0], [1], [0, 0, 1, 1], [], []>} : vector<16x128xbf16>, vector<128x128xbf16>, vector<16x128xf32> -> vector<16x128xf32>
    %c15_79 = arith.constant 15 : index
    %c0_80 = arith.constant 0 : index
    %75 = vector.load %arg13[%c15_79, %c0_80] : memref<34x128xbf16, #tpu.memory_space<vmem>>, vector<16x128xbf16>
    %c1_81 = arith.constant 1 : index
    %c0_82 = arith.constant 0 : index
    %c0_83 = arith.constant 0 : index
    %76 = vector.load %arg6[%c1_81, %c0_82, %c0_83] : memref<5x128x128xbf16, #tpu.memory_space<vmem>>, vector<1x128x128xbf16>
    %77 = vector.shape_cast %76 : vector<1x128x128xbf16> to vector<128x128xbf16>
    %cst_84 = arith.constant dense<0.000000e+00> : vector<16x128xf32>
    %78 = tpu.matmul %75, %77, %cst_84 {dimension_numbers = #tpu.dot_dimension_numbers<[1], [0], [0], [1], [0, 0, 1, 1], [], []>} : vector<16x128xbf16>, vector<128x128xbf16>, vector<16x128xf32> -> vector<16x128xf32>
    %79 = arith.addf %74, %78 : vector<16x128xf32>
    %c16_85 = arith.constant 16 : index
    %c0_86 = arith.constant 0 : index
    %80 = vector.load %arg13[%c16_85, %c0_86] : memref<34x128xbf16, #tpu.memory_space<vmem>>, vector<16x128xbf16>
    %c2_87 = arith.constant 2 : index
    %c0_88 = arith.constant 0 : index
    %c0_89 = arith.constant 0 : index
    %81 = vector.load %arg6[%c2_87, %c0_88, %c0_89] : memref<5x128x128xbf16, #tpu.memory_space<vmem>>, vector<1x128x128xbf16>
    %82 = vector.shape_cast %81 : vector<1x128x128xbf16> to vector<128x128xbf16>
    %cst_90 = arith.constant dense<0.000000e+00> : vector<16x128xf32>
    %83 = tpu.matmul %80, %82, %cst_90 {dimension_numbers = #tpu.dot_dimension_numbers<[1], [0], [0], [1], [0, 0, 1, 1], [], []>} : vector<16x128xbf16>, vector<128x128xbf16>, vector<16x128xf32> -> vector<16x128xf32>
    %84 = arith.addf %79, %83 : vector<16x128xf32>
    %c17_91 = arith.constant 17 : index
    %c0_92 = arith.constant 0 : index
    %85 = vector.load %arg13[%c17_91, %c0_92] : memref<34x128xbf16, #tpu.memory_space<vmem>>, vector<16x128xbf16>
    %c3_93 = arith.constant 3 : index
    %c0_94 = arith.constant 0 : index
    %c0_95 = arith.constant 0 : index
    %86 = vector.load %arg6[%c3_93, %c0_94, %c0_95] : memref<5x128x128xbf16, #tpu.memory_space<vmem>>, vector<1x128x128xbf16>
    %87 = vector.shape_cast %86 : vector<1x128x128xbf16> to vector<128x128xbf16>
    %cst_96 = arith.constant dense<0.000000e+00> : vector<16x128xf32>
    %88 = tpu.matmul %85, %87, %cst_96 {dimension_numbers = #tpu.dot_dimension_numbers<[1], [0], [0], [1], [0, 0, 1, 1], [], []>} : vector<16x128xbf16>, vector<128x128xbf16>, vector<16x128xf32> -> vector<16x128xf32>
    %89 = arith.addf %84, %88 : vector<16x128xf32>
    %c18_97 = arith.constant 18 : index
    %c0_98 = arith.constant 0 : index
    %90 = vector.load %arg13[%c18_97, %c0_98] : memref<34x128xbf16, #tpu.memory_space<vmem>>, vector<16x128xbf16>
    %c4_99 = arith.constant 4 : index
    %c0_100 = arith.constant 0 : index
    %c0_101 = arith.constant 0 : index
    %91 = vector.load %arg6[%c4_99, %c0_100, %c0_101] : memref<5x128x128xbf16, #tpu.memory_space<vmem>>, vector<1x128x128xbf16>
    %92 = vector.shape_cast %91 : vector<1x128x128xbf16> to vector<128x128xbf16>
    %cst_102 = arith.constant dense<0.000000e+00> : vector<16x128xf32>
    %93 = tpu.matmul %90, %92, %cst_102 {dimension_numbers = #tpu.dot_dimension_numbers<[1], [0], [0], [1], [0, 0, 1, 1], [], []>} : vector<16x128xbf16>, vector<128x128xbf16>, vector<16x128xf32> -> vector<16x128xf32>
    %94 = arith.addf %89, %93 : vector<16x128xf32>
    %c0_103 = arith.constant 0 : index
    %c0_104 = arith.constant 0 : index
    %95 = vector.load %arg7[%c0_103, %c0_104] : memref<1x128xf32, #tpu.memory_space<vmem>>, vector<1x128xf32>
    %96 = vector.broadcast %95 : vector<1x128xf32> to vector<16x128xf32>
    %97 = arith.addf %94, %96 : vector<16x128xf32>
    %98 = math.tanh %97 : vector<16x128xf32>
    %99 = arith.truncf %98 : vector<16x128xf32> to vector<16x128xbf16>
    %c16_105 = arith.constant 16 : index
    %c0_106 = arith.constant 0 : index
    %100 = vector.load %arg14[%c16_105, %c0_106] : memref<34x128xbf16, #tpu.memory_space<vmem>>, vector<16x128xbf16>
    tpu.vector_store %arg14[%c16_105, %c0_106], %99 {strides = array<i32>} : memref<34x128xbf16, #tpu.memory_space<vmem>>, vector<16x128xbf16>,
    %c14_107 = arith.constant 14 : index
    %c0_108 = arith.constant 0 : index
    %101 = vector.load %arg14[%c14_107, %c0_108] : memref<34x128xbf16, #tpu.memory_space<vmem>>, vector<16x128xbf16>
    %c0_109 = arith.constant 0 : index
    %c0_110 = arith.constant 0 : index
    %c0_111 = arith.constant 0 : index
    %102 = vector.load %arg8[%c0_109, %c0_110, %c0_111] : memref<5x128x128xbf16, #tpu.memory_space<vmem>>, vector<1x128x128xbf16>
    %103 = vector.shape_cast %102 : vector<1x128x128xbf16> to vector<128x128xbf16>
    %cst_112 = arith.constant dense<0.000000e+00> : vector<16x128xf32>
    %104 = tpu.matmul %101, %103, %cst_112 {dimension_numbers = #tpu.dot_dimension_numbers<[1], [0], [0], [1], [0, 0, 1, 1], [], []>} : vector<16x128xbf16>, vector<128x128xbf16>, vector<16x128xf32> -> vector<16x128xf32>
    %c15_113 = arith.constant 15 : index
    %c0_114 = arith.constant 0 : index
    %105 = vector.load %arg14[%c15_113, %c0_114] : memref<34x128xbf16, #tpu.memory_space<vmem>>, vector<16x128xbf16>
    %c1_115 = arith.constant 1 : index
    %c0_116 = arith.constant 0 : index
    %c0_117 = arith.constant 0 : index
    %106 = vector.load %arg8[%c1_115, %c0_116, %c0_117] : memref<5x128x128xbf16, #tpu.memory_space<vmem>>, vector<1x128x128xbf16>
    %107 = vector.shape_cast %106 : vector<1x128x128xbf16> to vector<128x128xbf16>
    %cst_118 = arith.constant dense<0.000000e+00> : vector<16x128xf32>
    %108 = tpu.matmul %105, %107, %cst_118 {dimension_numbers = #tpu.dot_dimension_numbers<[1], [0], [0], [1], [0, 0, 1, 1], [], []>} : vector<16x128xbf16>, vector<128x128xbf16>, vector<16x128xf32> -> vector<16x128xf32>
    %109 = arith.addf %104, %108 : vector<16x128xf32>
    %c16_119 = arith.constant 16 : index
    %c0_120 = arith.constant 0 : index
    %110 = vector.load %arg14[%c16_119, %c0_120] : memref<34x128xbf16, #tpu.memory_space<vmem>>, vector<16x128xbf16>
    %c2_121 = arith.constant 2 : index
    %c0_122 = arith.constant 0 : index
    %c0_123 = arith.constant 0 : index
    %111 = vector.load %arg8[%c2_121, %c0_122, %c0_123] : memref<5x128x128xbf16, #tpu.memory_space<vmem>>, vector<1x128x128xbf16>
    %112 = vector.shape_cast %111 : vector<1x128x128xbf16> to vector<128x128xbf16>
    %cst_124 = arith.constant dense<0.000000e+00> : vector<16x128xf32>
    %113 = tpu.matmul %110, %112, %cst_124 {dimension_numbers = #tpu.dot_dimension_numbers<[1], [0], [0], [1], [0, 0, 1, 1], [], []>} : vector<16x128xbf16>, vector<128x128xbf16>, vector<16x128xf32> -> vector<16x128xf32>
    %114 = arith.addf %109, %113 : vector<16x128xf32>
    %c17_125 = arith.constant 17 : index
    %c0_126 = arith.constant 0 : index
    %115 = vector.load %arg14[%c17_125, %c0_126] : memref<34x128xbf16, #tpu.memory_space<vmem>>, vector<16x128xbf16>
    %c3_127 = arith.constant 3 : index
    %c0_128 = arith.constant 0 : index
    %c0_129 = arith.constant 0 : index
    %116 = vector.load %arg8[%c3_127, %c0_128, %c0_129] : memref<5x128x128xbf16, #tpu.memory_space<vmem>>, vector<1x128x128xbf16>
    %117 = vector.shape_cast %116 : vector<1x128x128xbf16> to vector<128x128xbf16>
    %cst_130 = arith.constant dense<0.000000e+00> : vector<16x128xf32>
    %118 = tpu.matmul %115, %117, %cst_130 {dimension_numbers = #tpu.dot_dimension_numbers<[1], [0], [0], [1], [0, 0, 1, 1], [], []>} : vector<16x128xbf16>, vector<128x128xbf16>, vector<16x128xf32> -> vector<16x128xf32>
    %119 = arith.addf %114, %118 : vector<16x128xf32>
    %c18_131 = arith.constant 18 : index
    %c0_132 = arith.constant 0 : index
    %120 = vector.load %arg14[%c18_131, %c0_132] : memref<34x128xbf16, #tpu.memory_space<vmem>>, vector<16x128xbf16>
    %c4_133 = arith.constant 4 : index
    %c0_134 = arith.constant 0 : index
    %c0_135 = arith.constant 0 : index
    %121 = vector.load %arg8[%c4_133, %c0_134, %c0_135] : memref<5x128x128xbf16, #tpu.memory_space<vmem>>, vector<1x128x128xbf16>
    %122 = vector.shape_cast %121 : vector<1x128x128xbf16> to vector<128x128xbf16>
    %cst_136 = arith.constant dense<0.000000e+00> : vector<16x128xf32>
    %123 = tpu.matmul %120, %122, %cst_136 {dimension_numbers = #tpu.dot_dimension_numbers<[1], [0], [0], [1], [0, 0, 1, 1], [], []>} : vector<16x128xbf16>, vector<128x128xbf16>, vector<16x128xf32> -> vector<16x128xf32>
    %124 = arith.addf %119, %123 : vector<16x128xf32>
    %c0_137 = arith.constant 0 : index
    %c0_138 = arith.constant 0 : index
    %125 = vector.load %arg9[%c0_137, %c0_138] : memref<1x128xf32, #tpu.memory_space<vmem>>, vector<1x128xf32>
    %126 = vector.broadcast %125 : vector<1x128xf32> to vector<16x128xf32>
    %127 = arith.addf %124, %126 : vector<16x128xf32>
    %128 = math.tanh %127 : vector<16x128xf32>
    %129 = arith.truncf %128 : vector<16x128xf32> to vector<16x128xbf16>
    %c16_139 = arith.constant 16 : index
    %c0_140 = arith.constant 0 : index
    %130 = vector.load %arg13[%c16_139, %c0_140] : memref<34x128xbf16, #tpu.memory_space<vmem>>, vector<16x128xbf16>
    tpu.vector_store %arg13[%c16_139, %c0_140], %129 {strides = array<i32>} : memref<34x128xbf16, #tpu.memory_space<vmem>>, vector<16x128xbf16>,
    %c14_141 = arith.constant 14 : index
    %c0_142 = arith.constant 0 : index
    %131 = vector.load %arg13[%c14_141, %c0_142] : memref<34x128xbf16, #tpu.memory_space<vmem>>, vector<16x128xbf16>
    %c0_143 = arith.constant 0 : index
    %c0_144 = arith.constant 0 : index
    %c0_145 = arith.constant 0 : index
    %132 = vector.load %arg10[%c0_143, %c0_144, %c0_145] : memref<5x128x128xbf16, #tpu.memory_space<vmem>>, vector<1x128x128xbf16>
    %133 = vector.shape_cast %132 : vector<1x128x128xbf16> to vector<128x128xbf16>
    %cst_146 = arith.constant dense<0.000000e+00> : vector<16x128xf32>
    %134 = tpu.matmul %131, %133, %cst_146 {dimension_numbers = #tpu.dot_dimension_numbers<[1], [0], [0], [1], [0, 0, 1, 1], [], []>} : vector<16x128xbf16>, vector<128x128xbf16>, vector<16x128xf32> -> vector<16x128xf32>
    %c15_147 = arith.constant 15 : index
    %c0_148 = arith.constant 0 : index
    %135 = vector.load %arg13[%c15_147, %c0_148] : memref<34x128xbf16, #tpu.memory_space<vmem>>, vector<16x128xbf16>
    %c1_149 = arith.constant 1 : index
    %c0_150 = arith.constant 0 : index
    %c0_151 = arith.constant 0 : index
    %136 = vector.load %arg10[%c1_149, %c0_150, %c0_151] : memref<5x128x128xbf16, #tpu.memory_space<vmem>>, vector<1x128x128xbf16>
    %137 = vector.shape_cast %136 : vector<1x128x128xbf16> to vector<128x128xbf16>
    %cst_152 = arith.constant dense<0.000000e+00> : vector<16x128xf32>
    %138 = tpu.matmul %135, %137, %cst_152 {dimension_numbers = #tpu.dot_dimension_numbers<[1], [0], [0], [1], [0, 0, 1, 1], [], []>} : vector<16x128xbf16>, vector<128x128xbf16>, vector<16x128xf32> -> vector<16x128xf32>
    %139 = arith.addf %134, %138 : vector<16x128xf32>
    %c16_153 = arith.constant 16 : index
    %c0_154 = arith.constant 0 : index
    %140 = vector.load %arg13[%c16_153, %c0_154] : memref<34x128xbf16, #tpu.memory_space<vmem>>, vector<16x128xbf16>
    %c2_155 = arith.constant 2 : index
    %c0_156 = arith.constant 0 : index
    %c0_157 = arith.constant 0 : index
    %141 = vector.load %arg10[%c2_155, %c0_156, %c0_157] : memref<5x128x128xbf16, #tpu.memory_space<vmem>>, vector<1x128x128xbf16>
    %142 = vector.shape_cast %141 : vector<1x128x128xbf16> to vector<128x128xbf16>
    %cst_158 = arith.constant dense<0.000000e+00> : vector<16x128xf32>
    %143 = tpu.matmul %140, %142, %cst_158 {dimension_numbers = #tpu.dot_dimension_numbers<[1], [0], [0], [1], [0, 0, 1, 1], [], []>} : vector<16x128xbf16>, vector<128x128xbf16>, vector<16x128xf32> -> vector<16x128xf32>
    %144 = arith.addf %139, %143 : vector<16x128xf32>
    %c17_159 = arith.constant 17 : index
    %c0_160 = arith.constant 0 : index
    %145 = vector.load %arg13[%c17_159, %c0_160] : memref<34x128xbf16, #tpu.memory_space<vmem>>, vector<16x128xbf16>
    %c3_161 = arith.constant 3 : index
    %c0_162 = arith.constant 0 : index
    %c0_163 = arith.constant 0 : index
    %146 = vector.load %arg10[%c3_161, %c0_162, %c0_163] : memref<5x128x128xbf16, #tpu.memory_space<vmem>>, vector<1x128x128xbf16>
    %147 = vector.shape_cast %146 : vector<1x128x128xbf16> to vector<128x128xbf16>
    %cst_164 = arith.constant dense<0.000000e+00> : vector<16x128xf32>
    %148 = tpu.matmul %145, %147, %cst_164 {dimension_numbers = #tpu.dot_dimension_numbers<[1], [0], [0], [1], [0, 0, 1, 1], [], []>} : vector<16x128xbf16>, vector<128x128xbf16>, vector<16x128xf32> -> vector<16x128xf32>
    %149 = arith.addf %144, %148 : vector<16x128xf32>
    %c18_165 = arith.constant 18 : index
    %c0_166 = arith.constant 0 : index
    %150 = vector.load %arg13[%c18_165, %c0_166] : memref<34x128xbf16, #tpu.memory_space<vmem>>, vector<16x128xbf16>
    %c4_167 = arith.constant 4 : index
    %c0_168 = arith.constant 0 : index
    %c0_169 = arith.constant 0 : index
    %151 = vector.load %arg10[%c4_167, %c0_168, %c0_169] : memref<5x128x128xbf16, #tpu.memory_space<vmem>>, vector<1x128x128xbf16>
    %152 = vector.shape_cast %151 : vector<1x128x128xbf16> to vector<128x128xbf16>
    %cst_170 = arith.constant dense<0.000000e+00> : vector<16x128xf32>
    %153 = tpu.matmul %150, %152, %cst_170 {dimension_numbers = #tpu.dot_dimension_numbers<[1], [0], [0], [1], [0, 0, 1, 1], [], []>} : vector<16x128xbf16>, vector<128x128xbf16>, vector<16x128xf32> -> vector<16x128xf32>
    %154 = arith.addf %149, %153 : vector<16x128xf32>
    %c0_171 = arith.constant 0 : index
    %c0_172 = arith.constant 0 : index
    %155 = vector.load %arg11[%c0_171, %c0_172] : memref<1x128xf32, #tpu.memory_space<vmem>>, vector<1x128xf32>
    %156 = vector.broadcast %155 : vector<1x128xf32> to vector<16x128xf32>
    %157 = arith.addf %154, %156 : vector<16x128xf32>
    %c0_173 = arith.constant 0 : index
    %c0_174 = arith.constant 0 : index
    %c0_175 = arith.constant 0 : index
    %158 = vector.load %arg12[%c0_173, %c0_174, %c0_175] : memref<1x16x128xf32, #tpu.memory_space<vmem>>, vector<1x16x128xf32>
    %159 = vector.shape_cast %158 : vector<1x16x128xf32> to vector<16x128xf32>
    %160 = vector.shape_cast %157 : vector<16x128xf32> to vector<1x16x128xf32>
    tpu.vector_store %arg12[%c0_173, %c0_174, %c0_175], %160 {strides = array<i32>} : memref<1x16x128xf32, #tpu.memory_space<vmem>>, vector<1x16x128xf32>,
    return
  }
  func.func @transform_0(%arg0: i32) -> (i32, i32, i32) {
    %c0_i32 = arith.constant 0 : i32
    %c0_i32_0 = arith.constant 0 : i32
    %c0_i32_1 = arith.constant 0 : i32
    return %arg0, %c0_i32, %c0_i32_0 : i32, i32, i32
  }
  func.func @transform_1(%arg0: i32) -> (i32, i32, i32) {
    %c0_i32 = arith.constant 0 : i32
    %c0_i32_0 = arith.constant 0 : i32
    %c0_i32_1 = arith.constant 0 : i32
    %c0_i32_2 = arith.constant 0 : i32
    return %c0_i32, %c0_i32_0, %c0_i32_1 : i32, i32, i32
  }
  func.func @transform_2(%arg0: i32) -> (i32, i32) {
    %c0_i32 = arith.constant 0 : i32
    %c0_i32_0 = arith.constant 0 : i32
    %c0_i32_1 = arith.constant 0 : i32
    return %c0_i32, %c0_i32_0 : i32, i32
  }
  func.func @transform_3(%arg0: i32) -> (i32, i32, i32) {
    %c0_i32 = arith.constant 0 : i32
    %c0_i32_0 = arith.constant 0 : i32
    %c0_i32_1 = arith.constant 0 : i32
    %c0_i32_2 = arith.constant 0 : i32
    return %c0_i32, %c0_i32_0, %c0_i32_1 : i32, i32, i32
  }
  func.func @transform_4(%arg0: i32) -> (i32, i32) {
    %c0_i32 = arith.constant 0 : i32
    %c0_i32_0 = arith.constant 0 : i32
    %c0_i32_1 = arith.constant 0 : i32
    return %c0_i32, %c0_i32_0 : i32, i32
  }
  func.func @transform_5(%arg0: i32) -> (i32, i32, i32) {
    %c0_i32 = arith.constant 0 : i32
    %c0_i32_0 = arith.constant 0 : i32
    %c0_i32_1 = arith.constant 0 : i32
    %c0_i32_2 = arith.constant 0 : i32
    return %c0_i32, %c0_i32_0, %c0_i32_1 : i32, i32, i32
  }
  func.func @transform_6(%arg0: i32) -> (i32, i32) {
    %c0_i32 = arith.constant 0 : i32
    %c0_i32_0 = arith.constant 0 : i32
    %c0_i32_1 = arith.constant 0 : i32
    return %c0_i32, %c0_i32_0 : i32, i32
  }
  func.func @transform_7(%arg0: i32) -> (i32, i32, i32) {
    %c0_i32 = arith.constant 0 : i32
    %c0_i32_0 = arith.constant 0 : i32
    %c0_i32_1 = arith.constant 0 : i32
    %c0_i32_2 = arith.constant 0 : i32
    return %c0_i32, %c0_i32_0, %c0_i32_1 : i32, i32, i32
  }
  func.func @transform_8(%arg0: i32) -> (i32, i32) {
    %c0_i32 = arith.constant 0 : i32
    %c0_i32_0 = arith.constant 0 : i32
    %c0_i32_1 = arith.constant 0 : i32
    return %c0_i32, %c0_i32_0 : i32, i32
  }
  func.func @transform_9(%arg0: i32) -> (i32, i32, i32) {
    %c0_i32 = arith.constant 0 : i32
    %c0_i32_0 = arith.constant 0 : i32
    %c0_i32_1 = arith.constant 0 : i32
    %c0_i32_2 = arith.constant 0 : i32
    return %c0_i32, %c0_i32_0, %c0_i32_1 : i32, i32, i32
  }
  func.func @transform_10(%arg0: i32) -> (i32, i32) {
    %c0_i32 = arith.constant 0 : i32
    %c0_i32_0 = arith.constant 0 : i32
    %c0_i32_1 = arith.constant 0 : i32
    return %c0_i32, %c0_i32_0 : i32, i32
  }
  func.func @transform_11(%arg0: i32) -> (i32, i32, i32) {
    %c0_i32 = arith.constant 0 : i32
    %c0_i32_0 = arith.constant 0 : i32
    %c0_i32_1 = arith.constant 0 : i32
    return %arg0, %c0_i32, %c0_i32_0 : i32, i32, i32
  }
}

module attributes {stable_mosaic.version = 11 : i64} {
  func.func @fused_postnet_kernel(%arg0: i32, %arg1: memref<1x16x8xf32, #tpu.memory_space<vmem>>, %arg2: memref<5x128x128xbf16, #tpu.memory_space<vmem>>, %arg3: memref<1x128xf32, #tpu.memory_space<vmem>>, %arg4: memref<5x128x128xbf16, #tpu.memory_space<vmem>>, %arg5: memref<1x128xf32, #tpu.memory_space<vmem>>, %arg6: memref<5x128x128xbf16, #tpu.memory_space<vmem>>, %arg7: memref<1x128xf32, #tpu.memory_space<vmem>>, %arg8: memref<5x128x128xbf16, #tpu.memory_space<vmem>>, %arg9: memref<1x128xf32, #tpu.memory_space<vmem>>, %arg10: memref<5x128x128xbf16, #tpu.memory_space<vmem>>, %arg11: memref<1x128xf32, #tpu.memory_space<vmem>>, %arg12: memref<1x16x128xf32, #tpu.memory_space<vmem>>, %arg13: memref<34x128xbf16, #tpu.memory_space<vmem>>, %arg14: memref<34x128xbf16, #tpu.memory_space<vmem>>) attributes {dimension_semantics = [#tpu.dimension_semantics<parallel>], iteration_bounds = array<i64: 2>, scalar_prefetch = 0 : i64, scratch_operands = 2 : i64, tpu.core_type = #tpu.core_type<tc>, window_params = [{transform_indices = @transform_0, window_bounds = array<i64: 1, 16, 8>}, {pipeline_mode = #tpu.pipeline_mode<synchronous>, transform_indices = @transform_1, window_bounds = array<i64: 5, 128, 128>}, {pipeline_mode = #tpu.pipeline_mode<synchronous>, transform_indices = @transform_2, window_bounds = array<i64: 1, 128>}, {pipeline_mode = #tpu.pipeline_mode<synchronous>, transform_indices = @transform_3, window_bounds = array<i64: 5, 128, 128>}, {pipeline_mode = #tpu.pipeline_mode<synchronous>, transform_indices = @transform_4, window_bounds = array<i64: 1, 128>}, {pipeline_mode = #tpu.pipeline_mode<synchronous>, transform_indices = @transform_5, window_bounds = array<i64: 5, 128, 128>}, {pipeline_mode = #tpu.pipeline_mode<synchronous>, transform_indices = @transform_6, window_bounds = array<i64: 1, 128>}, {pipeline_mode = #tpu.pipeline_mode<synchronous>, transform_indices = @transform_7, window_bounds = array<i64: 5, 128, 128>}, {pipeline_mode = #tpu.pipeline_mode<synchronous>, transform_indices = @transform_8, window_bounds = array<i64: 1, 128>}, {pipeline_mode = #tpu.pipeline_mode<synchronous>, transform_indices = @transform_9, window_bounds = array<i64: 5, 128, 128>}, {pipeline_mode = #tpu.pipeline_mode<synchronous>, transform_indices = @transform_10, window_bounds = array<i64: 1, 128>}, {transform_indices = @transform_11, window_bounds = array<i64: 1, 16, 128>}]} {
    %cst = arith.constant 0.000000e+00 : bf16
    %0 = vector.broadcast %cst : bf16 to vector<2x128xbf16>
    %c14 = arith.constant 14 : index
    %c0 = arith.constant 0 : index
    %1 = vector.load %arg13[%c14, %c0] : memref<34x128xbf16, #tpu.memory_space<vmem>>, vector<2x128xbf16>
    tpu.vector_store %arg13[%c14, %c0], %0 {strides = array<i32>} : memref<34x128xbf16, #tpu.memory_space<vmem>>, vector<2x128xbf16>,
    %c32 = arith.constant 32 : index
    %c0_0 = arith.constant 0 : index
    %2 = vector.load %arg13[%c32, %c0_0] : memref<34x128xbf16, #tpu.memory_space<vmem>>, vector<2x128xbf16>
    tpu.vector_store %arg13[%c32, %c0_0], %0 {strides = array<i32>} : memref<34x128xbf16, #tpu.memory_space<vmem>>, vector<2x128xbf16>,
    %c14_1 = arith.constant 14 : index
    %c0_2 = arith.constant 0 : index
    %3 = vector.load %arg14[%c14_1, %c0_2] : memref<34x128xbf16, #tpu.memory_space<vmem>>, vector<2x128xbf16>
    tpu.vector_store %arg14[%c14_1, %c0_2], %0 {strides = array<i32>} : memref<34x128xbf16, #tpu.memory_space<vmem>>, vector<2x128xbf16>,
    %c32_3 = arith.constant 32 : index
    %c0_4 = arith.constant 0 : index
    %4 = vector.load %arg14[%c32_3, %c0_4] : memref<34x128xbf16, #tpu.memory_space<vmem>>, vector<2x128xbf16>
    tpu.vector_store %arg14[%c32_3, %c0_4], %0 {strides = array<i32>} : memref<34x128xbf16, #tpu.memory_space<vmem>>, vector<2x128xbf16>,
    %cst_5 = arith.constant 0.000000e+00 : bf16
    %5 = vector.broadcast %cst_5 : bf16 to vector<16x128xbf16>
    %c16 = arith.constant 16 : index
    %c0_6 = arith.constant 0 : index
    %6 = vector.load %arg13[%c16, %c0_6] : memref<34x128xbf16, #tpu.memory_space<vmem>>, vector<16x128xbf16>
    tpu.vector_store %arg13[%c16, %c0_6], %5 {strides = array<i32>} : memref<34x128xbf16, #tpu.memory_space<vmem>>, vector<16x128xbf16>,
    %c0_7 = arith.constant 0 : index
    %c0_8 = arith.constant 0 : index
    %c0_9 = arith.constant 0 : index
    %7 = vector.load %arg1[%c0_7, %c0_8, %c0_9] : memref<1x16x8xf32, #tpu.memory_space<vmem>>, vector<1x16x8xf32>
    %8 = vector.shape_cast %7 : vector<1x16x8xf32> to vector<16x8xf32>
    %9 = arith.truncf %8 : vector<16x8xf32> to vector<16x8xbf16>
    %c16_10 = arith.constant 16 : index
    %c0_11 = arith.constant 0 : index
    %10 = vector.load %arg13[%c16_10, %c0_11] : memref<34x128xbf16, #tpu.memory_space<vmem>>, vector<16x8xbf16>
    tpu.vector_store %arg13[%c16_10, %c0_11], %9 {strides = array<i32>} : memref<34x128xbf16, #tpu.memory_space<vmem>>, vector<16x8xbf16>,
    %c14_12 = arith.constant 14 : index
    %c0_13 = arith.constant 0 : index
    %11 = vector.load %arg13[%c14_12, %c0_13] : memref<34x128xbf16, #tpu.memory_space<vmem>>, vector<16x128xbf16>
    %c0_14 = arith.constant 0 : index
    %c0_15 = arith.constant 0 : index
    %c0_16 = arith.constant 0 : index
    %12 = vector.load %arg2[%c0_14, %c0_15, %c0_16] : memref<5x128x128xbf16, #tpu.memory_space<vmem>>, vector<1x128x128xbf16>
    %13 = vector.shape_cast %12 : vector<1x128x128xbf16> to vector<128x128xbf16>
    %cst_17 = arith.constant dense<0.000000e+00> : vector<16x128xf32>
    %14 = tpu.matmul %11, %13, %cst_17 {dimension_numbers = #tpu.dot_dimension_numbers<[1], [0], [0], [1], [0, 0, 1, 1], [], []>} : vector<16x128xbf16>, vector<128x128xbf16>, vector<16x128xf32> -> vector<16x128xf32>
    %c15 = arith.constant 15 : index
    %c0_18 = arith.constant 0 : index
    %15 = vector.load %arg13[%c15, %c0_18] : memref<34x128xbf16, #tpu.memory_space<vmem>>, vector<16x128xbf16>
    %c1 = arith.constant 1 : index
    %c0_19 = arith.constant 0 : index
    %c0_20 = arith.constant 0 : index
    %16 = vector.load %arg2[%c1, %c0_19, %c0_20] : memref<5x128x128xbf16, #tpu.memory_space<vmem>>, vector<1x128x128xbf16>
    %17 = vector.shape_cast %16 : vector<1x128x128xbf16> to vector<128x128xbf16>
    %cst_21 = arith.constant dense<0.000000e+00> : vector<16x128xf32>
    %18 = tpu.matmul %15, %17, %cst_21 {dimension_numbers = #tpu.dot_dimension_numbers<[1], [0], [0], [1], [0, 0, 1, 1], [], []>} : vector<16x128xbf16>, vector<128x128xbf16>, vector<16x128xf32> -> vector<16x128xf32>
    %19 = arith.addf %14, %18 : vector<16x128xf32>
    %c16_22 = arith.constant 16 : index
    %c0_23 = arith.constant 0 : index
    %20 = vector.load %arg13[%c16_22, %c0_23] : memref<34x128xbf16, #tpu.memory_space<vmem>>, vector<16x128xbf16>
    %c2 = arith.constant 2 : index
    %c0_24 = arith.constant 0 : index
    %c0_25 = arith.constant 0 : index
    %21 = vector.load %arg2[%c2, %c0_24, %c0_25] : memref<5x128x128xbf16, #tpu.memory_space<vmem>>, vector<1x128x128xbf16>
    %22 = vector.shape_cast %21 : vector<1x128x128xbf16> to vector<128x128xbf16>
    %cst_26 = arith.constant dense<0.000000e+00> : vector<16x128xf32>
    %23 = tpu.matmul %20, %22, %cst_26 {dimension_numbers = #tpu.dot_dimension_numbers<[1], [0], [0], [1], [0, 0, 1, 1], [], []>} : vector<16x128xbf16>, vector<128x128xbf16>, vector<16x128xf32> -> vector<16x128xf32>
    %24 = arith.addf %19, %23 : vector<16x128xf32>
    %c17 = arith.constant 17 : index
    %c0_27 = arith.constant 0 : index
    %25 = vector.load %arg13[%c17, %c0_27] : memref<34x128xbf16, #tpu.memory_space<vmem>>, vector<16x128xbf16>
    %c3 = arith.constant 3 : index
    %c0_28 = arith.constant 0 : index
    %c0_29 = arith.constant 0 : index
    %26 = vector.load %arg2[%c3, %c0_28, %c0_29] : memref<5x128x128xbf16, #tpu.memory_space<vmem>>, vector<1x128x128xbf16>
    %27 = vector.shape_cast %26 : vector<1x128x128xbf16> to vector<128x128xbf16>
    %cst_30 = arith.constant dense<0.000000e+00> : vector<16x128xf32>
    %28 = tpu.matmul %25, %27, %cst_30 {dimension_numbers = #tpu.dot_dimension_numbers<[1], [0], [0], [1], [0, 0, 1, 1], [], []>} : vector<16x128xbf16>, vector<128x128xbf16>, vector<16x128xf32> -> vector<16x128xf32>
    %29 = arith.addf %24, %28 : vector<16x128xf32>
    %c18 = arith.constant 18 : index
    %c0_31 = arith.constant 0 : index
    %30 = vector.load %arg13[%c18, %c0_31] : memref<34x128xbf16, #tpu.memory_space<vmem>>, vector<16x128xbf16>
    %c4 = arith.constant 4 : index
    %c0_32 = arith.constant 0 : index
    %c0_33 = arith.constant 0 : index
    %31 = vector.load %arg2[%c4, %c0_32, %c0_33] : memref<5x128x128xbf16, #tpu.memory_space<vmem>>, vector<1x128x128xbf16>
    %32 = vector.shape_cast %31 : vector<1x128x128xbf16> to vector<128x128xbf16>
    %cst_34 = arith.constant dense<0.000000e+00> : vector<16x128xf32>
    %33 = tpu.matmul %30, %32, %cst_34 {dimension_numbers = #tpu.dot_dimension_numbers<[1], [0], [0], [1], [0, 0, 1, 1], [], []>} : vector<16x128xbf16>, vector<128x128xbf16>, vector<16x128xf32> -> vector<16x128xf32>
    %34 = arith.addf %29, %33 : vector<16x128xf32>
    %c0_35 = arith.constant 0 : index
    %c0_36 = arith.constant 0 : index
    %35 = vector.load %arg3[%c0_35, %c0_36] : memref<1x128xf32, #tpu.memory_space<vmem>>, vector<1x128xf32>
    %36 = vector.broadcast %35 : vector<1x128xf32> to vector<16x128xf32>
    %37 = arith.addf %34, %36 : vector<16x128xf32>
    %38 = math.tanh %37 : vector<16x128xf32>
    %39 = arith.truncf %38 : vector<16x128xf32> to vector<16x128xbf16>
    %c16_37 = arith.constant 16 : index
    %c0_38 = arith.constant 0 : index
    %40 = vector.load %arg14[%c16_37, %c0_38] : memref<34x128xbf16, #tpu.memory_space<vmem>>, vector<16x128xbf16>
    tpu.vector_store %arg14[%c16_37, %c0_38], %39 {strides = array<i32>} : memref<34x128xbf16, #tpu.memory_space<vmem>>, vector<16x128xbf16>,
    %c14_39 = arith.constant 14 : index
    %c0_40 = arith.constant 0 : index
    %41 = vector.load %arg14[%c14_39, %c0_40] : memref<34x128xbf16, #tpu.memory_space<vmem>>, vector<16x128xbf16>
    %c0_41 = arith.constant 0 : index
    %c0_42 = arith.constant 0 : index
    %c0_43 = arith.constant 0 : index
    %42 = vector.load %arg4[%c0_41, %c0_42, %c0_43] : memref<5x128x128xbf16, #tpu.memory_space<vmem>>, vector<1x128x128xbf16>
    %43 = vector.shape_cast %42 : vector<1x128x128xbf16> to vector<128x128xbf16>
    %cst_44 = arith.constant dense<0.000000e+00> : vector<16x128xf32>
    %44 = tpu.matmul %41, %43, %cst_44 {dimension_numbers = #tpu.dot_dimension_numbers<[1], [0], [0], [1], [0, 0, 1, 1], [], []>} : vector<16x128xbf16>, vector<128x128xbf16>, vector<16x128xf32> -> vector<16x128xf32>
    %c15_45 = arith.constant 15 : index
    %c0_46 = arith.constant 0 : index
    %45 = vector.load %arg14[%c15_45, %c0_46] : memref<34x128xbf16, #tpu.memory_space<vmem>>, vector<16x128xbf16>
    %c1_47 = arith.constant 1 : index
    %c0_48 = arith.constant 0 : index
    %c0_49 = arith.constant 0 : index
    %46 = vector.load %arg4[%c1_47, %c0_48, %c0_49] : memref<5x128x128xbf16, #tpu.memory_space<vmem>>, vector<1x128x128xbf16>
    %47 = vector.shape_cast %46 : vector<1x128x128xbf16> to vector<128x128xbf16>
    %cst_50 = arith.constant dense<0.000000e+00> : vector<16x128xf32>
    %48 = tpu.matmul %45, %47, %cst_50 {dimension_numbers = #tpu.dot_dimension_numbers<[1], [0], [0], [1], [0, 0, 1, 1], [], []>} : vector<16x128xbf16>, vector<128x128xbf16>, vector<16x128xf32> -> vector<16x128xf32>
    %49 = arith.addf %44, %48 : vector<16x128xf32>
    %c16_51 = arith.constant 16 : index
    %c0_52 = arith.constant 0 : index
    %50 = vector.load %arg14[%c16_51, %c0_52] : memref<34x128xbf16, #tpu.memory_space<vmem>>, vector<16x128xbf16>
    %c2_53 = arith.constant 2 : index
    %c0_54 = arith.constant 0 : index
    %c0_55 = arith.constant 0 : index
    %51 = vector.load %arg4[%c2_53, %c0_54, %c0_55] : memref<5x128x128xbf16, #tpu.memory_space<vmem>>, vector<1x128x128xbf16>
    %52 = vector.shape_cast %51 : vector<1x128x128xbf16> to vector<128x128xbf16>
    %cst_56 = arith.constant dense<0.000000e+00> : vector<16x128xf32>
    %53 = tpu.matmul %50, %52, %cst_56 {dimension_numbers = #tpu.dot_dimension_numbers<[1], [0], [0], [1], [0, 0, 1, 1], [], []>} : vector<16x128xbf16>, vector<128x128xbf16>, vector<16x128xf32> -> vector<16x128xf32>
    %54 = arith.addf %49, %53 : vector<16x128xf32>
    %c17_57 = arith.constant 17 : index
    %c0_58 = arith.constant 0 : index
    %55 = vector.load %arg14[%c17_57, %c0_58] : memref<34x128xbf16, #tpu.memory_space<vmem>>, vector<16x128xbf16>
    %c3_59 = arith.constant 3 : index
    %c0_60 = arith.constant 0 : index
    %c0_61 = arith.constant 0 : index
    %56 = vector.load %arg4[%c3_59, %c0_60, %c0_61] : memref<5x128x128xbf16, #tpu.memory_space<vmem>>, vector<1x128x128xbf16>
    %57 = vector.shape_cast %56 : vector<1x128x128xbf16> to vector<128x128xbf16>
    %cst_62 = arith.constant dense<0.000000e+00> : vector<16x128xf32>
    %58 = tpu.matmul %55, %57, %cst_62 {dimension_numbers = #tpu.dot_dimension_numbers<[1], [0], [0], [1], [0, 0, 1, 1], [], []>} : vector<16x128xbf16>, vector<128x128xbf16>, vector<16x128xf32> -> vector<16x128xf32>
    %59 = arith.addf %54, %58 : vector<16x128xf32>
    %c18_63 = arith.constant 18 : index
    %c0_64 = arith.constant 0 : index
    %60 = vector.load %arg14[%c18_63, %c0_64] : memref<34x128xbf16, #tpu.memory_space<vmem>>, vector<16x128xbf16>
    %c4_65 = arith.constant 4 : index
    %c0_66 = arith.constant 0 : index
    %c0_67 = arith.constant 0 : index
    %61 = vector.load %arg4[%c4_65, %c0_66, %c0_67] : memref<5x128x128xbf16, #tpu.memory_space<vmem>>, vector<1x128x128xbf16>
    %62 = vector.shape_cast %61 : vector<1x128x128xbf16> to vector<128x128xbf16>
    %cst_68 = arith.constant dense<0.000000e+00> : vector<16x128xf32>
    %63 = tpu.matmul %60, %62, %cst_68 {dimension_numbers = #tpu.dot_dimension_numbers<[1], [0], [0], [1], [0, 0, 1, 1], [], []>} : vector<16x128xbf16>, vector<128x128xbf16>, vector<16x128xf32> -> vector<16x128xf32>
    %64 = arith.addf %59, %63 : vector<16x128xf32>
    %c0_69 = arith.constant 0 : index
    %c0_70 = arith.constant 0 : index
    %65 = vector.load %arg5[%c0_69, %c0_70] : memref<1x128xf32, #tpu.memory_space<vmem>>, vector<1x128xf32>
    %66 = vector.broadcast %65 : vector<1x128xf32> to vector<16x128xf32>
    %67 = arith.addf %64, %66 : vector<16x128xf32>
    %68 = math.tanh %67 : vector<16x128xf32>
    %69 = arith.truncf %68 : vector<16x128xf32> to vector<16x128xbf16>
    %c16_71 = arith.constant 16 : index
    %c0_72 = arith.constant 0 : index
    %70 = vector.load %arg13[%c16_71, %c0_72] : memref<34x128xbf16, #tpu.memory_space<vmem>>, vector<16x128xbf16>
    tpu.vector_store %arg13[%c16_71, %c0_72], %69 {strides = array<i32>} : memref<34x128xbf16, #tpu.memory_space<vmem>>, vector<16x128xbf16>,
    %c14_73 = arith.constant 14 : index
    %c0_74 = arith.constant 0 : index
    %71 = vector.load %arg13[%c14_73, %c0_74] : memref<34x128xbf16, #tpu.memory_space<vmem>>, vector<16x128xbf16>
    %c0_75 = arith.constant 0 : index
    %c0_76 = arith.constant 0 : index
    %c0_77 = arith.constant 0 : index
    %72 = vector.load %arg6[%c0_75, %c0_76, %c0_77] : memref<5x128x128xbf16, #tpu.memory_space<vmem>>, vector<1x128x128xbf16>
    %73 = vector.shape_cast %72 : vector<1x128x128xbf16> to vector<128x128xbf16>
    %cst_78 = arith.constant dense<0.000000e+00> : vector<16x128xf32>
    %74 = tpu.matmul %71, %73, %cst_78 {dimension_numbers = #tpu.dot_dimension_numbers<[1], [0], [0], [1], [0, 0, 1, 1], [], []>} : vector<16x128xbf16>, vector<128x128xbf16>, vector<16x128xf32> -> vector<16x128xf32>
    %c15_79 = arith.constant 15 : index
    %c0_80 = arith.constant 0 : index
    %75 = vector.load %arg13[%c15_79, %c0_80] : memref<34x128xbf16, #tpu.memory_space<vmem>>, vector<16x128xbf16>
    %c1_81 = arith.constant 1 : index
    %c0_82 = arith.constant 0 : index
    %c0_83 = arith.constant 0 : index
    %76 = vector.load %arg6[%c1_81, %c0_82, %c0_83] : memref<5x128x128xbf16, #tpu.memory_space<vmem>>, vector<1x128x128xbf16>
    %77 = vector.shape_cast %76 : vector<1x128x128xbf16> to vector<128x128xbf16>
    %cst_84 = arith.constant dense<0.000000e+00> : vector<16x128xf32>
    %78 = tpu.matmul %75, %77, %cst_84 {dimension_numbers = #tpu.dot_dimension_numbers<[1], [0], [0], [1], [0, 0, 1, 1], [], []>} : vector<16x128xbf16>, vector<128x128xbf16>, vector<16x128xf32> -> vector<16x128xf32>
    %79 = arith.addf %74, %78 : vector<16x128xf32>
    %c16_85 = arith.constant 16 : index
    %c0_86 = arith.constant 0 : index
    %80 = vector.load %arg13[%c16_85, %c0_86] : memref<34x128xbf16, #tpu.memory_space<vmem>>, vector<16x128xbf16>
    %c2_87 = arith.constant 2 : index
    %c0_88 = arith.constant 0 : index
    %c0_89 = arith.constant 0 : index
    %81 = vector.load %arg6[%c2_87, %c0_88, %c0_89] : memref<5x128x128xbf16, #tpu.memory_space<vmem>>, vector<1x128x128xbf16>
    %82 = vector.shape_cast %81 : vector<1x128x128xbf16> to vector<128x128xbf16>
    %cst_90 = arith.constant dense<0.000000e+00> : vector<16x128xf32>
    %83 = tpu.matmul %80, %82, %cst_90 {dimension_numbers = #tpu.dot_dimension_numbers<[1], [0], [0], [1], [0, 0, 1, 1], [], []>} : vector<16x128xbf16>, vector<128x128xbf16>, vector<16x128xf32> -> vector<16x128xf32>
    %84 = arith.addf %79, %83 : vector<16x128xf32>
    %c17_91 = arith.constant 17 : index
    %c0_92 = arith.constant 0 : index
    %85 = vector.load %arg13[%c17_91, %c0_92] : memref<34x128xbf16, #tpu.memory_space<vmem>>, vector<16x128xbf16>
    %c3_93 = arith.constant 3 : index
    %c0_94 = arith.constant 0 : index
    %c0_95 = arith.constant 0 : index
    %86 = vector.load %arg6[%c3_93, %c0_94, %c0_95] : memref<5x128x128xbf16, #tpu.memory_space<vmem>>, vector<1x128x128xbf16>
    %87 = vector.shape_cast %86 : vector<1x128x128xbf16> to vector<128x128xbf16>
    %cst_96 = arith.constant dense<0.000000e+00> : vector<16x128xf32>
    %88 = tpu.matmul %85, %87, %cst_96 {dimension_numbers = #tpu.dot_dimension_numbers<[1], [0], [0], [1], [0, 0, 1, 1], [], []>} : vector<16x128xbf16>, vector<128x128xbf16>, vector<16x128xf32> -> vector<16x128xf32>
    %89 = arith.addf %84, %88 : vector<16x128xf32>
    %c18_97 = arith.constant 18 : index
    %c0_98 = arith.constant 0 : index
    %90 = vector.load %arg13[%c18_97, %c0_98] : memref<34x128xbf16, #tpu.memory_space<vmem>>, vector<16x128xbf16>
    %c4_99 = arith.constant 4 : index
    %c0_100 = arith.constant 0 : index
    %c0_101 = arith.constant 0 : index
    %91 = vector.load %arg6[%c4_99, %c0_100, %c0_101] : memref<5x128x128xbf16, #tpu.memory_space<vmem>>, vector<1x128x128xbf16>
    %92 = vector.shape_cast %91 : vector<1x128x128xbf16> to vector<128x128xbf16>
    %cst_102 = arith.constant dense<0.000000e+00> : vector<16x128xf32>
    %93 = tpu.matmul %90, %92, %cst_102 {dimension_numbers = #tpu.dot_dimension_numbers<[1], [0], [0], [1], [0, 0, 1, 1], [], []>} : vector<16x128xbf16>, vector<128x128xbf16>, vector<16x128xf32> -> vector<16x128xf32>
    %94 = arith.addf %89, %93 : vector<16x128xf32>
    %c0_103 = arith.constant 0 : index
    %c0_104 = arith.constant 0 : index
    %95 = vector.load %arg7[%c0_103, %c0_104] : memref<1x128xf32, #tpu.memory_space<vmem>>, vector<1x128xf32>
    %96 = vector.broadcast %95 : vector<1x128xf32> to vector<16x128xf32>
    %97 = arith.addf %94, %96 : vector<16x128xf32>
    %98 = math.tanh %97 : vector<16x128xf32>
    %99 = arith.truncf %98 : vector<16x128xf32> to vector<16x128xbf16>
    %c16_105 = arith.constant 16 : index
    %c0_106 = arith.constant 0 : index
    %100 = vector.load %arg14[%c16_105, %c0_106] : memref<34x128xbf16, #tpu.memory_space<vmem>>, vector<16x128xbf16>
    tpu.vector_store %arg14[%c16_105, %c0_106], %99 {strides = array<i32>} : memref<34x128xbf16, #tpu.memory_space<vmem>>, vector<16x128xbf16>,
    %c14_107 = arith.constant 14 : index
    %c0_108 = arith.constant 0 : index
    %101 = vector.load %arg14[%c14_107, %c0_108] : memref<34x128xbf16, #tpu.memory_space<vmem>>, vector<16x128xbf16>
    %c0_109 = arith.constant 0 : index
    %c0_110 = arith.constant 0 : index
    %c0_111 = arith.constant 0 : index
    %102 = vector.load %arg8[%c0_109, %c0_110, %c0_111] : memref<5x128x128xbf16, #tpu.memory_space<vmem>>, vector<1x128x128xbf16>
    %103 = vector.shape_cast %102 : vector<1x128x128xbf16> to vector<128x128xbf16>
    %cst_112 = arith.constant dense<0.000000e+00> : vector<16x128xf32>
    %104 = tpu.matmul %101, %103, %cst_112 {dimension_numbers = #tpu.dot_dimension_numbers<[1], [0], [0], [1], [0, 0, 1, 1], [], []>} : vector<16x128xbf16>, vector<128x128xbf16>, vector<16x128xf32> -> vector<16x128xf32>
    %c15_113 = arith.constant 15 : index
    %c0_114 = arith.constant 0 : index
    %105 = vector.load %arg14[%c15_113, %c0_114] : memref<34x128xbf16, #tpu.memory_space<vmem>>, vector<16x128xbf16>
    %c1_115 = arith.constant 1 : index
    %c0_116 = arith.constant 0 : index
    %c0_117 = arith.constant 0 : index
    %106 = vector.load %arg8[%c1_115, %c0_116, %c0_117] : memref<5x128x128xbf16, #tpu.memory_space<vmem>>, vector<1x128x128xbf16>
    %107 = vector.shape_cast %106 : vector<1x128x128xbf16> to vector<128x128xbf16>
    %cst_118 = arith.constant dense<0.000000e+00> : vector<16x128xf32>
    %108 = tpu.matmul %105, %107, %cst_118 {dimension_numbers = #tpu.dot_dimension_numbers<[1], [0], [0], [1], [0, 0, 1, 1], [], []>} : vector<16x128xbf16>, vector<128x128xbf16>, vector<16x128xf32> -> vector<16x128xf32>
    %109 = arith.addf %104, %108 : vector<16x128xf32>
    %c16_119 = arith.constant 16 : index
    %c0_120 = arith.constant 0 : index
    %110 = vector.load %arg14[%c16_119, %c0_120] : memref<34x128xbf16, #tpu.memory_space<vmem>>, vector<16x128xbf16>
    %c2_121 = arith.constant 2 : index
    %c0_122 = arith.constant 0 : index
    %c0_123 = arith.constant 0 : index
    %111 = vector.load %arg8[%c2_121, %c0_122, %c0_123] : memref<5x128x128xbf16, #tpu.memory_space<vmem>>, vector<1x128x128xbf16>
    %112 = vector.shape_cast %111 : vector<1x128x128xbf16> to vector<128x128xbf16>
    %cst_124 = arith.constant dense<0.000000e+00> : vector<16x128xf32>
    %113 = tpu.matmul %110, %112, %cst_124 {dimension_numbers = #tpu.dot_dimension_numbers<[1], [0], [0], [1], [0, 0, 1, 1], [], []>} : vector<16x128xbf16>, vector<128x128xbf16>, vector<16x128xf32> -> vector<16x128xf32>
    %114 = arith.addf %109, %113 : vector<16x128xf32>
    %c17_125 = arith.constant 17 : index
    %c0_126 = arith.constant 0 : index
    %115 = vector.load %arg14[%c17_125, %c0_126] : memref<34x128xbf16, #tpu.memory_space<vmem>>, vector<16x128xbf16>
    %c3_127 = arith.constant 3 : index
    %c0_128 = arith.constant 0 : index
    %c0_129 = arith.constant 0 : index
    %116 = vector.load %arg8[%c3_127, %c0_128, %c0_129] : memref<5x128x128xbf16, #tpu.memory_space<vmem>>, vector<1x128x128xbf16>
    %117 = vector.shape_cast %116 : vector<1x128x128xbf16> to vector<128x128xbf16>
    %cst_130 = arith.constant dense<0.000000e+00> : vector<16x128xf32>
    %118 = tpu.matmul %115, %117, %cst_130 {dimension_numbers = #tpu.dot_dimension_numbers<[1], [0], [0], [1], [0, 0, 1, 1], [], []>} : vector<16x128xbf16>, vector<128x128xbf16>, vector<16x128xf32> -> vector<16x128xf32>
    %119 = arith.addf %114, %118 : vector<16x128xf32>
    %c18_131 = arith.constant 18 : index
    %c0_132 = arith.constant 0 : index
    %120 = vector.load %arg14[%c18_131, %c0_132] : memref<34x128xbf16, #tpu.memory_space<vmem>>, vector<16x128xbf16>
    %c4_133 = arith.constant 4 : index
    %c0_134 = arith.constant 0 : index
    %c0_135 = arith.constant 0 : index
    %121 = vector.load %arg8[%c4_133, %c0_134, %c0_135] : memref<5x128x128xbf16, #tpu.memory_space<vmem>>, vector<1x128x128xbf16>
    %122 = vector.shape_cast %121 : vector<1x128x128xbf16> to vector<128x128xbf16>
    %cst_136 = arith.constant dense<0.000000e+00> : vector<16x128xf32>
    %123 = tpu.matmul %120, %122, %cst_136 {dimension_numbers = #tpu.dot_dimension_numbers<[1], [0], [0], [1], [0, 0, 1, 1], [], []>} : vector<16x128xbf16>, vector<128x128xbf16>, vector<16x128xf32> -> vector<16x128xf32>
    %124 = arith.addf %119, %123 : vector<16x128xf32>
    %c0_137 = arith.constant 0 : index
    %c0_138 = arith.constant 0 : index
    %125 = vector.load %arg9[%c0_137, %c0_138] : memref<1x128xf32, #tpu.memory_space<vmem>>, vector<1x128xf32>
    %126 = vector.broadcast %125 : vector<1x128xf32> to vector<16x128xf32>
    %127 = arith.addf %124, %126 : vector<16x128xf32>
    %128 = math.tanh %127 : vector<16x128xf32>
    %129 = arith.truncf %128 : vector<16x128xf32> to vector<16x128xbf16>
    %c16_139 = arith.constant 16 : index
    %c0_140 = arith.constant 0 : index
    %130 = vector.load %arg13[%c16_139, %c0_140] : memref<34x128xbf16, #tpu.memory_space<vmem>>, vector<16x128xbf16>
    tpu.vector_store %arg13[%c16_139, %c0_140], %129 {strides = array<i32>} : memref<34x128xbf16, #tpu.memory_space<vmem>>, vector<16x128xbf16>,
    %c14_141 = arith.constant 14 : index
    %c0_142 = arith.constant 0 : index
    %131 = vector.load %arg13[%c14_141, %c0_142] : memref<34x128xbf16, #tpu.memory_space<vmem>>, vector<16x128xbf16>
    %c0_143 = arith.constant 0 : index
    %c0_144 = arith.constant 0 : index
    %c0_145 = arith.constant 0 : index
    %132 = vector.load %arg10[%c0_143, %c0_144, %c0_145] : memref<5x128x128xbf16, #tpu.memory_space<vmem>>, vector<1x128x128xbf16>
    %133 = vector.shape_cast %132 : vector<1x128x128xbf16> to vector<128x128xbf16>
    %cst_146 = arith.constant dense<0.000000e+00> : vector<16x128xf32>
    %134 = tpu.matmul %131, %133, %cst_146 {dimension_numbers = #tpu.dot_dimension_numbers<[1], [0], [0], [1], [0, 0, 1, 1], [], []>} : vector<16x128xbf16>, vector<128x128xbf16>, vector<16x128xf32> -> vector<16x128xf32>
    %c15_147 = arith.constant 15 : index
    %c0_148 = arith.constant 0 : index
    %135 = vector.load %arg13[%c15_147, %c0_148] : memref<34x128xbf16, #tpu.memory_space<vmem>>, vector<16x128xbf16>
    %c1_149 = arith.constant 1 : index
    %c0_150 = arith.constant 0 : index
    %c0_151 = arith.constant 0 : index
    %136 = vector.load %arg10[%c1_149, %c0_150, %c0_151] : memref<5x128x128xbf16, #tpu.memory_space<vmem>>, vector<1x128x128xbf16>
    %137 = vector.shape_cast %136 : vector<1x128x128xbf16> to vector<128x128xbf16>
    %cst_152 = arith.constant dense<0.000000e+00> : vector<16x128xf32>
    %138 = tpu.matmul %135, %137, %cst_152 {dimension_numbers = #tpu.dot_dimension_numbers<[1], [0], [0], [1], [0, 0, 1, 1], [], []>} : vector<16x128xbf16>, vector<128x128xbf16>, vector<16x128xf32> -> vector<16x128xf32>
    %139 = arith.addf %134, %138 : vector<16x128xf32>
    %c16_153 = arith.constant 16 : index
    %c0_154 = arith.constant 0 : index
    %140 = vector.load %arg13[%c16_153, %c0_154] : memref<34x128xbf16, #tpu.memory_space<vmem>>, vector<16x128xbf16>
    %c2_155 = arith.constant 2 : index
    %c0_156 = arith.constant 0 : index
    %c0_157 = arith.constant 0 : index
    %141 = vector.load %arg10[%c2_155, %c0_156, %c0_157] : memref<5x128x128xbf16, #tpu.memory_space<vmem>>, vector<1x128x128xbf16>
    %142 = vector.shape_cast %141 : vector<1x128x128xbf16> to vector<128x128xbf16>
    %cst_158 = arith.constant dense<0.000000e+00> : vector<16x128xf32>
    %143 = tpu.matmul %140, %142, %cst_158 {dimension_numbers = #tpu.dot_dimension_numbers<[1], [0], [0], [1], [0, 0, 1, 1], [], []>} : vector<16x128xbf16>, vector<128x128xbf16>, vector<16x128xf32> -> vector<16x128xf32>
    %144 = arith.addf %139, %143 : vector<16x128xf32>
    %c17_159 = arith.constant 17 : index
    %c0_160 = arith.constant 0 : index
    %145 = vector.load %arg13[%c17_159, %c0_160] : memref<34x128xbf16, #tpu.memory_space<vmem>>, vector<16x128xbf16>
    %c3_161 = arith.constant 3 : index
    %c0_162 = arith.constant 0 : index
    %c0_163 = arith.constant 0 : index
    %146 = vector.load %arg10[%c3_161, %c0_162, %c0_163] : memref<5x128x128xbf16, #tpu.memory_space<vmem>>, vector<1x128x128xbf16>
    %147 = vector.shape_cast %146 : vector<1x128x128xbf16> to vector<128x128xbf16>
    %cst_164 = arith.constant dense<0.000000e+00> : vector<16x128xf32>
    %148 = tpu.matmul %145, %147, %cst_164 {dimension_numbers = #tpu.dot_dimension_numbers<[1], [0], [0], [1], [0, 0, 1, 1], [], []>} : vector<16x128xbf16>, vector<128x128xbf16>, vector<16x128xf32> -> vector<16x128xf32>
    %149 = arith.addf %144, %148 : vector<16x128xf32>
    %c18_165 = arith.constant 18 : index
    %c0_166 = arith.constant 0 : index
    %150 = vector.load %arg13[%c18_165, %c0_166] : memref<34x128xbf16, #tpu.memory_space<vmem>>, vector<16x128xbf16>
    %c4_167 = arith.constant 4 : index
    %c0_168 = arith.constant 0 : index
    %c0_169 = arith.constant 0 : index
    %151 = vector.load %arg10[%c4_167, %c0_168, %c0_169] : memref<5x128x128xbf16, #tpu.memory_space<vmem>>, vector<1x128x128xbf16>
    %152 = vector.shape_cast %151 : vector<1x128x128xbf16> to vector<128x128xbf16>
    %cst_170 = arith.constant dense<0.000000e+00> : vector<16x128xf32>
    %153 = tpu.matmul %150, %152, %cst_170 {dimension_numbers = #tpu.dot_dimension_numbers<[1], [0], [0], [1], [0, 0, 1, 1], [], []>} : vector<16x128xbf16>, vector<128x128xbf16>, vector<16x128xf32> -> vector<16x128xf32>
    %154 = arith.addf %149, %153 : vector<16x128xf32>
    %c0_171 = arith.constant 0 : index
    %c0_172 = arith.constant 0 : index
    %155 = vector.load %arg11[%c0_171, %c0_172] : memref<1x128xf32, #tpu.memory_space<vmem>>, vector<1x128xf32>
    %156 = vector.broadcast %155 : vector<1x128xf32> to vector<16x128xf32>
    %157 = arith.addf %154, %156 : vector<16x128xf32>
    %c0_173 = arith.constant 0 : index
    %c0_174 = arith.constant 0 : index
    %c0_175 = arith.constant 0 : index
    %158 = vector.load %arg12[%c0_173, %c0_174, %c0_175] : memref<1x16x128xf32, #tpu.memory_space<vmem>>, vector<1x16x128xf32>
    %159 = vector.shape_cast %158 : vector<1x16x128xf32> to vector<16x128xf32>
    %160 = vector.shape_cast %157 : vector<16x128xf32> to vector<1x16x128xf32>
    tpu.vector_store %arg12[%c0_173, %c0_174, %c0_175], %160 {strides = array<i32>} : memref<1x16x128xf32, #tpu.memory_space<vmem>>, vector<1x16x128xf32>,
    return
  }
  func.func @transform_0(%arg0: i32) -> (i32, i32, i32) {
    %c0_i32 = arith.constant 0 : i32
    %c0_i32_0 = arith.constant 0 : i32
    %c0_i32_1 = arith.constant 0 : i32
    return %arg0, %c0_i32, %c0_i32_0 : i32, i32, i32
  }
  func.func @transform_1(%arg0: i32) -> (i32, i32, i32) {
    %c0_i32 = arith.constant 0 : i32
    %c0_i32_0 = arith.constant 0 : i32
    %c0_i32_1 = arith.constant 0 : i32
    %c0_i32_2 = arith.constant 0 : i32
    return %c0_i32, %c0_i32_0, %c0_i32_1 : i32, i32, i32
  }
  func.func @transform_2(%arg0: i32) -> (i32, i32) {
    %c0_i32 = arith.constant 0 : i32
    %c0_i32_0 = arith.constant 0 : i32
    %c0_i32_1 = arith.constant 0 : i32
    return %c0_i32, %c0_i32_0 : i32, i32
  }
  func.func @transform_3(%arg0: i32) -> (i32, i32, i32) {
    %c0_i32 = arith.constant 0 : i32
    %c0_i32_0 = arith.constant 0 : i32
    %c0_i32_1 = arith.constant 0 : i32
    %c0_i32_2 = arith.constant 0 : i32
    return %c0_i32, %c0_i32_0, %c0_i32_1 : i32, i32, i32
  }
  func.func @transform_4(%arg0: i32) -> (i32, i32) {
    %c0_i32 = arith.constant 0 : i32
    %c0_i32_0 = arith.constant 0 : i32
    %c0_i32_1 = arith.constant 0 : i32
    return %c0_i32, %c0_i32_0 : i32, i32
  }
  func.func @transform_5(%arg0: i32) -> (i32, i32, i32) {
    %c0_i32 = arith.constant 0 : i32
    %c0_i32_0 = arith.constant 0 : i32
    %c0_i32_1 = arith.constant 0 : i32
    %c0_i32_2 = arith.constant 0 : i32
    return %c0_i32, %c0_i32_0, %c0_i32_1 : i32, i32, i32
  }
  func.func @transform_6(%arg0: i32) -> (i32, i32) {
    %c0_i32 = arith.constant 0 : i32
    %c0_i32_0 = arith.constant 0 : i32
    %c0_i32_1 = arith.constant 0 : i32
    return %c0_i32, %c0_i32_0 : i32, i32
  }
  func.func @transform_7(%arg0: i32) -> (i32, i32, i32) {
    %c0_i32 = arith.constant 0 : i32
    %c0_i32_0 = arith.constant 0 : i32
    %c0_i32_1 = arith.constant 0 : i32
    %c0_i32_2 = arith.constant 0 : i32
    return %c0_i32, %c0_i32_0, %c0_i32_1 : i32, i32, i32
  }
  func.func @transform_8(%arg0: i32) -> (i32, i32) {
    %c0_i32 = arith.constant 0 : i32
    %c0_i32_0 = arith.constant 0 : i32
    %c0_i32_1 = arith.constant 0 : i32
    return %c0_i32, %c0_i32_0 : i32, i32
  }
  func.func @transform_9(%arg0: i32) -> (i32, i32, i32) {
    %c0_i32 = arith.constant 0 : i32
    %c0_i32_0 = arith.constant 0 : i32
    %c0_i32_1 = arith.constant 0 : i32
    %c0_i32_2 = arith.constant 0 : i32
    return %c0_i32, %c0_i32_0, %c0_i32_1 : i32, i32, i32
  }
  func.func @transform_10(%arg0: i32) -> (i32, i32) {
    %c0_i32 = arith.constant 0 : i32
    %c0_i32_0 = arith.constant 0 : i32
    %c0_i32_1 = arith.constant 0 : i32
    return %c0_i32, %c0_i32_0 : i32, i32
  }
  func.func @transform_11(%arg0: i32) -> (i32, i32, i32) {
    %c0_i32 = arith.constant 0 : i32
    %c0_i32_0 = arith.constant 0 : i32
    %c0_i32_1 = arith.constant 0 : i32
    return %arg0, %c0_i32, %c0_i32_0 : i32, i32, i32
  }
}

</mosaic_0001>

<llo_original>
// kernel: tpu_custom_call.1
$region0: #{tpu_custom_call.1}
  #allocation0 [shape = 'u32[]', space=smem, size = 0x4, offset = 0x4, fixed_abs, tag = 'smem constant byte address 0x4 - core index']
  #allocation1 [shape = 'u32[72,128]{1,0:T(1,128)}', space=vmem, size = 0x9000, scoped, tag = 'internal scratch']
  #allocation2 [shape = 'bf16[34,128]{1,0:T(8,128)(2,1)}', space=vmem, size = 0x2800, scoped, tag = 'scratch operand']
  #allocation3 [shape = 'bf16[34,128]{1,0:T(8,128)(2,1)}', space=vmem, size = 0x2800, scoped, tag = 'scratch operand']
  %s0 = inlined_call_operand.vmem [shape: f32[2,16,8], index: 0, kind: input, shape index: {}]
  %s1 = inlined_call_operand.hbm [shape: bf16[5,128,128], index: 1, kind: input, shape index: {}]
  %s2 = inlined_call_operand.vmem [shape: f32[1,128], index: 2, kind: input, shape index: {}]
  %s3 = inlined_call_operand.hbm [shape: bf16[5,128,128], index: 3, kind: input, shape index: {}]
  %s4 = inlined_call_operand.vmem [shape: f32[1,128], index: 4, kind: input, shape index: {}]
  %s5 = inlined_call_operand.hbm [shape: bf16[5,128,128], index: 5, kind: input, shape index: {}]
  %s6 = inlined_call_operand.vmem [shape: f32[1,128], index: 6, kind: input, shape index: {}]
  %s7 = inlined_call_operand.hbm [shape: bf16[5,128,128], index: 7, kind: input, shape index: {}]
  %s8 = inlined_call_operand.vmem [shape: f32[1,128], index: 8, kind: input, shape index: {}]
  %s9 = inlined_call_operand.hbm [shape: bf16[5,128,128], index: 9, kind: input, shape index: {}]
  %s10 = inlined_call_operand.vmem [shape: f32[1,128], index: 10, kind: input, shape index: {}]
  %s11 = inlined_call_operand.hbm [shape: f32[2,16,128], index: 11, kind: output, shape index: {}]
  %s12 = sld [smem:[#allocation0]]
  $region97: #{tpu_custom_call.1} parent=0
    _
  %s14 = ssub.s32 1, %s12
  %s15 = scalar_select 0, %s14, %s12
  $region1: #{tpu_custom_call.1} parent=0
    #allocation4 [shape = 'u8[163840]{0}', space=vmem, size = 0x28000, scoped, tag = 'input window, operand 1, single buffered']
    #allocation5 [shape = 's32[2]{0}', space=sflag, size = 0x8, scoped, tag = 'scoped memory for tpu_custom_call.1']
    #allocation6 [shape = 's32[2]{0}', space=sflag, size = 0x8, scoped, tag = 'scoped memory for tpu_custom_call.1']
    #allocation7 [shape = 'u8[163840]{0}', space=vmem, size = 0x28000, scoped, tag = 'input window, operand 3, single buffered']
    #allocation8 [shape = 's32[1]{0}', space=sflag, size = 0x4, scoped, tag = 'scoped memory for tpu_custom_call.1']
    #allocation9 [shape = 'u8[163840]{0}', space=vmem, size = 0x28000, scoped, tag = 'input window, operand 5, single buffered']
    #allocation10 [shape = 'u8[163840]{0}', space=vmem, size = 0x28000, scoped, tag = 'input window, operand 7, single buffered']
    #allocation11 [shape = 's32[1]{0}', space=sflag, size = 0x4, scoped, tag = 'scoped memory for tpu_custom_call.1']
    #allocation12 [shape = 'u8[163840]{0}', space=vmem, size = 0x28000, scoped, tag = 'input window, operand 9, single buffered']
    #allocation13 [shape = 'u8[16384]{0}', space=vmem, size = 0x4000, scoped, tag = 'output window, operand 0']
    %16 = vsyncpa [#allocation5], 0
    %17 = vsyncpa [#allocation8], 0
    %18 = vsyncpa [#allocation11], 0
    %19 = vsyncpa [#allocation6], 0
    %s20 = scalar_lea.sflag [#allocation6], 1
    %21 = vsyncpa %s20, 0
    loop: start=0, step=1, limit=4
    $region2: #{tpu_custom_call.1} parent=1 // loop_pre_header
      _
    $region3: #{tpu_custom_call.1} parent=1 // loop_header
      %s23 = sphi 0, %s27
      %p24 = scmp.ge.s32.totalorder %s23, 4
      %s33 = sphi 0, %s35
      %s36 = sphi 0, %s33
      %s37 = sphi 0, %s36
      %s53 = sphi 0, %s37
      %s57 = sphi 0, %s57
      %s59 = sphi 0, %s57
      %s60 = sphi 0, %s59
      %s74 = sphi 0, %s60
      %s78 = sphi 0, %s78
      %s80 = sphi 0, %s78
      %s81 = sphi 0, %s80
      %s95 = sphi 0, %s81
      %s99 = sphi 0, %s99
      %s101 = sphi 0, %s99
      %s102 = sphi 0, %s101
      %s116 = sphi 0, %s102
      %s120 = sphi 0, %s120
      %s122 = sphi 0, %s120
      %s123 = sphi 0, %s122
      %s137 = sphi 0, %s123
      %s141 = sphi 0, %s141
      %s143 = sphi 0, %s141
      %s144 = sphi 0, %s143
      %s158 = sphi 0, %s144
      %s162 = sphi 0, %s162
      %s164 = sphi 0, %s162
      %s165 = sphi 0, %s164
      %s179 = sphi 0, %s165
      %s183 = sphi 0, %s183
      %s185 = sphi 0, %s183
      %s186 = sphi 0, %s185
      %s200 = sphi 0, %s186
      %s204 = sphi 0, %s204
      %s206 = sphi 0, %s204
      %s207 = sphi 0, %s206
      %s221 = sphi 0, %s207
      %s225 = sphi 0, %s225
      %s227 = sphi 0, %s225
      %s228 = sphi 0, %s227
      %s242 = sphi 0, %s228
      %s246 = sphi 0, %s246
      %s248 = sphi 0, %s246
      %s249 = sphi 0, %s248
      %s263 = sphi 0, %s249
      %s269 = sphi 0, %s271
      %s272 = sphi 0, %s269
      %s273 = sphi 0, %s272
      %s289 = sphi 0, %s273
    $region4: #{tpu_custom_call.1} parent=1 // loop_header_branch
      %26 = sbr.rel (%p24) target = $region8
    $region5: #{tpu_custom_call.1} parent=1 // loop_body
      %s28 = ssub.s32 %s23, 1
      %s29 = ssub.s32 %s23, 2
      %s30 = sadd.s32 %s23, 1
      %s31 = ssub.s32 %s23, %s30
      %p32 = scmp.eq.s32.totalorder %s31, 0
      %s34 = sadd.s32 %s33, 1
      %s35 = scalar_select %p32, %s33, %s34
      %p38 = pneg %p32
      %p39 = scmp.eq.s32.totalorder %s23, 1
      %p40 = por %p38, %p39
      %p41 = scmp.ne.s32.totalorder %s33, %s36
      %p42 = scmp.eq.s32.totalorder %s23, 0
      %p43 = por %p41, %p42
      %p44 = scmp.ne.s32.totalorder %s33, %s36
      %p45 = scmp.eq.s32.totalorder %s28, 1
      %p46 = por %p44, %p45
      %p47 = scmp.ne.s32.totalorder %s36, %s37
      %p48 = scmp.eq.s32.totalorder %s28, 0
      %p49 = por %p47, %p48
      %p50 = scmp.ne.s32.totalorder %s36, %s37
      %p51 = scmp.eq.s32.totalorder %s29, 1
      %p52 = por %p50, %p51
      %p54 = scmp.ne.s32.totalorder %s37, %s53
      %p55 = scmp.eq.s32.totalorder %s29, 0
      %p56 = por %p54, %p55
      %s58 = sadd.s32 %s57, 1
      %p61 = scmp.eq.s32.totalorder %s23, 1
      %p62 = scmp.ne.s32.totalorder %s57, %s59
      %p63 = scmp.eq.s32.totalorder %s23, 0
      %p64 = por %p62, %p63
      %p65 = scmp.ne.s32.totalorder %s57, %s59
      %p66 = scmp.eq.s32.totalorder %s28, 1
      %p67 = por %p65, %p66
      %p68 = scmp.ne.s32.totalorder %s59, %s60
      %p69 = scmp.eq.s32.totalorder %s28, 0
      %p70 = por %p68, %p69
      %p71 = scmp.ne.s32.totalorder %s59, %s60
      %p72 = scmp.eq.s32.totalorder %s29, 1
      %p73 = por %p71, %p72
      %p75 = scmp.ne.s32.totalorder %s60, %s74
      %p76 = scmp.eq.s32.totalorder %s29, 0
      %p77 = por %p75, %p76
      %s79 = sadd.s32 %s78, 1
      %p82 = scmp.eq.s32.totalorder %s23, 1
      %p83 = scmp.ne.s32.totalorder %s78, %s80
      %p84 = scmp.eq.s32.totalorder %s23, 0
      %p85 = por %p83, %p84
      %p86 = scmp.ne.s32.totalorder %s78, %s80
      %p87 = scmp.eq.s32.totalorder %s28, 1
      %p88 = por %p86, %p87
      %p89 = scmp.ne.s32.totalorder %s80, %s81
      %p90 = scmp.eq.s32.totalorder %s28, 0
      %p91 = por %p89, %p90
      %p92 = scmp.ne.s32.totalorder %s80, %s81
      %p93 = scmp.eq.s32.totalorder %s29, 1
      %p94 = por %p92, %p93
      %p96 = scmp.ne.s32.totalorder %s81, %s95
      %p97 = scmp.eq.s32.totalorder %s29, 0
      %p98 = por %p96, %p97
      %s100 = sadd.s32 %s99, 1
      %p103 = scmp.eq.s32.totalorder %s23, 1
      %p104 = scmp.ne.s32.totalorder %s99, %s101
      %p105 = scmp.eq.s32.totalorder %s23, 0
      %p106 = por %p104, %p105
      %p107 = scmp.ne.s32.totalorder %s99, %s101
      %p108 = scmp.eq.s32.totalorder %s28, 1
      %p109 = por %p107, %p108
      %p110 = scmp.ne.s32.totalorder %s101, %s102
      %p111 = scmp.eq.s32.totalorder %s28, 0
      %p112 = por %p110, %p111
      %p113 = scmp.ne.s32.totalorder %s101, %s102
      %p114 = scmp.eq.s32.totalorder %s29, 1
      %p115 = por %p113, %p114
      %p117 = scmp.ne.s32.totalorder %s102, %s116
      %p118 = scmp.eq.s32.totalorder %s29, 0
      %p119 = por %p117, %p118
      %s121 = sadd.s32 %s120, 1
      %p124 = scmp.eq.s32.totalorder %s23, 1
      %p125 = scmp.ne.s32.totalorder %s120, %s122
      %p126 = scmp.eq.s32.totalorder %s23, 0
      %p127 = por %p125, %p126
      %p128 = scmp.ne.s32.totalorder %s120, %s122
      %p129 = scmp.eq.s32.totalorder %s28, 1
      %p130 = por %p128, %p129
      %p131 = scmp.ne.s32.totalorder %s122, %s123
      %p132 = scmp.eq.s32.totalorder %s28, 0
      %p133 = por %p131, %p132
      %p134 = scmp.ne.s32.totalorder %s122, %s123
      %p135 = scmp.eq.s32.totalorder %s29, 1
      %p136 = por %p134, %p135
      %p138 = scmp.ne.s32.totalorder %s123, %s137
      %p139 = scmp.eq.s32.totalorder %s29, 0
      %p140 = por %p138, %p139
      %s142 = sadd.s32 %s141, 1
      %p145 = scmp.eq.s32.totalorder %s23, 1
      %p146 = scmp.ne.s32.totalorder %s141, %s143
      %p147 = scmp.eq.s32.totalorder %s23, 0
      %p148 = por %p146, %p147
      %p149 = scmp.ne.s32.totalorder %s141, %s143
      %p150 = scmp.eq.s32.totalorder %s28, 1
      %p151 = por %p149, %p150
      %p152 = scmp.ne.s32.totalorder %s143, %s144
      %p153 = scmp.eq.s32.totalorder %s28, 0
      %p154 = por %p152, %p153
      %p155 = scmp.ne.s32.totalorder %s143, %s144
      %p156 = scmp.eq.s32.totalorder %s29, 1
      %p157 = por %p155, %p156
      %p159 = scmp.ne.s32.totalorder %s144, %s158
      %p160 = scmp.eq.s32.totalorder %s29, 0
      %p161 = por %p159, %p160
      %s163 = sadd.s32 %s162, 1
      %p166 = scmp.eq.s32.totalorder %s23, 1
      %p167 = scmp.ne.s32.totalorder %s162, %s164
      %p168 = scmp.eq.s32.totalorder %s23, 0
      %p169 = por %p167, %p168
      %p170 = scmp.ne.s32.totalorder %s162, %s164
      %p171 = scmp.eq.s32.totalorder %s28, 1
      %p172 = por %p170, %p171
      %p173 = scmp.ne.s32.totalorder %s164, %s165
      %p174 = scmp.eq.s32.totalorder %s28, 0
      %p175 = por %p173, %p174
      %p176 = scmp.ne.s32.totalorder %s164, %s165
      %p177 = scmp.eq.s32.totalorder %s29, 1
      %p178 = por %p176, %p177
      %p180 = scmp.ne.s32.totalorder %s165, %s179
      %p181 = scmp.eq.s32.totalorder %s29, 0
      %p182 = por %p180, %p181
      %s184 = sadd.s32 %s183, 1
      %p187 = scmp.eq.s32.totalorder %s23, 1
      %p188 = scmp.ne.s32.totalorder %s183, %s185
      %p189 = scmp.eq.s32.totalorder %s23, 0
      %p190 = por %p188, %p189
      %p191 = scmp.ne.s32.totalorder %s183, %s185
      %p192 = scmp.eq.s32.totalorder %s28, 1
      %p193 = por %p191, %p192
      %p194 = scmp.ne.s32.totalorder %s185, %s186
      %p195 = scmp.eq.s32.totalorder %s28, 0
      %p196 = por %p194, %p195
      %p197 = scmp.ne.s32.totalorder %s185, %s186
      %p198 = scmp.eq.s32.totalorder %s29, 1
      %p199 = por %p197, %p198
      %p201 = scmp.ne.s32.totalorder %s186, %s200
      %p202 = scmp.eq.s32.totalorder %s29, 0
      %p203 = por %p201, %p202
      %s205 = sadd.s32 %s204, 1
      %p208 = scmp.eq.s32.totalorder %s23, 1
      %p209 = scmp.ne.s32.totalorder %s204, %s206
      %p210 = scmp.eq.s32.totalorder %s23, 0
      %p211 = por %p209, %p210
      %p212 = scmp.ne.s32.totalorder %s204, %s206
      %p213 = scmp.eq.s32.totalorder %s28, 1
      %p214 = por %p212, %p213
      %p215 = scmp.ne.s32.totalorder %s206, %s207
      %p216 = scmp.eq.s32.totalorder %s28, 0
      %p217 = por %p215, %p216
      %p218 = scmp.ne.s32.totalorder %s206, %s207
      %p219 = scmp.eq.s32.totalorder %s29, 1
      %p220 = por %p218, %p219
      %p222 = scmp.ne.s32.totalorder %s207, %s221
      %p223 = scmp.eq.s32.totalorder %s29, 0
      %p224 = por %p222, %p223
      %s226 = sadd.s32 %s225, 1
      %p229 = scmp.eq.s32.totalorder %s23, 1
      %p230 = scmp.ne.s32.totalorder %s225, %s227
      %p231 = scmp.eq.s32.totalorder %s23, 0
      %p232 = por %p230, %p231
      %p233 = scmp.ne.s32.totalorder %s225, %s227
      %p234 = scmp.eq.s32.totalorder %s28, 1
      %p235 = por %p233, %p234
      %p236 = scmp.ne.s32.totalorder %s227, %s228
      %p237 = scmp.eq.s32.totalorder %s28, 0
      %p238 = por %p236, %p237
      %p239 = scmp.ne.s32.totalorder %s227, %s228
      %p240 = scmp.eq.s32.totalorder %s29, 1
      %p241 = por %p239, %p240
      %p243 = scmp.ne.s32.totalorder %s228, %s242
      %p244 = scmp.eq.s32.totalorder %s29, 0
      %p245 = por %p243, %p244
      %s247 = sadd.s32 %s246, 1
      %p250 = scmp.eq.s32.totalorder %s23, 1
      %p251 = scmp.ne.s32.totalorder %s246, %s248
      %p252 = scmp.eq.s32.totalorder %s23, 0
      %p253 = por %p251, %p252
      %p254 = scmp.ne.s32.totalorder %s246, %s248
      %p255 = scmp.eq.s32.totalorder %s28, 1
      %p256 = por %p254, %p255
      %p257 = scmp.ne.s32.totalorder %s248, %s249
      %p258 = scmp.eq.s32.totalorder %s28, 0
      %p259 = por %p257, %p258
      %p260 = scmp.ne.s32.totalorder %s248, %s249
      %p261 = scmp.eq.s32.totalorder %s29, 1
      %p262 = por %p260, %p261
      %p264 = scmp.ne.s32.totalorder %s249, %s263
      %p265 = scmp.eq.s32.totalorder %s29, 0
      %p266 = por %p264, %p265
      %s267 = ssub.s32 %s23, %s30
      %p268 = scmp.eq.s32.totalorder %s267, 0
      %s270 = sadd.s32 %s269, 1
      %s271 = scalar_select %p268, %s269, %s270
      %p274 = pneg %p268
      %p275 = scmp.eq.s32.totalorder %s23, 1
      %p276 = por %p274, %p275
      %p277 = scmp.ne.s32.totalorder %s269, %s272
      %p278 = scmp.eq.s32.totalorder %s23, 0
      %p279 = por %p277, %p278
      %p280 = scmp.ne.s32.totalorder %s269, %s272
      %p281 = scmp.eq.s32.totalorder %s28, 1
      %p282 = por %p280, %p281
      %p283 = scmp.ne.s32.totalorder %s272, %s273
      %p284 = scmp.eq.s32.totalorder %s28, 0
      %p285 = por %p283, %p284
      %p286 = scmp.ne.s32.totalorder %s272, %s273
      %p287 = scmp.eq.s32.totalorder %s29, 1
      %p288 = por %p286, %p287
      %p290 = scmp.ne.s32.totalorder %s273, %s289
      %p291 = scmp.eq.s32.totalorder %s29, 0
      %p292 = por %p290, %p291
      %p293 = scmp.le.s32.totalorder 1, %s23
      %p294 = scmp.lt.s32.totalorder %s23, 3
      %p295 = pnand %p293, %p294
      %p296 = pneg %p295
      // Predicated region
      $region9: #{tpu_custom_call.1} parent=5 // pred_check
        _
      $region10: #{tpu_custom_call.1} parent=5 // pred_check_branch
        %298 = sbr.rel (%p295) target = $region12
      $region11: #{tpu_custom_call.1} parent=5 // pred_region
        %s299 = ssub.s32 %s23, 1
        // Predicated region
        $region13: #{tpu_custom_call.1} parent=11 // pred_check
          %p300 = pneg %p70
        $region14: #{tpu_custom_call.1} parent=11 // pred_check_branch
          %302 = sbr.rel (%p300) target = $region16
        $region15: #{tpu_custom_call.1} parent=11 // pred_region
          %304 = vsyncadd [#allocation5], 0
          %s305 = sshll.u32 %s1, 4
          %s306 = int_to_ptr.hbm [resolvable:$true] %s305
          %s307 = sshll.u32 [#allocation4], 4
          %s308 = int_to_ptr.vmem [resolvable:$true] %s307
          %313 = dma.hbm_to_vmem [thread:$0]  %s306, 5120, %s308, [#allocation5], 64, 64, 4
        $region16: #{tpu_custom_call.1} parent=11 // pred_fallthru
          _
        // Predicated region
        $region17: #{tpu_custom_call.1} parent=11 // pred_check
          %p314 = pneg %p91
        $region18: #{tpu_custom_call.1} parent=11 // pred_check_branch
          %316 = sbr.rel (%p314) target = $region20
        $region19: #{tpu_custom_call.1} parent=11 // pred_region
          _
        $region20: #{tpu_custom_call.1} parent=11 // pred_fallthru
          _
        // Predicated region
        $region21: #{tpu_custom_call.1} parent=11 // pred_check
          %p317 = pneg %p112
        $region22: #{tpu_custom_call.1} parent=11 // pred_check_branch
          %319 = sbr.rel (%p317) target = $region24
        $region23: #{tpu_custom_call.1} parent=11 // pred_region
          %321 = vsyncadd [#allocation8], 0
          %s322 = sshll.u32 %s3, 4
          %s323 = int_to_ptr.hbm [resolvable:$true] %s322
          %s324 = sshll.u32 [#allocation7], 4
          %s325 = int_to_ptr.vmem [resolvable:$true] %s324
          %330 = dma.hbm_to_vmem [thread:$0]  %s323, 5120, %s325, [#allocation8], 64, 64, 4
        $region24: #{tpu_custom_call.1} parent=11 // pred_fallthru
          _
        // Predicated region
        $region25: #{tpu_custom_call.1} parent=11 // pred_check
          %p331 = pneg %p133
        $region26: #{tpu_custom_call.1} parent=11 // pred_check_branch
          %333 = sbr.rel (%p331) target = $region28
        $region27: #{tpu_custom_call.1} parent=11 // pred_region
          _
        $region28: #{tpu_custom_call.1} parent=11 // pred_fallthru
          _
        // Predicated region
        $region29: #{tpu_custom_call.1} parent=11 // pred_check
          %p334 = pneg %p154
        $region30: #{tpu_custom_call.1} parent=11 // pred_check_branch
          %336 = sbr.rel (%p334) target = $region32
        $region31: #{tpu_custom_call.1} parent=11 // pred_region
          %338 = vsyncadd [#allocation8], 0
          %s339 = sshll.u32 %s5, 4
          %s340 = int_to_ptr.hbm [resolvable:$true] %s339
          %s341 = sshll.u32 [#allocation9], 4
          %s342 = int_to_ptr.vmem [resolvable:$true] %s341
          %347 = dma.hbm_to_vmem [thread:$0]  %s340, 5120, %s342, [#allocation8], 64, 64, 4
        $region32: #{tpu_custom_call.1} parent=11 // pred_fallthru
          _
        // Predicated region
        $region33: #{tpu_custom_call.1} parent=11 // pred_check
          %p348 = pneg %p175
        $region34: #{tpu_custom_call.1} parent=11 // pred_check_branch
          %350 = sbr.rel (%p348) target = $region36
        $region35: #{tpu_custom_call.1} parent=11 // pred_region
          _
        $region36: #{tpu_custom_call.1} parent=11 // pred_fallthru
          _
        // Predicated region
        $region37: #{tpu_custom_call.1} parent=11 // pred_check
          %p351 = pneg %p196
        $region38: #{tpu_custom_call.1} parent=11 // pred_check_branch
          %353 = sbr.rel (%p351) target = $region40
        $region39: #{tpu_custom_call.1} parent=11 // pred_region
          %355 = vsyncadd [#allocation11], 0
          %s356 = sshll.u32 %s7, 4
          %s357 = int_to_ptr.hbm [resolvable:$true] %s356
          %s358 = sshll.u32 [#allocation10], 4
          %s359 = int_to_ptr.vmem [resolvable:$true] %s358
          %364 = dma.hbm_to_vmem [thread:$0]  %s357, 5120, %s359, [#allocation11], 64, 64, 4
        $region40: #{tpu_custom_call.1} parent=11 // pred_fallthru
          _
        // Predicated region
        $region41: #{tpu_custom_call.1} parent=11 // pred_check
          %p365 = pneg %p217
        $region42: #{tpu_custom_call.1} parent=11 // pred_check_branch
          %367 = sbr.rel (%p365) target = $region44
        $region43: #{tpu_custom_call.1} parent=11 // pred_region
          _
        $region44: #{tpu_custom_call.1} parent=11 // pred_fallthru
          _
        // Predicated region
        $region45: #{tpu_custom_call.1} parent=11 // pred_check
          %p368 = pneg %p238
        $region46: #{tpu_custom_call.1} parent=11 // pred_check_branch
          %370 = sbr.rel (%p368) target = $region48
        $region47: #{tpu_custom_call.1} parent=11 // pred_region
          %372 = vsyncadd [#allocation11], 0
          %s373 = sshll.u32 %s9, 4
          %s374 = int_to_ptr.hbm [resolvable:$true] %s373
          %s375 = sshll.u32 [#allocation12], 4
          %s376 = int_to_ptr.vmem [resolvable:$true] %s375
          %381 = dma.hbm_to_vmem [thread:$0]  %s374, 5120, %s376, [#allocation11], 64, 64, 4
        $region48: #{tpu_custom_call.1} parent=11 // pred_fallthru
          _
        // Predicated region
        $region49: #{tpu_custom_call.1} parent=11 // pred_check
          %p382 = pneg %p259
        $region50: #{tpu_custom_call.1} parent=11 // pred_check_branch
          %384 = sbr.rel (%p382) target = $region52
        $region51: #{tpu_custom_call.1} parent=11 // pred_region
          _
        $region52: #{tpu_custom_call.1} parent=11 // pred_fallthru
          _
      $region12: #{tpu_custom_call.1} parent=5 // pred_fallthru
        _
      %p385 = scmp.lt.s32.totalorder %s23, 2
      // Predicated region
      $region53: #{tpu_custom_call.1} parent=5 // pred_check
        %p386 = pneg %p385
      $region54: #{tpu_custom_call.1} parent=5 // pred_check_branch
        %388 = sbr.rel (%p386) target = $region56
      $region55: #{tpu_custom_call.1} parent=5 // pred_region
        // Predicated region
        $region57: #{tpu_custom_call.1} parent=55 // pred_check
          %p389 = pneg %p43
        $region58: #{tpu_custom_call.1} parent=55 // pred_check_branch
          %391 = sbr.rel (%p389) target = $region60
        $region59: #{tpu_custom_call.1} parent=55 // pred_region
          %p392 = scmp.lt.s32.totalorder %s23, 1
          %s393 = scalar_select %p392, %s23, 1
          %s394 = smul.addr %s393, 2
          %s395 = smul.addr %s394, 8
          %s396 = scalar_lea.vmem %s0, %s395
        $region60: #{tpu_custom_call.1} parent=55 // pred_fallthru
          _
      $region56: #{tpu_custom_call.1} parent=5 // pred_fallthru
        _
      %p397 = scmp.le.s32.totalorder 1, %s23
      %p398 = scmp.lt.s32.totalorder %s23, 3
      %p399 = pnand %p397, %p398
      %p400 = pneg %p399
      // Predicated region
      $region61: #{tpu_custom_call.1} parent=5 // pred_check
        _
      $region62: #{tpu_custom_call.1} parent=5 // pred_check_branch
        %402 = sbr.rel (%p399) target = $region64
      $region63: #{tpu_custom_call.1} parent=5 // pred_region
        %s403 = ssub.s32 %s23, 1
        // Predicated region
        $region65: #{tpu_custom_call.1} parent=63 // pred_check
          %p404 = pneg %p70
        $region66: #{tpu_custom_call.1} parent=63 // pred_check_branch
          %406 = sbr.rel (%p404) target = $region68
        $region67: #{tpu_custom_call.1} parent=63 // pred_region
          %408 = dma.done [#allocation5], 5120
        $region68: #{tpu_custom_call.1} parent=63 // pred_fallthru
          _
        // Predicated region
        $region69: #{tpu_custom_call.1} parent=63 // pred_check
          %p409 = pneg %p112
        $region70: #{tpu_custom_call.1} parent=63 // pred_check_branch
          %411 = sbr.rel (%p409) target = $region72
        $region71: #{tpu_custom_call.1} parent=63 // pred_region
          %413 = dma.done [#allocation8], 5120
        $region72: #{tpu_custom_call.1} parent=63 // pred_fallthru
          _
        // Predicated region
        $region73: #{tpu_custom_call.1} parent=63 // pred_check
          %p414 = pneg %p154
        $region74: #{tpu_custom_call.1} parent=63 // pred_check_branch
          %416 = sbr.rel (%p414) target = $region76
        $region75: #{tpu_custom_call.1} parent=63 // pred_region
          %418 = dma.done [#allocation8], 5120
        $region76: #{tpu_custom_call.1} parent=63 // pred_fallthru
          _
        // Predicated region
        $region77: #{tpu_custom_call.1} parent=63 // pred_check
          %p419 = pneg %p196
        $region78: #{tpu_custom_call.1} parent=63 // pred_check_branch
          %421 = sbr.rel (%p419) target = $region80
        $region79: #{tpu_custom_call.1} parent=63 // pred_region
          %423 = dma.done [#allocation11], 5120
        $region80: #{tpu_custom_call.1} parent=63 // pred_fallthru
          _
        // Predicated region
        $region81: #{tpu_custom_call.1} parent=63 // pred_check
          %p424 = pneg %p238
        $region82: #{tpu_custom_call.1} parent=63 // pred_check_branch
          %426 = sbr.rel (%p424) target = $region84
        $region83: #{tpu_custom_call.1} parent=63 // pred_region
          %428 = dma.done [#allocation11], 5120
        $region84: #{tpu_custom_call.1} parent=63 // pred_fallthru
          _
        %p429 = scmp.lt.s32.totalorder %s28, 1
        %s430 = scalar_select %p429, %s28, 1
        %s431 = smul.addr %s430, 2
        %s432 = smul.addr %s431, 8
        %s433 = scalar_lea.vmem %s0, %s432
        %p434 = pneg %p49
        %p435 = pneg %p46
        %p436 = pneg %p70
        %p437 = pneg %p67
        %p438 = pneg %p91
        %p439 = pneg %p88
        %p440 = pneg %p112
        %p441 = pneg %p109
        %p442 = pneg %p133
        %p443 = pneg %p130
        %p444 = pneg %p154
        %p445 = pneg %p151
        %p446 = pneg %p175
        %p447 = pneg %p172
        %p448 = pneg %p196
        %p449 = pneg %p193
        %p450 = pneg %p217
        %p451 = pneg %p214
        %p452 = pneg %p238
        %p453 = pneg %p235
        %p454 = pneg %p259
        %p455 = pneg %p256
        %p456 = pneg %p285
        %p457 = pneg %p282
        %s458 = sand.u32 %s272, 1
        %s459 = scalar_lea.sflag [#allocation6], %s458
        %s460 = sand.u32 %s272, 1
        %s461 = smul.addr %s460, 16
        %s462 = scalar_lea.vmem [#allocation13], %s461
        %p463 = scmp.lt.s32.totalorder %s28, 1
        %s464 = scalar_select %p463, %s28, 1
        %s465 = smul.addr %s464, 2
        %s466 = smul.addr %s465, 8
        %s467 = scalar_lea.vmem %s0, %s466
        %469 = vst [vmem:[#allocation2 + $0x4] sm:$0x8] 0
        %470 = vst [vmem:[#allocation2 + $0x10] sm:$0x1] 0
        %471 = vst [vmem:[#allocation3 + $0x4] sm:$0x8] 0
        %472 = vst [vmem:[#allocation3 + $0x10] sm:$0x1] 0
        %473 = vst [vmem:[#allocation2 + $0x8] sm:$0xf] 0
        %474 = vst [vmem:[#allocation2 + $0xc] sm:$0xf] 0
        %v475 = vld [vmem:[%s467] sm:$0xff]
        %v476 = vld [vmem:[%s467 + $0x8] sm:$0xff]
        %v477 = vpack.c.bf16 %v475, %v475
        %v478 = vpack.c.bf16 %v476, %v476
        %vm479 = vcmask 60416
        %480 = vst.msk [vmem:[#allocation2 + $0x8] sm:$0xf] %vm479, %v477
        %481 = vst.msk [vmem:[#allocation2 + $0xc] sm:$0xf] %vm479, %v478
        %v482 = vld [vmem:[#allocation2 + $0x4] sm:$0x8]
        %v483 = vld [vmem:[#allocation2 + $0x8] sm:$0xf]
        %v484 = vld [vmem:[#allocation2 + $0xc] sm:$0x7]
        %v485 = vld [vmem:[#allocation4] sm:$0xf]
        %v486 = vld [vmem:[#allocation4 + $0x4] sm:$0xf]
        %v487 = vld [vmem:[#allocation4 + $0x8] sm:$0xf]
        %v488 = vld [vmem:[#allocation4 + $0xc] sm:$0xf]
        %v489 = vld [vmem:[#allocation4 + $0x10] sm:$0xf]
        %v490 = vld [vmem:[#allocation4 + $0x14] sm:$0xf]
        %v491 = vld [vmem:[#allocation4 + $0x18] sm:$0xf]
        %v492 = vld [vmem:[#allocation4 + $0x1c] sm:$0xf]
        %v493 = vld [vmem:[#allocation4 + $0x20] sm:$0xf]
        %v494 = vld [vmem:[#allocation4 + $0x24] sm:$0xf]
        %v495 = vld [vmem:[#allocation4 + $0x28] sm:$0xf]
        %v496 = vld [vmem:[#allocation4 + $0x2c] sm:$0xf]
        %v497 = vld [vmem:[#allocation4 + $0x30] sm:$0xf]
        %v498 = vld [vmem:[#allocation4 + $0x34] sm:$0xf]
        %v499 = vld [vmem:[#allocation4 + $0x38] sm:$0xf]
        %v500 = vld [vmem:[#allocation4 + $0x3c] sm:$0xf]
        %v501 = vld [vmem:[#allocation2 + $0xc] sm:$0xf]
        %s502 = scalar_lea.vmem [#allocation4], 64
        %v503 = vld [vmem:[%s502] sm:$0xf]
        %v504 = vld [vmem:[%s502 + $0x4] sm:$0xf]
        %v505 = vld [vmem:[%s502 + $0x8] sm:$0xf]
        %v506 = vld [vmem:[%s502 + $0xc] sm:$0xf]
        %v507 = vld [vmem:[%s502 + $0x10] sm:$0xf]
        %v508 = vld [vmem:[%s502 + $0x14] sm:$0xf]
        %v509 = vld [vmem:[%s502 + $0x18] sm:$0xf]
        %v510 = vld [vmem:[%s502 + $0x1c] sm:$0xf]
        %v511 = vld [vmem:[%s502 + $0x20] sm:$0xf]
        %v512 = vld [vmem:[%s502 + $0x24] sm:$0xf]
        %v513 = vld [vmem:[%s502 + $0x28] sm:$0xf]
        %v514 = vld [vmem:[%s502 + $0x2c] sm:$0xf]
        %v515 = vld [vmem:[%s502 + $0x30] sm:$0xf]
        %v516 = vld [vmem:[%s502 + $0x34] sm:$0xf]
        %v517 = vld [vmem:[%s502 + $0x38] sm:$0xf]
        %v518 = vld [vmem:[%s502 + $0x3c] sm:$0xf]
        %v522 = vunpack.c.l.b16 %v482
        %v523 = vunpack.c.l.b16 %v483
        %v524 = vunpack.c.l.b16 %v501
        %v525 = vpack.c.b16 %v523, %v522
        %v526 = vpack.c.b16 %v524, %v524
        %vm527 = vsmask.f32 4352
        %v529 = vshrl.u32 %v525, 16
        %v531 = vrot.slane %v529, 3
        %v532 = vshll.u32 %v525, 16
        %v534 = vrot.slane %v532, 4
        %v535 = vor.u32 %v531, %v534
        %v537 = vshrl.u32 %v526, 16
        %v539 = vrot.slane %v537, 3
        %v540 = vshll.u32 %v526, 16
        %v542 = vrot.slane %v540, 4
        %v543 = vor.u32 %v539, %v542
        %v544 = vsel %vm527, %v535, %v543
        %v562 = vunpack.c.l.b16 %v503
        %v563 = vunpack.c.l.b16 %v504
        %v564 = vunpack.c.l.b16 %v505
        %v565 = vunpack.c.l.b16 %v506
        %v566 = vunpack.c.l.b16 %v507
        %v567 = vunpack.c.l.b16 %v508
        %v568 = vunpack.c.l.b16 %v509
        %v569 = vunpack.c.l.b16 %v510
        %v570 = vunpack.c.l.b16 %v511
        %v571 = vunpack.c.l.b16 %v512
        %v572 = vunpack.c.l.b16 %v513
        %v573 = vunpack.c.l.b16 %v514
        %v574 = vunpack.c.l.b16 %v515
        %v575 = vunpack.c.l.b16 %v516
        %v576 = vunpack.c.l.b16 %v517
        %v577 = vunpack.c.l.b16 %v518
        %v578 = vpack.c.b16 %v563, %v562
        %v579 = vpack.c.b16 %v565, %v564
        %v580 = vpack.c.b16 %v567, %v566
        %v581 = vpack.c.b16 %v569, %v568
        %v582 = vpack.c.b16 %v571, %v570
        %v583 = vpack.c.b16 %v573, %v572
        %v584 = vpack.c.b16 %v575, %v574
        %v585 = vpack.c.b16 %v577, %v576
        %594 = vmatpush.bf16.msra.mxu0 %v585
        %595 = vmatpush.bf16.msra.mxu0 %v584
        %596 = vmatpush.bf16.msra.mxu0 %v583
        %597 = vmatpush.bf16.msra.mxu0 %v582
        %598 = vmatpush.bf16.msra.mxu0 %v581
        %599 = vmatpush.bf16.msra.mxu0 %v580
        %600 = vmatpush.bf16.msra.mxu0 %v579
        %601 = vmatpush.bf16.msra.mxu0 %v578
        %602 = vmatmul.bf16.gmra.mxu0 %v544
        %v603 = vpop.f32.mrf.mxu0
        %v604 = vadd.f32 0.0, %v603
        %v605 = vpop.f32.mrf.mxu0
        %v606 = vadd.f32 0.0, %v605
        %607 = vdwg.mxu0
        %v609 = vunpack.c.l.b16 %v484
        %v610 = vpack.c.b16 %v609, %v609
        %vm611 = vcmask 1044480
        %v612 = vrot.slane %v525, 3
        %v613 = vrot.slane %v610, 3
        %v614 = vsel %vm611, %v612, %v613
        %v632 = vunpack.c.l.b16 %v485
        %v633 = vunpack.c.l.b16 %v486
        %v634 = vunpack.c.l.b16 %v487
        %v635 = vunpack.c.l.b16 %v488
        %v636 = vunpack.c.l.b16 %v489
        %v637 = vunpack.c.l.b16 %v490
        %v638 = vunpack.c.l.b16 %v491
        %v639 = vunpack.c.l.b16 %v492
        %v640 = vunpack.c.l.b16 %v493
        %v641 = vunpack.c.l.b16 %v494
        %v642 = vunpack.c.l.b16 %v495
        %v643 = vunpack.c.l.b16 %v496
        %v644 = vunpack.c.l.b16 %v497
        %v645 = vunpack.c.l.b16 %v498
        %v646 = vunpack.c.l.b16 %v499
        %v647 = vunpack.c.l.b16 %v500
        %v648 = vpack.c.b16 %v633, %v632
        %v649 = vpack.c.b16 %v635, %v634
        %v650 = vpack.c.b16 %v637, %v636
        %v651 = vpack.c.b16 %v639, %v638
        %v652 = vpack.c.b16 %v641, %v640
        %v653 = vpack.c.b16 %v643, %v642
        %v654 = vpack.c.b16 %v645, %v644
        %v655 = vpack.c.b16 %v647, %v646
        %664 = vmatpush.bf16.msra.mxu0 %v655
        %665 = vmatpush.bf16.msra.mxu0 %v654
        %666 = vmatpush.bf16.msra.mxu0 %v653
        %667 = vmatpush.bf16.msra.mxu0 %v652
        %668 = vmatpush.bf16.msra.mxu0 %v651
        %669 = vmatpush.bf16.msra.mxu0 %v650
        %670 = vmatpush.bf16.msra.mxu0 %v649
        %671 = vmatpush.bf16.msra.mxu0 %v648
        %672 = vmatmul.bf16.gmra.mxu0 %v614
        %v673 = vpop.f32.mrf.mxu0
        %v674 = vadd.f32 %v604, %v673
        %v675 = vpop.f32.mrf.mxu0
        %v676 = vadd.f32 %v606, %v675
        %677 = vdwg.mxu0
        %s678 = scalar_lea.vmem [#allocation4], 128
        %v679 = vld [vmem:[%s678] sm:$0xf]
        %v680 = vld [vmem:[%s678 + $0x4] sm:$0xf]
        %v681 = vld [vmem:[%s678 + $0x8] sm:$0xf]
        %v682 = vld [vmem:[%s678 + $0xc] sm:$0xf]
        %v683 = vld [vmem:[%s678 + $0x10] sm:$0xf]
        %v684 = vld [vmem:[%s678 + $0x14] sm:$0xf]
        %v685 = vld [vmem:[%s678 + $0x18] sm:$0xf]
        %v686 = vld [vmem:[%s678 + $0x1c] sm:$0xf]
        %v687 = vld [vmem:[%s678 + $0x20] sm:$0xf]
        %v688 = vld [vmem:[%s678 + $0x24] sm:$0xf]
        %v689 = vld [vmem:[%s678 + $0x28] sm:$0xf]
        %v690 = vld [vmem:[%s678 + $0x2c] sm:$0xf]
        %v691 = vld [vmem:[%s678 + $0x30] sm:$0xf]
        %v692 = vld [vmem:[%s678 + $0x34] sm:$0xf]
        %v693 = vld [vmem:[%s678 + $0x38] sm:$0xf]
        %v694 = vld [vmem:[%s678 + $0x3c] sm:$0xf]
        %v695 = vpack.c.b16 %v524, %v523
        %v713 = vunpack.c.l.b16 %v679
        %v714 = vunpack.c.l.b16 %v680
        %v715 = vunpack.c.l.b16 %v681
        %v716 = vunpack.c.l.b16 %v682
        %v717 = vunpack.c.l.b16 %v683
        %v718 = vunpack.c.l.b16 %v684
        %v719 = vunpack.c.l.b16 %v685
        %v720 = vunpack.c.l.b16 %v686
        %v721 = vunpack.c.l.b16 %v687
        %v722 = vunpack.c.l.b16 %v688
        %v723 = vunpack.c.l.b16 %v689
        %v724 = vunpack.c.l.b16 %v690
        %v725 = vunpack.c.l.b16 %v691
        %v726 = vunpack.c.l.b16 %v692
        %v727 = vunpack.c.l.b16 %v693
        %v728 = vunpack.c.l.b16 %v694
        %v729 = vpack.c.b16 %v714, %v713
        %v730 = vpack.c.b16 %v716, %v715
        %v731 = vpack.c.b16 %v718, %v717
        %v732 = vpack.c.b16 %v720, %v719
        %v733 = vpack.c.b16 %v722, %v721
        %v734 = vpack.c.b16 %v724, %v723
        %v735 = vpack.c.b16 %v726, %v725
        %v736 = vpack.c.b16 %v728, %v727
        %745 = vmatpush.bf16.msra.mxu0 %v736
        %746 = vmatpush.bf16.msra.mxu0 %v735
        %747 = vmatpush.bf16.msra.mxu0 %v734
        %748 = vmatpush.bf16.msra.mxu0 %v733
        %749 = vmatpush.bf16.msra.mxu0 %v732
        %750 = vmatpush.bf16.msra.mxu0 %v731
        %751 = vmatpush.bf16.msra.mxu0 %v730
        %752 = vmatpush.bf16.msra.mxu0 %v729
        %753 = vmatmul.bf16.gmra.mxu0 %v695
        %v754 = vpop.f32.mrf.mxu0
        %v755 = vadd.f32 0.0, %v754
        %v756 = vpop.f32.mrf.mxu0
        %v757 = vadd.f32 0.0, %v756
        %758 = vdwg.mxu0
        %v759 = vadd.f32 %v674, %v755
        %v760 = vadd.f32 %v676, %v757
        %v761 = vld [vmem:[#allocation2 + $0x8] sm:$0xf]
        %v762 = vld [vmem:[#allocation2 + $0xc] sm:$0xf]
        %v763 = vld [vmem:[#allocation2 + $0x10] sm:$0x1]
        %s764 = scalar_lea.vmem [#allocation4], 192
        %v765 = vld [vmem:[%s764] sm:$0xf]
        %v766 = vld [vmem:[%s764 + $0x4] sm:$0xf]
        %v767 = vld [vmem:[%s764 + $0x8] sm:$0xf]
        %v768 = vld [vmem:[%s764 + $0xc] sm:$0xf]
        %v769 = vld [vmem:[%s764 + $0x10] sm:$0xf]
        %v770 = vld [vmem:[%s764 + $0x14] sm:$0xf]
        %v771 = vld [vmem:[%s764 + $0x18] sm:$0xf]
        %v772 = vld [vmem:[%s764 + $0x1c] sm:$0xf]
        %v773 = vld [vmem:[%s764 + $0x20] sm:$0xf]
        %v774 = vld [vmem:[%s764 + $0x24] sm:$0xf]
        %v775 = vld [vmem:[%s764 + $0x28] sm:$0xf]
        %v776 = vld [vmem:[%s764 + $0x2c] sm:$0xf]
        %v777 = vld [vmem:[%s764 + $0x30] sm:$0xf]
        %v778 = vld [vmem:[%s764 + $0x34] sm:$0xf]
        %v779 = vld [vmem:[%s764 + $0x38] sm:$0xf]
        %v780 = vld [vmem:[%s764 + $0x3c] sm:$0xf]
        %v784 = vunpack.c.l.b16 %v761
        %v785 = vunpack.c.l.b16 %v762
        %v786 = vunpack.c.l.b16 %v763
        %v787 = vpack.c.b16 %v785, %v784
        %v788 = vpack.c.b16 %v786, %v786
        %vm789 = vsmask.f32 7424
        %v791 = vshrl.u32 %v787, 16
        %v793 = vshll.u32 %v787, 16
        %v795 = vrot.slane %v793, 1
        %v796 = vor.u32 %v791, %v795
        %v798 = vshll.u32 %v788, 16
        %v800 = vrot.slane %v798, 1
        %v801 = vsel %vm789, %v796, %v800
        %v819 = vunpack.c.l.b16 %v765
        %v820 = vunpack.c.l.b16 %v766
        %v821 = vunpack.c.l.b16 %v767
        %v822 = vunpack.c.l.b16 %v768
        %v823 = vunpack.c.l.b16 %v769
        %v824 = vunpack.c.l.b16 %v770
        %v825 = vunpack.c.l.b16 %v771
        %v826 = vunpack.c.l.b16 %v772
        %v827 = vunpack.c.l.b16 %v773
        %v828 = vunpack.c.l.b16 %v774
        %v829 = vunpack.c.l.b16 %v775
        %v830 = vunpack.c.l.b16 %v776
        %v831 = vunpack.c.l.b16 %v777
        %v832 = vunpack.c.l.b16 %v778
        %v833 = vunpack.c.l.b16 %v779
        %v834 = vunpack.c.l.b16 %v780
        %v835 = vpack.c.b16 %v820, %v819
        %v836 = vpack.c.b16 %v822, %v821
        %v837 = vpack.c.b16 %v824, %v823
        %v838 = vpack.c.b16 %v826, %v825
        %v839 = vpack.c.b16 %v828, %v827
        %v840 = vpack.c.b16 %v830, %v829
        %v841 = vpack.c.b16 %v832, %v831
        %v842 = vpack.c.b16 %v834, %v833
        %851 = vmatpush.bf16.msra.mxu0 %v842
        %852 = vmatpush.bf16.msra.mxu0 %v841
        %853 = vmatpush.bf16.msra.mxu0 %v840
        %854 = vmatpush.bf16.msra.mxu0 %v839
        %855 = vmatpush.bf16.msra.mxu0 %v838
        %856 = vmatpush.bf16.msra.mxu0 %v837
        %857 = vmatpush.bf16.msra.mxu0 %v836
        %858 = vmatpush.bf16.msra.mxu0 %v835
        %859 = vmatmul.bf16.gmra.mxu0 %v801
        %v860 = vpop.f32.mrf.mxu0
        %v861 = vadd.f32 0.0, %v860
        %v862 = vpop.f32.mrf.mxu0
        %v863 = vadd.f32 0.0, %v862
        %864 = vdwg.mxu0
        %v865 = vadd.f32 %v759, %v861
        %v866 = vadd.f32 %v760, %v863
        %v867 = vld [vmem:[#allocation2 + $0x8] sm:$0xe]
        %s868 = scalar_lea.vmem [#allocation4], 256
        %v869 = vld [vmem:[%s868] sm:$0xf]
        %v870 = vld [vmem:[%s868 + $0x4] sm:$0xf]
        %v871 = vld [vmem:[%s868 + $0x8] sm:$0xf]
        %v872 = vld [vmem:[%s868 + $0xc] sm:$0xf]
        %v873 = vld [vmem:[%s868 + $0x10] sm:$0xf]
        %v874 = vld [vmem:[%s868 + $0x14] sm:$0xf]
        %v875 = vld [vmem:[%s868 + $0x18] sm:$0xf]
        %v876 = vld [vmem:[%s868 + $0x1c] sm:$0xf]
        %v877 = vld [vmem:[%s868 + $0x20] sm:$0xf]
        %v878 = vld [vmem:[%s868 + $0x24] sm:$0xf]
        %v879 = vld [vmem:[%s868 + $0x28] sm:$0xf]
        %v880 = vld [vmem:[%s868 + $0x2c] sm:$0xf]
        %v881 = vld [vmem:[%s868 + $0x30] sm:$0xf]
        %v882 = vld [vmem:[%s868 + $0x34] sm:$0xf]
        %v883 = vld [vmem:[%s868 + $0x38] sm:$0xf]
        %v884 = vld [vmem:[%s868 + $0x3c] sm:$0xf]
        %v886 = vunpack.c.l.b16 %v867
        %v887 = vpack.c.b16 %v785, %v886
        %vm888 = vcmask 1046528
        %v889 = vrot.slane %v887, 1
        %v890 = vrot.slane %v788, 1
        %v891 = vsel %vm888, %v889, %v890
        %v909 = vunpack.c.l.b16 %v869
        %v910 = vunpack.c.l.b16 %v870
        %v911 = vunpack.c.l.b16 %v871
        %v912 = vunpack.c.l.b16 %v872
        %v913 = vunpack.c.l.b16 %v873
        %v914 = vunpack.c.l.b16 %v874
        %v915 = vunpack.c.l.b16 %v875
        %v916 = vunpack.c.l.b16 %v876
        %v917 = vunpack.c.l.b16 %v877
        %v918 = vunpack.c.l.b16 %v878
        %v919 = vunpack.c.l.b16 %v879
        %v920 = vunpack.c.l.b16 %v880
        %v921 = vunpack.c.l.b16 %v881
        %v922 = vunpack.c.l.b16 %v882
        %v923 = vunpack.c.l.b16 %v883
        %v924 = vunpack.c.l.b16 %v884
        %v925 = vpack.c.b16 %v910, %v909
        %v926 = vpack.c.b16 %v912, %v911
        %v927 = vpack.c.b16 %v914, %v913
        %v928 = vpack.c.b16 %v916, %v915
        %v929 = vpack.c.b16 %v918, %v917
        %v930 = vpack.c.b16 %v920, %v919
        %v931 = vpack.c.b16 %v922, %v921
        %v932 = vpack.c.b16 %v924, %v923
        %941 = vmatpush.bf16.msra.mxu0 %v932
        %942 = vmatpush.bf16.msra.mxu0 %v931
        %943 = vmatpush.bf16.msra.mxu0 %v930
        %944 = vmatpush.bf16.msra.mxu0 %v929
        %945 = vmatpush.bf16.msra.mxu0 %v928
        %946 = vmatpush.bf16.msra.mxu0 %v927
        %947 = vmatpush.bf16.msra.mxu0 %v926
        %948 = vmatpush.bf16.msra.mxu0 %v925
        %949 = vmatmul.bf16.gmra.mxu0 %v891
        %v950 = vpop.f32.mrf.mxu0
        %v951 = vadd.f32 0.0, %v950
        %v952 = vpop.f32.mrf.mxu0
        %v953 = vadd.f32 0.0, %v952
        %954 = vdwg.mxu0
        %v955 = vadd.f32 %v865, %v951
        %v956 = vadd.f32 %v866, %v953
        %v957 = vld [vmem:[%s2] sm:$0x1]
        %v959 = vperm.slane %v957, 0
        %v961 = vadd.f32 %v955, %v959
        %v962 = vadd.f32 %v956, %v959
        %v963 = vtanh.pop %v961
        %v964 = vtanh.pop %v962
        %v965 = vpack.c.bf16 %v963, %v963
        %v966 = vpack.c.bf16 %v964, %v964
        %967 = vst [vmem:[#allocation3 + $0x8] sm:$0xf] %v965
        %968 = vst [vmem:[#allocation3 + $0xc] sm:$0xf] %v966
        %v969 = vld [vmem:[#allocation3 + $0x4] sm:$0x8]
        %v970 = vld [vmem:[#allocation3 + $0x8] sm:$0xf]
        %v971 = vld [vmem:[#allocation3 + $0xc] sm:$0x7]
        %v972 = vld [vmem:[#allocation7] sm:$0xf]
        %v973 = vld [vmem:[#allocation7 + $0x4] sm:$0xf]
        %v974 = vld [vmem:[#allocation7 + $0x8] sm:$0xf]
        %v975 = vld [vmem:[#allocation7 + $0xc] sm:$0xf]
        %v976 = vld [vmem:[#allocation7 + $0x10] sm:$0xf]
        %v977 = vld [vmem:[#allocation7 + $0x14] sm:$0xf]
        %v978 = vld [vmem:[#allocation7 + $0x18] sm:$0xf]
        %v979 = vld [vmem:[#allocation7 + $0x1c] sm:$0xf]
        %v980 = vld [vmem:[#allocation7 + $0x20] sm:$0xf]
        %v981 = vld [vmem:[#allocation7 + $0x24] sm:$0xf]
        %v982 = vld [vmem:[#allocation7 + $0x28] sm:$0xf]
        %v983 = vld [vmem:[#allocation7 + $0x2c] sm:$0xf]
        %v984 = vld [vmem:[#allocation7 + $0x30] sm:$0xf]
        %v985 = vld [vmem:[#allocation7 + $0x34] sm:$0xf]
        %v986 = vld [vmem:[#allocation7 + $0x38] sm:$0xf]
        %v987 = vld [vmem:[#allocation7 + $0x3c] sm:$0xf]
        %v988 = vld [vmem:[#allocation3 + $0xc] sm:$0xf]
        %s989 = scalar_lea.vmem [#allocation7], 64
        %v990 = vld [vmem:[%s989] sm:$0xf]
        %v991 = vld [vmem:[%s989 + $0x4] sm:$0xf]
        %v992 = vld [vmem:[%s989 + $0x8] sm:$0xf]
        %v993 = vld [vmem:[%s989 + $0xc] sm:$0xf]
        %v994 = vld [vmem:[%s989 + $0x10] sm:$0xf]
        %v995 = vld [vmem:[%s989 + $0x14] sm:$0xf]
        %v996 = vld [vmem:[%s989 + $0x18] sm:$0xf]
        %v997 = vld [vmem:[%s989 + $0x1c] sm:$0xf]
        %v998 = vld [vmem:[%s989 + $0x20] sm:$0xf]
        %v999 = vld [vmem:[%s989 + $0x24] sm:$0xf]
        %v1000 = vld [vmem:[%s989 + $0x28] sm:$0xf]
        %v1001 = vld [vmem:[%s989 + $0x2c] sm:$0xf]
        %v1002 = vld [vmem:[%s989 + $0x30] sm:$0xf]
        %v1003 = vld [vmem:[%s989 + $0x34] sm:$0xf]
        %v1004 = vld [vmem:[%s989 + $0x38] sm:$0xf]
        %v1005 = vld [vmem:[%s989 + $0x3c] sm:$0xf]
        %v1009 = vunpack.c.l.b16 %v969
        %v1010 = vunpack.c.l.b16 %v970
        %v1011 = vunpack.c.l.b16 %v988
        %v1012 = vpack.c.b16 %v1010, %v1009
        %v1013 = vpack.c.b16 %v1011, %v1011
        %v1015 = vshrl.u32 %v1012, 16
        %v1017 = vrot.slane %v1015, 3
        %v1018 = vshll.u32 %v1012, 16
        %v1020 = vrot.slane %v1018, 4
        %v1021 = vor.u32 %v1017, %v1020
        %v1023 = vshrl.u32 %v1013, 16
        %v1025 = vrot.slane %v1023, 3
        %v1026 = vshll.u32 %v1013, 16
        %v1028 = vrot.slane %v1026, 4
        %v1029 = vor.u32 %v1025, %v1028
        %v1030 = vsel %vm527, %v1021, %v1029
        %v1048 = vunpack.c.l.b16 %v990
        %v1049 = vunpack.c.l.b16 %v991
        %v1050 = vunpack.c.l.b16 %v992
        %v1051 = vunpack.c.l.b16 %v993
        %v1052 = vunpack.c.l.b16 %v994
        %v1053 = vunpack.c.l.b16 %v995
        %v1054 = vunpack.c.l.b16 %v996
        %v1055 = vunpack.c.l.b16 %v997
        %v1056 = vunpack.c.l.b16 %v998
        %v1057 = vunpack.c.l.b16 %v999
        %v1058 = vunpack.c.l.b16 %v1000
        %v1059 = vunpack.c.l.b16 %v1001
        %v1060 = vunpack.c.l.b16 %v1002
        %v1061 = vunpack.c.l.b16 %v1003
        %v1062 = vunpack.c.l.b16 %v1004
        %v1063 = vunpack.c.l.b16 %v1005
        %v1064 = vpack.c.b16 %v1049, %v1048
        %v1065 = vpack.c.b16 %v1051, %v1050
        %v1066 = vpack.c.b16 %v1053, %v1052
        %v1067 = vpack.c.b16 %v1055, %v1054
        %v1068 = vpack.c.b16 %v1057, %v1056
        %v1069 = vpack.c.b16 %v1059, %v1058
        %v1070 = vpack.c.b16 %v1061, %v1060
        %v1071 = vpack.c.b16 %v1063, %v1062
        %1080 = vmatpush.bf16.msra.mxu0 %v1071
        %1081 = vmatpush.bf16.msra.mxu0 %v1070
        %1082 = vmatpush.bf16.msra.mxu0 %v1069
        %1083 = vmatpush.bf16.msra.mxu0 %v1068
        %1084 = vmatpush.bf16.msra.mxu0 %v1067
        %1085 = vmatpush.bf16.msra.mxu0 %v1066
        %1086 = vmatpush.bf16.msra.mxu0 %v1065
        %1087 = vmatpush.bf16.msra.mxu0 %v1064
        %1088 = vmatmul.bf16.gmra.mxu0 %v1030
        %v1089 = vpop.f32.mrf.mxu0
        %v1090 = vadd.f32 0.0, %v1089
        %v1091 = vpop.f32.mrf.mxu0
        %v1092 = vadd.f32 0.0, %v1091
        %1093 = vdwg.mxu0
        %v1095 = vunpack.c.l.b16 %v971
        %v1096 = vpack.c.b16 %v1095, %v1095
        %v1097 = vrot.slane %v1012, 3
        %v1098 = vrot.slane %v1096, 3
        %v1099 = vsel %vm611, %v1097, %v1098
        %v1117 = vunpack.c.l.b16 %v972
        %v1118 = vunpack.c.l.b16 %v973
        %v1119 = vunpack.c.l.b16 %v974
        %v1120 = vunpack.c.l.b16 %v975
        %v1121 = vunpack.c.l.b16 %v976
        %v1122 = vunpack.c.l.b16 %v977
        %v1123 = vunpack.c.l.b16 %v978
        %v1124 = vunpack.c.l.b16 %v979
        %v1125 = vunpack.c.l.b16 %v980
        %v1126 = vunpack.c.l.b16 %v981
        %v1127 = vunpack.c.l.b16 %v982
        %v1128 = vunpack.c.l.b16 %v983
        %v1129 = vunpack.c.l.b16 %v984
        %v1130 = vunpack.c.l.b16 %v985
        %v1131 = vunpack.c.l.b16 %v986
        %v1132 = vunpack.c.l.b16 %v987
        %v1133 = vpack.c.b16 %v1118, %v1117
        %v1134 = vpack.c.b16 %v1120, %v1119
        %v1135 = vpack.c.b16 %v1122, %v1121
        %v1136 = vpack.c.b16 %v1124, %v1123
        %v1137 = vpack.c.b16 %v1126, %v1125
        %v1138 = vpack.c.b16 %v1128, %v1127
        %v1139 = vpack.c.b16 %v1130, %v1129
        %v1140 = vpack.c.b16 %v1132, %v1131
        %1149 = vmatpush.bf16.msra.mxu0 %v1140
        %1150 = vmatpush.bf16.msra.mxu0 %v1139
        %1151 = vmatpush.bf16.msra.mxu0 %v1138
        %1152 = vmatpush.bf16.msra.mxu0 %v1137
        %1153 = vmatpush.bf16.msra.mxu0 %v1136
        %1154 = vmatpush.bf16.msra.mxu0 %v1135
        %1155 = vmatpush.bf16.msra.mxu0 %v1134
        %1156 = vmatpush.bf16.msra.mxu0 %v1133
        %1157 = vmatmul.bf16.gmra.mxu0 %v1099
        %v1158 = vpop.f32.mrf.mxu0
        %v1159 = vadd.f32 %v1090, %v1158
        %v1160 = vpop.f32.mrf.mxu0
        %v1161 = vadd.f32 %v1092, %v1160
        %1162 = vdwg.mxu0
        %s1163 = scalar_lea.vmem [#allocation7], 128
        %v1164 = vld [vmem:[%s1163] sm:$0xf]
        %v1165 = vld [vmem:[%s1163 + $0x4] sm:$0xf]
        %v1166 = vld [vmem:[%s1163 + $0x8] sm:$0xf]
        %v1167 = vld [vmem:[%s1163 + $0xc] sm:$0xf]
        %v1168 = vld [vmem:[%s1163 + $0x10] sm:$0xf]
        %v1169 = vld [vmem:[%s1163 + $0x14] sm:$0xf]
        %v1170 = vld [vmem:[%s1163 + $0x18] sm:$0xf]
        %v1171 = vld [vmem:[%s1163 + $0x1c] sm:$0xf]
        %v1172 = vld [vmem:[%s1163 + $0x20] sm:$0xf]
        %v1173 = vld [vmem:[%s1163 + $0x24] sm:$0xf]
        %v1174 = vld [vmem:[%s1163 + $0x28] sm:$0xf]
        %v1175 = vld [vmem:[%s1163 + $0x2c] sm:$0xf]
        %v1176 = vld [vmem:[%s1163 + $0x30] sm:$0xf]
        %v1177 = vld [vmem:[%s1163 + $0x34] sm:$0xf]
        %v1178 = vld [vmem:[%s1163 + $0x38] sm:$0xf]
        %v1179 = vld [vmem:[%s1163 + $0x3c] sm:$0xf]
        %v1180 = vpack.c.b16 %v1011, %v1010
        %v1198 = vunpack.c.l.b16 %v1164
        %v1199 = vunpack.c.l.b16 %v1165
        %v1200 = vunpack.c.l.b16 %v1166
        %v1201 = vunpack.c.l.b16 %v1167
        %v1202 = vunpack.c.l.b16 %v1168
        %v1203 = vunpack.c.l.b16 %v1169
        %v1204 = vunpack.c.l.b16 %v1170
        %v1205 = vunpack.c.l.b16 %v1171
        %v1206 = vunpack.c.l.b16 %v1172
        %v1207 = vunpack.c.l.b16 %v1173
        %v1208 = vunpack.c.l.b16 %v1174
        %v1209 = vunpack.c.l.b16 %v1175
        %v1210 = vunpack.c.l.b16 %v1176
        %v1211 = vunpack.c.l.b16 %v1177
        %v1212 = vunpack.c.l.b16 %v1178
        %v1213 = vunpack.c.l.b16 %v1179
        %v1214 = vpack.c.b16 %v1199, %v1198
        %v1215 = vpack.c.b16 %v1201, %v1200
        %v1216 = vpack.c.b16 %v1203, %v1202
        %v1217 = vpack.c.b16 %v1205, %v1204
        %v1218 = vpack.c.b16 %v1207, %v1206
        %v1219 = vpack.c.b16 %v1209, %v1208
        %v1220 = vpack.c.b16 %v1211, %v1210
        %v1221 = vpack.c.b16 %v1213, %v1212
        %1230 = vmatpush.bf16.msra.mxu0 %v1221
        %1231 = vmatpush.bf16.msra.mxu0 %v1220
        %1232 = vmatpush.bf16.msra.mxu0 %v1219
        %1233 = vmatpush.bf16.msra.mxu0 %v1218
        %1234 = vmatpush.bf16.msra.mxu0 %v1217
        %1235 = vmatpush.bf16.msra.mxu0 %v1216
        %1236 = vmatpush.bf16.msra.mxu0 %v1215
        %1237 = vmatpush.bf16.msra.mxu0 %v1214
        %1238 = vmatmul.bf16.gmra.mxu0 %v1180
        %v1239 = vpop.f32.mrf.mxu0
        %v1240 = vadd.f32 0.0, %v1239
        %v1241 = vpop.f32.mrf.mxu0
        %v1242 = vadd.f32 0.0, %v1241
        %1243 = vdwg.mxu0
        %v1244 = vadd.f32 %v1159, %v1240
        %v1245 = vadd.f32 %v1161, %v1242
        %v1246 = vld [vmem:[#allocation3 + $0x8] sm:$0xf]
        %v1247 = vld [vmem:[#allocation3 + $0xc] sm:$0xf]
        %v1248 = vld [vmem:[#allocation3 + $0x10] sm:$0x1]
        %s1249 = scalar_lea.vmem [#allocation7], 192
        %v1250 = vld [vmem:[%s1249] sm:$0xf]
        %v1251 = vld [vmem:[%s1249 + $0x4] sm:$0xf]
        %v1252 = vld [vmem:[%s1249 + $0x8] sm:$0xf]
        %v1253 = vld [vmem:[%s1249 + $0xc] sm:$0xf]
        %v1254 = vld [vmem:[%s1249 + $0x10] sm:$0xf]
        %v1255 = vld [vmem:[%s1249 + $0x14] sm:$0xf]
        %v1256 = vld [vmem:[%s1249 + $0x18] sm:$0xf]
        %v1257 = vld [vmem:[%s1249 + $0x1c] sm:$0xf]
        %v1258 = vld [vmem:[%s1249 + $0x20] sm:$0xf]
        %v1259 = vld [vmem:[%s1249 + $0x24] sm:$0xf]
        %v1260 = vld [vmem:[%s1249 + $0x28] sm:$0xf]
        %v1261 = vld [vmem:[%s1249 + $0x2c] sm:$0xf]
        %v1262 = vld [vmem:[%s1249 + $0x30] sm:$0xf]
        %v1263 = vld [vmem:[%s1249 + $0x34] sm:$0xf]
        %v1264 = vld [vmem:[%s1249 + $0x38] sm:$0xf]
        %v1265 = vld [vmem:[%s1249 + $0x3c] sm:$0xf]
        %v1269 = vunpack.c.l.b16 %v1246
        %v1270 = vunpack.c.l.b16 %v1247
        %v1271 = vunpack.c.l.b16 %v1248
        %v1272 = vpack.c.b16 %v1270, %v1269
        %v1273 = vpack.c.b16 %v1271, %v1271
        %v1275 = vshrl.u32 %v1272, 16
        %v1277 = vshll.u32 %v1272, 16
        %v1279 = vrot.slane %v1277, 1
        %v1280 = vor.u32 %v1275, %v1279
        %v1282 = vshll.u32 %v1273, 16
        %v1284 = vrot.slane %v1282, 1
        %v1285 = vsel %vm789, %v1280, %v1284
        %v1303 = vunpack.c.l.b16 %v1250
        %v1304 = vunpack.c.l.b16 %v1251
        %v1305 = vunpack.c.l.b16 %v1252
        %v1306 = vunpack.c.l.b16 %v1253
        %v1307 = vunpack.c.l.b16 %v1254
        %v1308 = vunpack.c.l.b16 %v1255
        %v1309 = vunpack.c.l.b16 %v1256
        %v1310 = vunpack.c.l.b16 %v1257
        %v1311 = vunpack.c.l.b16 %v1258
        %v1312 = vunpack.c.l.b16 %v1259
        %v1313 = vunpack.c.l.b16 %v1260
        %v1314 = vunpack.c.l.b16 %v1261
        %v1315 = vunpack.c.l.b16 %v1262
        %v1316 = vunpack.c.l.b16 %v1263
        %v1317 = vunpack.c.l.b16 %v1264
        %v1318 = vunpack.c.l.b16 %v1265
        %v1319 = vpack.c.b16 %v1304, %v1303
        %v1320 = vpack.c.b16 %v1306, %v1305
        %v1321 = vpack.c.b16 %v1308, %v1307
        %v1322 = vpack.c.b16 %v1310, %v1309
        %v1323 = vpack.c.b16 %v1312, %v1311
        %v1324 = vpack.c.b16 %v1314, %v1313
        %v1325 = vpack.c.b16 %v1316, %v1315
        %v1326 = vpack.c.b16 %v1318, %v1317
        %1335 = vmatpush.bf16.msra.mxu0 %v1326
        %1336 = vmatpush.bf16.msra.mxu0 %v1325
        %1337 = vmatpush.bf16.msra.mxu0 %v1324
        %1338 = vmatpush.bf16.msra.mxu0 %v1323
        %1339 = vmatpush.bf16.msra.mxu0 %v1322
        %1340 = vmatpush.bf16.msra.mxu0 %v1321
        %1341 = vmatpush.bf16.msra.mxu0 %v1320
        %1342 = vmatpush.bf16.msra.mxu0 %v1319
        %1343 = vmatmul.bf16.gmra.mxu0 %v1285
        %v1344 = vpop.f32.mrf.mxu0
        %v1345 = vadd.f32 0.0, %v1344
        %v1346 = vpop.f32.mrf.mxu0
        %v1347 = vadd.f32 0.0, %v1346
        %1348 = vdwg.mxu0
        %v1349 = vadd.f32 %v1244, %v1345
        %v1350 = vadd.f32 %v1245, %v1347
        %v1351 = vld [vmem:[#allocation3 + $0x8] sm:$0xe]
        %s1352 = scalar_lea.vmem [#allocation7], 256
        %v1353 = vld [vmem:[%s1352] sm:$0xf]
        %v1354 = vld [vmem:[%s1352 + $0x4] sm:$0xf]
        %v1355 = vld [vmem:[%s1352 + $0x8] sm:$0xf]
        %v1356 = vld [vmem:[%s1352 + $0xc] sm:$0xf]
        %v1357 = vld [vmem:[%s1352 + $0x10] sm:$0xf]
        %v1358 = vld [vmem:[%s1352 + $0x14] sm:$0xf]
        %v1359 = vld [vmem:[%s1352 + $0x18] sm:$0xf]
        %v1360 = vld [vmem:[%s1352 + $0x1c] sm:$0xf]
        %v1361 = vld [vmem:[%s1352 + $0x20] sm:$0xf]
        %v1362 = vld [vmem:[%s1352 + $0x24] sm:$0xf]
        %v1363 = vld [vmem:[%s1352 + $0x28] sm:$0xf]
        %v1364 = vld [vmem:[%s1352 + $0x2c] sm:$0xf]
        %v1365 = vld [vmem:[%s1352 + $0x30] sm:$0xf]
        %v1366 = vld [vmem:[%s1352 + $0x34] sm:$0xf]
        %v1367 = vld [vmem:[%s1352 + $0x38] sm:$0xf]
        %v1368 = vld [vmem:[%s1352 + $0x3c] sm:$0xf]
        %v1370 = vunpack.c.l.b16 %v1351
        %v1371 = vpack.c.b16 %v1270, %v1370
        %v1372 = vrot.slane %v1371, 1
        %v1373 = vrot.slane %v1273, 1
        %v1374 = vsel %vm888, %v1372, %v1373
        %v1392 = vunpack.c.l.b16 %v1353
        %v1393 = vunpack.c.l.b16 %v1354
        %v1394 = vunpack.c.l.b16 %v1355
        %v1395 = vunpack.c.l.b16 %v1356
        %v1396 = vunpack.c.l.b16 %v1357
        %v1397 = vunpack.c.l.b16 %v1358
        %v1398 = vunpack.c.l.b16 %v1359
        %v1399 = vunpack.c.l.b16 %v1360
        %v1400 = vunpack.c.l.b16 %v1361
        %v1401 = vunpack.c.l.b16 %v1362
        %v1402 = vunpack.c.l.b16 %v1363
        %v1403 = vunpack.c.l.b16 %v1364
        %v1404 = vunpack.c.l.b16 %v1365
        %v1405 = vunpack.c.l.b16 %v1366
        %v1406 = vunpack.c.l.b16 %v1367
        %v1407 = vunpack.c.l.b16 %v1368
        %v1408 = vpack.c.b16 %v1393, %v1392
        %v1409 = vpack.c.b16 %v1395, %v1394
        %v1410 = vpack.c.b16 %v1397, %v1396
        %v1411 = vpack.c.b16 %v1399, %v1398
        %v1412 = vpack.c.b16 %v1401, %v1400
        %v1413 = vpack.c.b16 %v1403, %v1402
        %v1414 = vpack.c.b16 %v1405, %v1404
        %v1415 = vpack.c.b16 %v1407, %v1406
        %1424 = vmatpush.bf16.msra.mxu0 %v1415
        %1425 = vmatpush.bf16.msra.mxu0 %v1414
        %1426 = vmatpush.bf16.msra.mxu0 %v1413
        %1427 = vmatpush.bf16.msra.mxu0 %v1412
        %1428 = vmatpush.bf16.msra.mxu0 %v1411
        %1429 = vmatpush.bf16.msra.mxu0 %v1410
        %1430 = vmatpush.bf16.msra.mxu0 %v1409
        %1431 = vmatpush.bf16.msra.mxu0 %v1408
        %1432 = vmatmul.bf16.gmra.mxu0 %v1374
        %v1433 = vpop.f32.mrf.mxu0
        %v1434 = vadd.f32 0.0, %v1433
        %v1435 = vpop.f32.mrf.mxu0
        %v1436 = vadd.f32 0.0, %v1435
        %1437 = vdwg.mxu0
        %v1438 = vadd.f32 %v1349, %v1434
        %v1439 = vadd.f32 %v1350, %v1436
        %v1440 = vld [vmem:[%s4] sm:$0x1]
        %v1442 = vperm.slane %v1440, 0
        %v1444 = vadd.f32 %v1438, %v1442
        %v1445 = vadd.f32 %v1439, %v1442
        %v1446 = vtanh.pop %v1444
        %v1447 = vtanh.pop %v1445
        %v1448 = vpack.c.bf16 %v1446, %v1446
        %v1449 = vpack.c.bf16 %v1447, %v1447
        %1450 = vst [vmem:[#allocation2 + $0x8] sm:$0xf] %v1448
        %1451 = vst [vmem:[#allocation2 + $0xc] sm:$0xf] %v1449
        %v1452 = vld [vmem:[#allocation2 + $0x4] sm:$0x8]
        %v1453 = vld [vmem:[#allocation2 + $0x8] sm:$0xf]
        %v1454 = vld [vmem:[#allocation2 + $0xc] sm:$0x7]
        %v1455 = vld [vmem:[#allocation9] sm:$0xf]
        %v1456 = vld [vmem:[#allocation9 + $0x4] sm:$0xf]
        %v1457 = vld [vmem:[#allocation9 + $0x8] sm:$0xf]
        %v1458 = vld [vmem:[#allocation9 + $0xc] sm:$0xf]
        %v1459 = vld [vmem:[#allocation9 + $0x10] sm:$0xf]
        %v1460 = vld [vmem:[#allocation9 + $0x14] sm:$0xf]
        %v1461 = vld [vmem:[#allocation9 + $0x18] sm:$0xf]
        %v1462 = vld [vmem:[#allocation9 + $0x1c] sm:$0xf]
        %v1463 = vld [vmem:[#allocation9 + $0x20] sm:$0xf]
        %v1464 = vld [vmem:[#allocation9 + $0x24] sm:$0xf]
        %v1465 = vld [vmem:[#allocation9 + $0x28] sm:$0xf]
        %v1466 = vld [vmem:[#allocation9 + $0x2c] sm:$0xf]
        %v1467 = vld [vmem:[#allocation9 + $0x30] sm:$0xf]
        %v1468 = vld [vmem:[#allocation9 + $0x34] sm:$0xf]
        %v1469 = vld [vmem:[#allocation9 + $0x38] sm:$0xf]
        %v1470 = vld [vmem:[#allocation9 + $0x3c] sm:$0xf]
        %v1471 = vld [vmem:[#allocation2 + $0xc] sm:$0xf]
        %s1472 = scalar_lea.vmem [#allocation9], 64
        %v1473 = vld [vmem:[%s1472] sm:$0xf]
        %v1474 = vld [vmem:[%s1472 + $0x4] sm:$0xf]
        %v1475 = vld [vmem:[%s1472 + $0x8] sm:$0xf]
        %v1476 = vld [vmem:[%s1472 + $0xc] sm:$0xf]
        %v1477 = vld [vmem:[%s1472 + $0x10] sm:$0xf]
        %v1478 = vld [vmem:[%s1472 + $0x14] sm:$0xf]
        %v1479 = vld [vmem:[%s1472 + $0x18] sm:$0xf]
        %v1480 = vld [vmem:[%s1472 + $0x1c] sm:$0xf]
        %v1481 = vld [vmem:[%s1472 + $0x20] sm:$0xf]
        %v1482 = vld [vmem:[%s1472 + $0x24] sm:$0xf]
        %v1483 = vld [vmem:[%s1472 + $0x28] sm:$0xf]
        %v1484 = vld [vmem:[%s1472 + $0x2c] sm:$0xf]
        %v1485 = vld [vmem:[%s1472 + $0x30] sm:$0xf]
        %v1486 = vld [vmem:[%s1472 + $0x34] sm:$0xf]
        %v1487 = vld [vmem:[%s1472 + $0x38] sm:$0xf]
        %v1488 = vld [vmem:[%s1472 + $0x3c] sm:$0xf]
        %v1492 = vunpack.c.l.b16 %v1452
        %v1493 = vunpack.c.l.b16 %v1453
        %v1494 = vunpack.c.l.b16 %v1471
        %v1495 = vpack.c.b16 %v1493, %v1492
        %v1496 = vpack.c.b16 %v1494, %v1494
        %v1498 = vshrl.u32 %v1495, 16
        %v1500 = vrot.slane %v1498, 3
        %v1501 = vshll.u32 %v1495, 16
        %v1503 = vrot.slane %v1501, 4
        %v1504 = vor.u32 %v1500, %v1503
        %v1506 = vshrl.u32 %v1496, 16
        %v1508 = vrot.slane %v1506, 3
        %v1509 = vshll.u32 %v1496, 16
        %v1511 = vrot.slane %v1509, 4
        %v1512 = vor.u32 %v1508, %v1511
        %v1513 = vsel %vm527, %v1504, %v1512
        %v1531 = vunpack.c.l.b16 %v1473
        %v1532 = vunpack.c.l.b16 %v1474
        %v1533 = vunpack.c.l.b16 %v1475
        %v1534 = vunpack.c.l.b16 %v1476
        %v1535 = vunpack.c.l.b16 %v1477
        %v1536 = vunpack.c.l.b16 %v1478
        %v1537 = vunpack.c.l.b16 %v1479
        %v1538 = vunpack.c.l.b16 %v1480
        %v1539 = vunpack.c.l.b16 %v1481
        %v1540 = vunpack.c.l.b16 %v1482
        %v1541 = vunpack.c.l.b16 %v1483
        %v1542 = vunpack.c.l.b16 %v1484
        %v1543 = vunpack.c.l.b16 %v1485
        %v1544 = vunpack.c.l.b16 %v1486
        %v1545 = vunpack.c.l.b16 %v1487
        %v1546 = vunpack.c.l.b16 %v1488
        %v1547 = vpack.c.b16 %v1532, %v1531
        %v1548 = vpack.c.b16 %v1534, %v1533
        %v1549 = vpack.c.b16 %v1536, %v1535
        %v1550 = vpack.c.b16 %v1538, %v1537
        %v1551 = vpack.c.b16 %v1540, %v1539
        %v1552 = vpack.c.b16 %v1542, %v1541
        %v1553 = vpack.c.b16 %v1544, %v1543
        %v1554 = vpack.c.b16 %v1546, %v1545
        %1563 = vmatpush.bf16.msra.mxu0 %v1554
        %1564 = vmatpush.bf16.msra.mxu0 %v1553
        %1565 = vmatpush.bf16.msra.mxu0 %v1552
        %1566 = vmatpush.bf16.msra.mxu0 %v1551
        %1567 = vmatpush.bf16.msra.mxu0 %v1550
        %1568 = vmatpush.bf16.msra.mxu0 %v1549
        %1569 = vmatpush.bf16.msra.mxu0 %v1548
        %1570 = vmatpush.bf16.msra.mxu0 %v1547
        %1571 = vmatmul.bf16.gmra.mxu0 %v1513
        %v1572 = vpop.f32.mrf.mxu0
        %v1573 = vadd.f32 0.0, %v1572
        %v1574 = vpop.f32.mrf.mxu0
        %v1575 = vadd.f32 0.0, %v1574
        %1576 = vdwg.mxu0
        %v1578 = vunpack.c.l.b16 %v1454
        %v1579 = vpack.c.b16 %v1578, %v1578
        %v1580 = vrot.slane %v1495, 3
        %v1581 = vrot.slane %v1579, 3
        %v1582 = vsel %vm611, %v1580, %v1581
        %v1600 = vunpack.c.l.b16 %v1455
        %v1601 = vunpack.c.l.b16 %v1456
        %v1602 = vunpack.c.l.b16 %v1457
        %v1603 = vunpack.c.l.b16 %v1458
        %v1604 = vunpack.c.l.b16 %v1459
        %v1605 = vunpack.c.l.b16 %v1460
        %v1606 = vunpack.c.l.b16 %v1461
        %v1607 = vunpack.c.l.b16 %v1462
        %v1608 = vunpack.c.l.b16 %v1463
        %v1609 = vunpack.c.l.b16 %v1464
        %v1610 = vunpack.c.l.b16 %v1465
        %v1611 = vunpack.c.l.b16 %v1466
        %v1612 = vunpack.c.l.b16 %v1467
        %v1613 = vunpack.c.l.b16 %v1468
        %v1614 = vunpack.c.l.b16 %v1469
        %v1615 = vunpack.c.l.b16 %v1470
        %v1616 = vpack.c.b16 %v1601, %v1600
        %v1617 = vpack.c.b16 %v1603, %v1602
        %v1618 = vpack.c.b16 %v1605, %v1604
        %v1619 = vpack.c.b16 %v1607, %v1606
        %v1620 = vpack.c.b16 %v1609, %v1608
        %v1621 = vpack.c.b16 %v1611, %v1610
        %v1622 = vpack.c.b16 %v1613, %v1612
        %v1623 = vpack.c.b16 %v1615, %v1614
        %1632 = vmatpush.bf16.msra.mxu0 %v1623
        %1633 = vmatpush.bf16.msra.mxu0 %v1622
        %1634 = vmatpush.bf16.msra.mxu0 %v1621
        %1635 = vmatpush.bf16.msra.mxu0 %v1620
        %1636 = vmatpush.bf16.msra.mxu0 %v1619
        %1637 = vmatpush.bf16.msra.mxu0 %v1618
        %1638 = vmatpush.bf16.msra.mxu0 %v1617
        %1639 = vmatpush.bf16.msra.mxu0 %v1616
        %1640 = vmatmul.bf16.gmra.mxu0 %v1582
        %v1641 = vpop.f32.mrf.mxu0
        %v1642 = vadd.f32 %v1573, %v1641
        %v1643 = vpop.f32.mrf.mxu0
        %v1644 = vadd.f32 %v1575, %v1643
        %1645 = vdwg.mxu0
        %s1646 = scalar_lea.vmem [#allocation9], 128
        %v1647 = vld [vmem:[%s1646] sm:$0xf]
        %v1648 = vld [vmem:[%s1646 + $0x4] sm:$0xf]
        %v1649 = vld [vmem:[%s1646 + $0x8] sm:$0xf]
        %v1650 = vld [vmem:[%s1646 + $0xc] sm:$0xf]
        %v1651 = vld [vmem:[%s1646 + $0x10] sm:$0xf]
        %v1652 = vld [vmem:[%s1646 + $0x14] sm:$0xf]
        %v1653 = vld [vmem:[%s1646 + $0x18] sm:$0xf]
        %v1654 = vld [vmem:[%s1646 + $0x1c] sm:$0xf]
        %v1655 = vld [vmem:[%s1646 + $0x20] sm:$0xf]
        %v1656 = vld [vmem:[%s1646 + $0x24] sm:$0xf]
        %v1657 = vld [vmem:[%s1646 + $0x28] sm:$0xf]
        %v1658 = vld [vmem:[%s1646 + $0x2c] sm:$0xf]
        %v1659 = vld [vmem:[%s1646 + $0x30] sm:$0xf]
        %v1660 = vld [vmem:[%s1646 + $0x34] sm:$0xf]
        %v1661 = vld [vmem:[%s1646 + $0x38] sm:$0xf]
        %v1662 = vld [vmem:[%s1646 + $0x3c] sm:$0xf]
        %v1663 = vpack.c.b16 %v1494, %v1493
        %v1681 = vunpack.c.l.b16 %v1647
        %v1682 = vunpack.c.l.b16 %v1648
        %v1683 = vunpack.c.l.b16 %v1649
        %v1684 = vunpack.c.l.b16 %v1650
        %v1685 = vunpack.c.l.b16 %v1651
        %v1686 = vunpack.c.l.b16 %v1652
        %v1687 = vunpack.c.l.b16 %v1653
        %v1688 = vunpack.c.l.b16 %v1654
        %v1689 = vunpack.c.l.b16 %v1655
        %v1690 = vunpack.c.l.b16 %v1656
        %v1691 = vunpack.c.l.b16 %v1657
        %v1692 = vunpack.c.l.b16 %v1658
        %v1693 = vunpack.c.l.b16 %v1659
        %v1694 = vunpack.c.l.b16 %v1660
        %v1695 = vunpack.c.l.b16 %v1661
        %v1696 = vunpack.c.l.b16 %v1662
        %v1697 = vpack.c.b16 %v1682, %v1681
        %v1698 = vpack.c.b16 %v1684, %v1683
        %v1699 = vpack.c.b16 %v1686, %v1685
        %v1700 = vpack.c.b16 %v1688, %v1687
        %v1701 = vpack.c.b16 %v1690, %v1689
        %v1702 = vpack.c.b16 %v1692, %v1691
        %v1703 = vpack.c.b16 %v1694, %v1693
        %v1704 = vpack.c.b16 %v1696, %v1695
        %1713 = vmatpush.bf16.msra.mxu0 %v1704
        %1714 = vmatpush.bf16.msra.mxu0 %v1703
        %1715 = vmatpush.bf16.msra.mxu0 %v1702
        %1716 = vmatpush.bf16.msra.mxu0 %v1701
        %1717 = vmatpush.bf16.msra.mxu0 %v1700
        %1718 = vmatpush.bf16.msra.mxu0 %v1699
        %1719 = vmatpush.bf16.msra.mxu0 %v1698
        %1720 = vmatpush.bf16.msra.mxu0 %v1697
        %1721 = vmatmul.bf16.gmra.mxu0 %v1663
        %v1722 = vpop.f32.mrf.mxu0
        %v1723 = vadd.f32 0.0, %v1722
        %v1724 = vpop.f32.mrf.mxu0
        %v1725 = vadd.f32 0.0, %v1724
        %1726 = vdwg.mxu0
        %v1727 = vadd.f32 %v1642, %v1723
        %v1728 = vadd.f32 %v1644, %v1725
        %v1729 = vld [vmem:[#allocation2 + $0x8] sm:$0xf]
        %v1730 = vld [vmem:[#allocation2 + $0xc] sm:$0xf]
        %v1731 = vld [vmem:[#allocation2 + $0x10] sm:$0x1]
        %s1732 = scalar_lea.vmem [#allocation9], 192
        %v1733 = vld [vmem:[%s1732] sm:$0xf]
        %v1734 = vld [vmem:[%s1732 + $0x4] sm:$0xf]
        %v1735 = vld [vmem:[%s1732 + $0x8] sm:$0xf]
        %v1736 = vld [vmem:[%s1732 + $0xc] sm:$0xf]
        %v1737 = vld [vmem:[%s1732 + $0x10] sm:$0xf]
        %v1738 = vld [vmem:[%s1732 + $0x14] sm:$0xf]
        %v1739 = vld [vmem:[%s1732 + $0x18] sm:$0xf]
        %v1740 = vld [vmem:[%s1732 + $0x1c] sm:$0xf]
        %v1741 = vld [vmem:[%s1732 + $0x20] sm:$0xf]
        %v1742 = vld [vmem:[%s1732 + $0x24] sm:$0xf]
        %v1743 = vld [vmem:[%s1732 + $0x28] sm:$0xf]
        %v1744 = vld [vmem:[%s1732 + $0x2c] sm:$0xf]
        %v1745 = vld [vmem:[%s1732 + $0x30] sm:$0xf]
        %v1746 = vld [vmem:[%s1732 + $0x34] sm:$0xf]
        %v1747 = vld [vmem:[%s1732 + $0x38] sm:$0xf]
        %v1748 = vld [vmem:[%s1732 + $0x3c] sm:$0xf]
        %v1752 = vunpack.c.l.b16 %v1729
        %v1753 = vunpack.c.l.b16 %v1730
        %v1754 = vunpack.c.l.b16 %v1731
        %v1755 = vpack.c.b16 %v1753, %v1752
        %v1756 = vpack.c.b16 %v1754, %v1754
        %v1758 = vshrl.u32 %v1755, 16
        %v1760 = vshll.u32 %v1755, 16
        %v1762 = vrot.slane %v1760, 1
        %v1763 = vor.u32 %v1758, %v1762
        %v1765 = vshll.u32 %v1756, 16
        %v1767 = vrot.slane %v1765, 1
        %v1768 = vsel %vm789, %v1763, %v1767
        %v1786 = vunpack.c.l.b16 %v1733
        %v1787 = vunpack.c.l.b16 %v1734
        %v1788 = vunpack.c.l.b16 %v1735
        %v1789 = vunpack.c.l.b16 %v1736
        %v1790 = vunpack.c.l.b16 %v1737
        %v1791 = vunpack.c.l.b16 %v1738
        %v1792 = vunpack.c.l.b16 %v1739
        %v1793 = vunpack.c.l.b16 %v1740
        %v1794 = vunpack.c.l.b16 %v1741
        %v1795 = vunpack.c.l.b16 %v1742
        %v1796 = vunpack.c.l.b16 %v1743
        %v1797 = vunpack.c.l.b16 %v1744
        %v1798 = vunpack.c.l.b16 %v1745
        %v1799 = vunpack.c.l.b16 %v1746
        %v1800 = vunpack.c.l.b16 %v1747
        %v1801 = vunpack.c.l.b16 %v1748
        %v1802 = vpack.c.b16 %v1787, %v1786
        %v1803 = vpack.c.b16 %v1789, %v1788
        %v1804 = vpack.c.b16 %v1791, %v1790
        %v1805 = vpack.c.b16 %v1793, %v1792
        %v1806 = vpack.c.b16 %v1795, %v1794
        %v1807 = vpack.c.b16 %v1797, %v1796
        %v1808 = vpack.c.b16 %v1799, %v1798
        %v1809 = vpack.c.b16 %v1801, %v1800
        %1818 = vmatpush.bf16.msra.mxu0 %v1809
        %1819 = vmatpush.bf16.msra.mxu0 %v1808
        %1820 = vmatpush.bf16.msra.mxu0 %v1807
        %1821 = vmatpush.bf16.msra.mxu0 %v1806
        %1822 = vmatpush.bf16.msra.mxu0 %v1805
        %1823 = vmatpush.bf16.msra.mxu0 %v1804
        %1824 = vmatpush.bf16.msra.mxu0 %v1803
        %1825 = vmatpush.bf16.msra.mxu0 %v1802
        %1826 = vmatmul.bf16.gmra.mxu0 %v1768
        %v1827 = vpop.f32.mrf.mxu0
        %v1828 = vadd.f32 0.0, %v1827
        %v1829 = vpop.f32.mrf.mxu0
        %v1830 = vadd.f32 0.0, %v1829
        %1831 = vdwg.mxu0
        %v1832 = vadd.f32 %v1727, %v1828
        %v1833 = vadd.f32 %v1728, %v1830
        %v1834 = vld [vmem:[#allocation2 + $0x8] sm:$0xe]
        %s1835 = scalar_lea.vmem [#allocation9], 256
        %v1836 = vld [vmem:[%s1835] sm:$0xf]
        %v1837 = vld [vmem:[%s1835 + $0x4] sm:$0xf]
        %v1838 = vld [vmem:[%s1835 + $0x8] sm:$0xf]
        %v1839 = vld [vmem:[%s1835 + $0xc] sm:$0xf]
        %v1840 = vld [vmem:[%s1835 + $0x10] sm:$0xf]
        %v1841 = vld [vmem:[%s1835 + $0x14] sm:$0xf]
        %v1842 = vld [vmem:[%s1835 + $0x18] sm:$0xf]
        %v1843 = vld [vmem:[%s1835 + $0x1c] sm:$0xf]
        %v1844 = vld [vmem:[%s1835 + $0x20] sm:$0xf]
        %v1845 = vld [vmem:[%s1835 + $0x24] sm:$0xf]
        %v1846 = vld [vmem:[%s1835 + $0x28] sm:$0xf]
        %v1847 = vld [vmem:[%s1835 + $0x2c] sm:$0xf]
        %v1848 = vld [vmem:[%s1835 + $0x30] sm:$0xf]
        %v1849 = vld [vmem:[%s1835 + $0x34] sm:$0xf]
        %v1850 = vld [vmem:[%s1835 + $0x38] sm:$0xf]
        %v1851 = vld [vmem:[%s1835 + $0x3c] sm:$0xf]
        %v1853 = vunpack.c.l.b16 %v1834
        %v1854 = vpack.c.b16 %v1753, %v1853
        %v1855 = vrot.slane %v1854, 1
        %v1856 = vrot.slane %v1756, 1
        %v1857 = vsel %vm888, %v1855, %v1856
        %v1875 = vunpack.c.l.b16 %v1836
        %v1876 = vunpack.c.l.b16 %v1837
        %v1877 = vunpack.c.l.b16 %v1838
        %v1878 = vunpack.c.l.b16 %v1839
        %v1879 = vunpack.c.l.b16 %v1840
        %v1880 = vunpack.c.l.b16 %v1841
        %v1881 = vunpack.c.l.b16 %v1842
        %v1882 = vunpack.c.l.b16 %v1843
        %v1883 = vunpack.c.l.b16 %v1844
        %v1884 = vunpack.c.l.b16 %v1845
        %v1885 = vunpack.c.l.b16 %v1846
        %v1886 = vunpack.c.l.b16 %v1847
        %v1887 = vunpack.c.l.b16 %v1848
        %v1888 = vunpack.c.l.b16 %v1849
        %v1889 = vunpack.c.l.b16 %v1850
        %v1890 = vunpack.c.l.b16 %v1851
        %v1891 = vpack.c.b16 %v1876, %v1875
        %v1892 = vpack.c.b16 %v1878, %v1877
        %v1893 = vpack.c.b16 %v1880, %v1879
        %v1894 = vpack.c.b16 %v1882, %v1881
        %v1895 = vpack.c.b16 %v1884, %v1883
        %v1896 = vpack.c.b16 %v1886, %v1885
        %v1897 = vpack.c.b16 %v1888, %v1887
        %v1898 = vpack.c.b16 %v1890, %v1889
        %1907 = vmatpush.bf16.msra.mxu0 %v1898
        %1908 = vmatpush.bf16.msra.mxu0 %v1897
        %1909 = vmatpush.bf16.msra.mxu0 %v1896
        %1910 = vmatpush.bf16.msra.mxu0 %v1895
        %1911 = vmatpush.bf16.msra.mxu0 %v1894
        %1912 = vmatpush.bf16.msra.mxu0 %v1893
        %1913 = vmatpush.bf16.msra.mxu0 %v1892
        %1914 = vmatpush.bf16.msra.mxu0 %v1891
        %1915 = vmatmul.bf16.gmra.mxu0 %v1857
        %v1916 = vpop.f32.mrf.mxu0
        %v1917 = vadd.f32 0.0, %v1916
        %v1918 = vpop.f32.mrf.mxu0
        %v1919 = vadd.f32 0.0, %v1918
        %1920 = vdwg.mxu0
        %v1921 = vadd.f32 %v1832, %v1917
        %v1922 = vadd.f32 %v1833, %v1919
        %v1923 = vld [vmem:[%s6] sm:$0x1]
        %v1925 = vperm.slane %v1923, 0
        %v1927 = vadd.f32 %v1921, %v1925
        %v1928 = vadd.f32 %v1922, %v1925
        %v1929 = vtanh.pop %v1927
        %v1930 = vtanh.pop %v1928
        %v1931 = vpack.c.bf16 %v1929, %v1929
        %v1932 = vpack.c.bf16 %v1930, %v1930
        %1933 = vst [vmem:[#allocation3 + $0x8] sm:$0xf] %v1931
        %1934 = vst [vmem:[#allocation3 + $0xc] sm:$0xf] %v1932
        %v1935 = vld [vmem:[#allocation3 + $0x4] sm:$0x8]
        %v1936 = vld [vmem:[#allocation3 + $0x8] sm:$0xf]
        %v1937 = vld [vmem:[#allocation3 + $0xc] sm:$0x7]
        %v1938 = vld [vmem:[#allocation10] sm:$0xf]
        %v1939 = vld [vmem:[#allocation10 + $0x4] sm:$0xf]
        %v1940 = vld [vmem:[#allocation10 + $0x8] sm:$0xf]
        %v1941 = vld [vmem:[#allocation10 + $0xc] sm:$0xf]
        %v1942 = vld [vmem:[#allocation10 + $0x10] sm:$0xf]
        %v1943 = vld [vmem:[#allocation10 + $0x14] sm:$0xf]
        %v1944 = vld [vmem:[#allocation10 + $0x18] sm:$0xf]
        %v1945 = vld [vmem:[#allocation10 + $0x1c] sm:$0xf]
        %v1946 = vld [vmem:[#allocation10 + $0x20] sm:$0xf]
        %v1947 = vld [vmem:[#allocation10 + $0x24] sm:$0xf]
        %v1948 = vld [vmem:[#allocation10 + $0x28] sm:$0xf]
        %v1949 = vld [vmem:[#allocation10 + $0x2c] sm:$0xf]
        %v1950 = vld [vmem:[#allocation10 + $0x30] sm:$0xf]
        %v1951 = vld [vmem:[#allocation10 + $0x34] sm:$0xf]
        %v1952 = vld [vmem:[#allocation10 + $0x38] sm:$0xf]
        %v1953 = vld [vmem:[#allocation10 + $0x3c] sm:$0xf]
        %v1954 = vld [vmem:[#allocation3 + $0xc] sm:$0xf]
        %s1955 = scalar_lea.vmem [#allocation10], 64
        %v1956 = vld [vmem:[%s1955] sm:$0xf]
        %v1957 = vld [vmem:[%s1955 + $0x4] sm:$0xf]
        %v1958 = vld [vmem:[%s1955 + $0x8] sm:$0xf]
        %v1959 = vld [vmem:[%s1955 + $0xc] sm:$0xf]
        %v1960 = vld [vmem:[%s1955 + $0x10] sm:$0xf]
        %v1961 = vld [vmem:[%s1955 + $0x14] sm:$0xf]
        %v1962 = vld [vmem:[%s1955 + $0x18] sm:$0xf]
        %v1963 = vld [vmem:[%s1955 + $0x1c] sm:$0xf]
        %v1964 = vld [vmem:[%s1955 + $0x20] sm:$0xf]
        %v1965 = vld [vmem:[%s1955 + $0x24] sm:$0xf]
        %v1966 = vld [vmem:[%s1955 + $0x28] sm:$0xf]
        %v1967 = vld [vmem:[%s1955 + $0x2c] sm:$0xf]
        %v1968 = vld [vmem:[%s1955 + $0x30] sm:$0xf]
        %v1969 = vld [vmem:[%s1955 + $0x34] sm:$0xf]
        %v1970 = vld [vmem:[%s1955 + $0x38] sm:$0xf]
        %v1971 = vld [vmem:[%s1955 + $0x3c] sm:$0xf]
        %v1975 = vunpack.c.l.b16 %v1935
        %v1976 = vunpack.c.l.b16 %v1936
        %v1977 = vunpack.c.l.b16 %v1954
        %v1978 = vpack.c.b16 %v1976, %v1975
        %v1979 = vpack.c.b16 %v1977, %v1977
        %v1981 = vshrl.u32 %v1978, 16
        %v1983 = vrot.slane %v1981, 3
        %v1984 = vshll.u32 %v1978, 16
        %v1986 = vrot.slane %v1984, 4
        %v1987 = vor.u32 %v1983, %v1986
        %v1989 = vshrl.u32 %v1979, 16
        %v1991 = vrot.slane %v1989, 3
        %v1992 = vshll.u32 %v1979, 16
        %v1994 = vrot.slane %v1992, 4
        %v1995 = vor.u32 %v1991, %v1994
        %v1996 = vsel %vm527, %v1987, %v1995
        %v2014 = vunpack.c.l.b16 %v1956
        %v2015 = vunpack.c.l.b16 %v1957
        %v2016 = vunpack.c.l.b16 %v1958
        %v2017 = vunpack.c.l.b16 %v1959
        %v2018 = vunpack.c.l.b16 %v1960
        %v2019 = vunpack.c.l.b16 %v1961
        %v2020 = vunpack.c.l.b16 %v1962
        %v2021 = vunpack.c.l.b16 %v1963
        %v2022 = vunpack.c.l.b16 %v1964
        %v2023 = vunpack.c.l.b16 %v1965
        %v2024 = vunpack.c.l.b16 %v1966
        %v2025 = vunpack.c.l.b16 %v1967
        %v2026 = vunpack.c.l.b16 %v1968
        %v2027 = vunpack.c.l.b16 %v1969
        %v2028 = vunpack.c.l.b16 %v1970
        %v2029 = vunpack.c.l.b16 %v1971
        %v2030 = vpack.c.b16 %v2015, %v2014
        %v2031 = vpack.c.b16 %v2017, %v2016
        %v2032 = vpack.c.b16 %v2019, %v2018
        %v2033 = vpack.c.b16 %v2021, %v2020
        %v2034 = vpack.c.b16 %v2023, %v2022
        %v2035 = vpack.c.b16 %v2025, %v2024
        %v2036 = vpack.c.b16 %v2027, %v2026
        %v2037 = vpack.c.b16 %v2029, %v2028
        %2046 = vmatpush.bf16.msra.mxu0 %v2037
        %2047 = vmatpush.bf16.msra.mxu0 %v2036
        %2048 = vmatpush.bf16.msra.mxu0 %v2035
        %2049 = vmatpush.bf16.msra.mxu0 %v2034
        %2050 = vmatpush.bf16.msra.mxu0 %v2033
        %2051 = vmatpush.bf16.msra.mxu0 %v2032
        %2052 = vmatpush.bf16.msra.mxu0 %v2031
        %2053 = vmatpush.bf16.msra.mxu0 %v2030
        %2054 = vmatmul.bf16.gmra.mxu0 %v1996
        %v2055 = vpop.f32.mrf.mxu0
        %v2056 = vadd.f32 0.0, %v2055
        %v2057 = vpop.f32.mrf.mxu0
        %v2058 = vadd.f32 0.0, %v2057
        %2059 = vdwg.mxu0
        %v2061 = vunpack.c.l.b16 %v1937
        %v2062 = vpack.c.b16 %v2061, %v2061
        %v2063 = vrot.slane %v1978, 3
        %v2064 = vrot.slane %v2062, 3
        %v2065 = vsel %vm611, %v2063, %v2064
        %v2083 = vunpack.c.l.b16 %v1938
        %v2084 = vunpack.c.l.b16 %v1939
        %v2085 = vunpack.c.l.b16 %v1940
        %v2086 = vunpack.c.l.b16 %v1941
        %v2087 = vunpack.c.l.b16 %v1942
        %v2088 = vunpack.c.l.b16 %v1943
        %v2089 = vunpack.c.l.b16 %v1944
        %v2090 = vunpack.c.l.b16 %v1945
        %v2091 = vunpack.c.l.b16 %v1946
        %v2092 = vunpack.c.l.b16 %v1947
        %v2093 = vunpack.c.l.b16 %v1948
        %v2094 = vunpack.c.l.b16 %v1949
        %v2095 = vunpack.c.l.b16 %v1950
        %v2096 = vunpack.c.l.b16 %v1951
        %v2097 = vunpack.c.l.b16 %v1952
        %v2098 = vunpack.c.l.b16 %v1953
        %v2099 = vpack.c.b16 %v2084, %v2083
        %v2100 = vpack.c.b16 %v2086, %v2085
        %v2101 = vpack.c.b16 %v2088, %v2087
        %v2102 = vpack.c.b16 %v2090, %v2089
        %v2103 = vpack.c.b16 %v2092, %v2091
        %v2104 = vpack.c.b16 %v2094, %v2093
        %v2105 = vpack.c.b16 %v2096, %v2095
        %v2106 = vpack.c.b16 %v2098, %v2097
        %2115 = vmatpush.bf16.msra.mxu0 %v2106
        %2116 = vmatpush.bf16.msra.mxu0 %v2105
        %2117 = vmatpush.bf16.msra.mxu0 %v2104
        %2118 = vmatpush.bf16.msra.mxu0 %v2103
        %2119 = vmatpush.bf16.msra.mxu0 %v2102
        %2120 = vmatpush.bf16.msra.mxu0 %v2101
        %2121 = vmatpush.bf16.msra.mxu0 %v2100
        %2122 = vmatpush.bf16.msra.mxu0 %v2099
        %2123 = vmatmul.bf16.gmra.mxu0 %v2065
        %v2124 = vpop.f32.mrf.mxu0
        %v2125 = vadd.f32 %v2056, %v2124
        %v2126 = vpop.f32.mrf.mxu0
        %v2127 = vadd.f32 %v2058, %v2126
        %2128 = vdwg.mxu0
        %s2129 = scalar_lea.vmem [#allocation10], 128
        %v2130 = vld [vmem:[%s2129] sm:$0xf]
        %v2131 = vld [vmem:[%s2129 + $0x4] sm:$0xf]
        %v2132 = vld [vmem:[%s2129 + $0x8] sm:$0xf]
        %v2133 = vld [vmem:[%s2129 + $0xc] sm:$0xf]
        %v2134 = vld [vmem:[%s2129 + $0x10] sm:$0xf]
        %v2135 = vld [vmem:[%s2129 + $0x14] sm:$0xf]
        %v2136 = vld [vmem:[%s2129 + $0x18] sm:$0xf]
        %v2137 = vld [vmem:[%s2129 + $0x1c] sm:$0xf]
        %v2138 = vld [vmem:[%s2129 + $0x20] sm:$0xf]
        %v2139 = vld [vmem:[%s2129 + $0x24] sm:$0xf]
        %v2140 = vld [vmem:[%s2129 + $0x28] sm:$0xf]
        %v2141 = vld [vmem:[%s2129 + $0x2c] sm:$0xf]
        %v2142 = vld [vmem:[%s2129 + $0x30] sm:$0xf]
        %v2143 = vld [vmem:[%s2129 + $0x34] sm:$0xf]
        %v2144 = vld [vmem:[%s2129 + $0x38] sm:$0xf]
        %v2145 = vld [vmem:[%s2129 + $0x3c] sm:$0xf]
        %v2146 = vpack.c.b16 %v1977, %v1976
        %v2164 = vunpack.c.l.b16 %v2130
        %v2165 = vunpack.c.l.b16 %v2131
        %v2166 = vunpack.c.l.b16 %v2132
        %v2167 = vunpack.c.l.b16 %v2133
        %v2168 = vunpack.c.l.b16 %v2134
        %v2169 = vunpack.c.l.b16 %v2135
        %v2170 = vunpack.c.l.b16 %v2136
        %v2171 = vunpack.c.l.b16 %v2137
        %v2172 = vunpack.c.l.b16 %v2138
        %v2173 = vunpack.c.l.b16 %v2139
        %v2174 = vunpack.c.l.b16 %v2140
        %v2175 = vunpack.c.l.b16 %v2141
        %v2176 = vunpack.c.l.b16 %v2142
        %v2177 = vunpack.c.l.b16 %v2143
        %v2178 = vunpack.c.l.b16 %v2144
        %v2179 = vunpack.c.l.b16 %v2145
        %v2180 = vpack.c.b16 %v2165, %v2164
        %v2181 = vpack.c.b16 %v2167, %v2166
        %v2182 = vpack.c.b16 %v2169, %v2168
        %v2183 = vpack.c.b16 %v2171, %v2170
        %v2184 = vpack.c.b16 %v2173, %v2172
        %v2185 = vpack.c.b16 %v2175, %v2174
        %v2186 = vpack.c.b16 %v2177, %v2176
        %v2187 = vpack.c.b16 %v2179, %v2178
        %2196 = vmatpush.bf16.msra.mxu0 %v2187
        %2197 = vmatpush.bf16.msra.mxu0 %v2186
        %2198 = vmatpush.bf16.msra.mxu0 %v2185
        %2199 = vmatpush.bf16.msra.mxu0 %v2184
        %2200 = vmatpush.bf16.msra.mxu0 %v2183
        %2201 = vmatpush.bf16.msra.mxu0 %v2182
        %2202 = vmatpush.bf16.msra.mxu0 %v2181
        %2203 = vmatpush.bf16.msra.mxu0 %v2180
        %2204 = vmatmul.bf16.gmra.mxu0 %v2146
        %v2205 = vpop.f32.mrf.mxu0
        %v2206 = vadd.f32 0.0, %v2205
        %v2207 = vpop.f32.mrf.mxu0
        %v2208 = vadd.f32 0.0, %v2207
        %2209 = vdwg.mxu0
        %v2210 = vadd.f32 %v2125, %v2206
        %v2211 = vadd.f32 %v2127, %v2208
        %v2212 = vld [vmem:[#allocation3 + $0x8] sm:$0xf]
        %v2213 = vld [vmem:[#allocation3 + $0xc] sm:$0xf]
        %v2214 = vld [vmem:[#allocation3 + $0x10] sm:$0x1]
        %s2215 = scalar_lea.vmem [#allocation10], 192
        %v2216 = vld [vmem:[%s2215] sm:$0xf]
        %v2217 = vld [vmem:[%s2215 + $0x4] sm:$0xf]
        %v2218 = vld [vmem:[%s2215 + $0x8] sm:$0xf]
        %v2219 = vld [vmem:[%s2215 + $0xc] sm:$0xf]
        %v2220 = vld [vmem:[%s2215 + $0x10] sm:$0xf]
        %v2221 = vld [vmem:[%s2215 + $0x14] sm:$0xf]
        %v2222 = vld [vmem:[%s2215 + $0x18] sm:$0xf]
        %v2223 = vld [vmem:[%s2215 + $0x1c] sm:$0xf]
        %v2224 = vld [vmem:[%s2215 + $0x20] sm:$0xf]
        %v2225 = vld [vmem:[%s2215 + $0x24] sm:$0xf]
        %v2226 = vld [vmem:[%s2215 + $0x28] sm:$0xf]
        %v2227 = vld [vmem:[%s2215 + $0x2c] sm:$0xf]
        %v2228 = vld [vmem:[%s2215 + $0x30] sm:$0xf]
        %v2229 = vld [vmem:[%s2215 + $0x34] sm:$0xf]
        %v2230 = vld [vmem:[%s2215 + $0x38] sm:$0xf]
        %v2231 = vld [vmem:[%s2215 + $0x3c] sm:$0xf]
        %v2235 = vunpack.c.l.b16 %v2212
        %v2236 = vunpack.c.l.b16 %v2213
        %v2237 = vunpack.c.l.b16 %v2214
        %v2238 = vpack.c.b16 %v2236, %v2235
        %v2239 = vpack.c.b16 %v2237, %v2237
        %v2241 = vshrl.u32 %v2238, 16
        %v2243 = vshll.u32 %v2238, 16
        %v2245 = vrot.slane %v2243, 1
        %v2246 = vor.u32 %v2241, %v2245
        %v2248 = vshll.u32 %v2239, 16
        %v2250 = vrot.slane %v2248, 1
        %v2251 = vsel %vm789, %v2246, %v2250
        %v2269 = vunpack.c.l.b16 %v2216
        %v2270 = vunpack.c.l.b16 %v2217
        %v2271 = vunpack.c.l.b16 %v2218
        %v2272 = vunpack.c.l.b16 %v2219
        %v2273 = vunpack.c.l.b16 %v2220
        %v2274 = vunpack.c.l.b16 %v2221
        %v2275 = vunpack.c.l.b16 %v2222
        %v2276 = vunpack.c.l.b16 %v2223
        %v2277 = vunpack.c.l.b16 %v2224
        %v2278 = vunpack.c.l.b16 %v2225
        %v2279 = vunpack.c.l.b16 %v2226
        %v2280 = vunpack.c.l.b16 %v2227
        %v2281 = vunpack.c.l.b16 %v2228
        %v2282 = vunpack.c.l.b16 %v2229
        %v2283 = vunpack.c.l.b16 %v2230
        %v2284 = vunpack.c.l.b16 %v2231
        %v2285 = vpack.c.b16 %v2270, %v2269
        %v2286 = vpack.c.b16 %v2272, %v2271
        %v2287 = vpack.c.b16 %v2274, %v2273
        %v2288 = vpack.c.b16 %v2276, %v2275
        %v2289 = vpack.c.b16 %v2278, %v2277
        %v2290 = vpack.c.b16 %v2280, %v2279
        %v2291 = vpack.c.b16 %v2282, %v2281
        %v2292 = vpack.c.b16 %v2284, %v2283
        %2301 = vmatpush.bf16.msra.mxu0 %v2292
        %2302 = vmatpush.bf16.msra.mxu0 %v2291
        %2303 = vmatpush.bf16.msra.mxu0 %v2290
        %2304 = vmatpush.bf16.msra.mxu0 %v2289
        %2305 = vmatpush.bf16.msra.mxu0 %v2288
        %2306 = vmatpush.bf16.msra.mxu0 %v2287
        %2307 = vmatpush.bf16.msra.mxu0 %v2286
        %2308 = vmatpush.bf16.msra.mxu0 %v2285
        %2309 = vmatmul.bf16.gmra.mxu0 %v2251
        %v2310 = vpop.f32.mrf.mxu0
        %v2311 = vadd.f32 0.0, %v2310
        %v2312 = vpop.f32.mrf.mxu0
        %v2313 = vadd.f32 0.0, %v2312
        %2314 = vdwg.mxu0
        %v2315 = vadd.f32 %v2210, %v2311
        %v2316 = vadd.f32 %v2211, %v2313
        %v2317 = vld [vmem:[#allocation3 + $0x8] sm:$0xe]
        %s2318 = scalar_lea.vmem [#allocation10], 256
        %v2319 = vld [vmem:[%s2318] sm:$0xf]
        %v2320 = vld [vmem:[%s2318 + $0x4] sm:$0xf]
        %v2321 = vld [vmem:[%s2318 + $0x8] sm:$0xf]
        %v2322 = vld [vmem:[%s2318 + $0xc] sm:$0xf]
        %v2323 = vld [vmem:[%s2318 + $0x10] sm:$0xf]
        %v2324 = vld [vmem:[%s2318 + $0x14] sm:$0xf]
        %v2325 = vld [vmem:[%s2318 + $0x18] sm:$0xf]
        %v2326 = vld [vmem:[%s2318 + $0x1c] sm:$0xf]
        %v2327 = vld [vmem:[%s2318 + $0x20] sm:$0xf]
        %v2328 = vld [vmem:[%s2318 + $0x24] sm:$0xf]
        %v2329 = vld [vmem:[%s2318 + $0x28] sm:$0xf]
        %v2330 = vld [vmem:[%s2318 + $0x2c] sm:$0xf]
        %v2331 = vld [vmem:[%s2318 + $0x30] sm:$0xf]
        %v2332 = vld [vmem:[%s2318 + $0x34] sm:$0xf]
        %v2333 = vld [vmem:[%s2318 + $0x38] sm:$0xf]
        %v2334 = vld [vmem:[%s2318 + $0x3c] sm:$0xf]
        %v2336 = vunpack.c.l.b16 %v2317
        %v2337 = vpack.c.b16 %v2236, %v2336
        %v2338 = vrot.slane %v2337, 1
        %v2339 = vrot.slane %v2239, 1
        %v2340 = vsel %vm888, %v2338, %v2339
        %v2358 = vunpack.c.l.b16 %v2319
        %v2359 = vunpack.c.l.b16 %v2320
        %v2360 = vunpack.c.l.b16 %v2321
        %v2361 = vunpack.c.l.b16 %v2322
        %v2362 = vunpack.c.l.b16 %v2323
        %v2363 = vunpack.c.l.b16 %v2324
        %v2364 = vunpack.c.l.b16 %v2325
        %v2365 = vunpack.c.l.b16 %v2326
        %v2366 = vunpack.c.l.b16 %v2327
        %v2367 = vunpack.c.l.b16 %v2328
        %v2368 = vunpack.c.l.b16 %v2329
        %v2369 = vunpack.c.l.b16 %v2330
        %v2370 = vunpack.c.l.b16 %v2331
        %v2371 = vunpack.c.l.b16 %v2332
        %v2372 = vunpack.c.l.b16 %v2333
        %v2373 = vunpack.c.l.b16 %v2334
        %v2374 = vpack.c.b16 %v2359, %v2358
        %v2375 = vpack.c.b16 %v2361, %v2360
        %v2376 = vpack.c.b16 %v2363, %v2362
        %v2377 = vpack.c.b16 %v2365, %v2364
        %v2378 = vpack.c.b16 %v2367, %v2366
        %v2379 = vpack.c.b16 %v2369, %v2368
        %v2380 = vpack.c.b16 %v2371, %v2370
        %v2381 = vpack.c.b16 %v2373, %v2372
        %2390 = vmatpush.bf16.msra.mxu0 %v2381
        %2391 = vmatpush.bf16.msra.mxu0 %v2380
        %2392 = vmatpush.bf16.msra.mxu0 %v2379
        %2393 = vmatpush.bf16.msra.mxu0 %v2378
        %2394 = vmatpush.bf16.msra.mxu0 %v2377
        %2395 = vmatpush.bf16.msra.mxu0 %v2376
        %2396 = vmatpush.bf16.msra.mxu0 %v2375
        %2397 = vmatpush.bf16.msra.mxu0 %v2374
        %2398 = vmatmul.bf16.gmra.mxu0 %v2340
        %v2399 = vpop.f32.mrf.mxu0
        %v2400 = vadd.f32 0.0, %v2399
        %v2401 = vpop.f32.mrf.mxu0
        %v2402 = vadd.f32 0.0, %v2401
        %2403 = vdwg.mxu0
        %v2404 = vadd.f32 %v2315, %v2400
        %v2405 = vadd.f32 %v2316, %v2402
        %v2406 = vld [vmem:[%s8] sm:$0x1]
        %v2408 = vperm.slane %v2406, 0
        %v2410 = vadd.f32 %v2404, %v2408
        %v2411 = vadd.f32 %v2405, %v2408
        %v2412 = vtanh.pop %v2410
        %v2413 = vtanh.pop %v2411
        %v2414 = vpack.c.bf16 %v2412, %v2412
        %v2415 = vpack.c.bf16 %v2413, %v2413
        %2416 = vst [vmem:[#allocation2 + $0x8] sm:$0xf] %v2414
        %2417 = vst [vmem:[#allocation2 + $0xc] sm:$0xf] %v2415
        %v2418 = vld [vmem:[#allocation2 + $0x4] sm:$0x8]
        %v2419 = vld [vmem:[#allocation2 + $0x8] sm:$0xf]
        %v2420 = vld [vmem:[#allocation2 + $0xc] sm:$0x7]
        %v2421 = vld [vmem:[#allocation12] sm:$0xf]
        %v2422 = vld [vmem:[#allocation12 + $0x4] sm:$0xf]
        %v2423 = vld [vmem:[#allocation12 + $0x8] sm:$0xf]
        %v2424 = vld [vmem:[#allocation12 + $0xc] sm:$0xf]
        %v2425 = vld [vmem:[#allocation12 + $0x10] sm:$0xf]
        %v2426 = vld [vmem:[#allocation12 + $0x14] sm:$0xf]
        %v2427 = vld [vmem:[#allocation12 + $0x18] sm:$0xf]
        %v2428 = vld [vmem:[#allocation12 + $0x1c] sm:$0xf]
        %v2429 = vld [vmem:[#allocation12 + $0x20] sm:$0xf]
        %v2430 = vld [vmem:[#allocation12 + $0x24] sm:$0xf]
        %v2431 = vld [vmem:[#allocation12 + $0x28] sm:$0xf]
        %v2432 = vld [vmem:[#allocation12 + $0x2c] sm:$0xf]
        %v2433 = vld [vmem:[#allocation12 + $0x30] sm:$0xf]
        %v2434 = vld [vmem:[#allocation12 + $0x34] sm:$0xf]
        %v2435 = vld [vmem:[#allocation12 + $0x38] sm:$0xf]
        %v2436 = vld [vmem:[#allocation12 + $0x3c] sm:$0xf]
        %v2437 = vld [vmem:[#allocation2 + $0xc] sm:$0xf]
        %s2438 = scalar_lea.vmem [#allocation12], 64
        %v2439 = vld [vmem:[%s2438] sm:$0xf]
        %v2440 = vld [vmem:[%s2438 + $0x4] sm:$0xf]
        %v2441 = vld [vmem:[%s2438 + $0x8] sm:$0xf]
        %v2442 = vld [vmem:[%s2438 + $0xc] sm:$0xf]
        %v2443 = vld [vmem:[%s2438 + $0x10] sm:$0xf]
        %v2444 = vld [vmem:[%s2438 + $0x14] sm:$0xf]
        %v2445 = vld [vmem:[%s2438 + $0x18] sm:$0xf]
        %v2446 = vld [vmem:[%s2438 + $0x1c] sm:$0xf]
        %v2447 = vld [vmem:[%s2438 + $0x20] sm:$0xf]
        %v2448 = vld [vmem:[%s2438 + $0x24] sm:$0xf]
        %v2449 = vld [vmem:[%s2438 + $0x28] sm:$0xf]
        %v2450 = vld [vmem:[%s2438 + $0x2c] sm:$0xf]
        %v2451 = vld [vmem:[%s2438 + $0x30] sm:$0xf]
        %v2452 = vld [vmem:[%s2438 + $0x34] sm:$0xf]
        %v2453 = vld [vmem:[%s2438 + $0x38] sm:$0xf]
        %v2454 = vld [vmem:[%s2438 + $0x3c] sm:$0xf]
        %v2458 = vunpack.c.l.b16 %v2418
        %v2459 = vunpack.c.l.b16 %v2419
        %v2460 = vunpack.c.l.b16 %v2437
        %v2461 = vpack.c.b16 %v2459, %v2458
        %v2462 = vpack.c.b16 %v2460, %v2460
        %v2464 = vshrl.u32 %v2461, 16
        %v2466 = vrot.slane %v2464, 3
        %v2467 = vshll.u32 %v2461, 16
        %v2469 = vrot.slane %v2467, 4
        %v2470 = vor.u32 %v2466, %v2469
        %v2472 = vshrl.u32 %v2462, 16
        %v2474 = vrot.slane %v2472, 3
        %v2475 = vshll.u32 %v2462, 16
        %v2477 = vrot.slane %v2475, 4
        %v2478 = vor.u32 %v2474, %v2477
        %v2479 = vsel %vm527, %v2470, %v2478
        %v2497 = vunpack.c.l.b16 %v2439
        %v2498 = vunpack.c.l.b16 %v2440
        %v2499 = vunpack.c.l.b16 %v2441
        %v2500 = vunpack.c.l.b16 %v2442
        %v2501 = vunpack.c.l.b16 %v2443
        %v2502 = vunpack.c.l.b16 %v2444
        %v2503 = vunpack.c.l.b16 %v2445
        %v2504 = vunpack.c.l.b16 %v2446
        %v2505 = vunpack.c.l.b16 %v2447
        %v2506 = vunpack.c.l.b16 %v2448
        %v2507 = vunpack.c.l.b16 %v2449
        %v2508 = vunpack.c.l.b16 %v2450
        %v2509 = vunpack.c.l.b16 %v2451
        %v2510 = vunpack.c.l.b16 %v2452
        %v2511 = vunpack.c.l.b16 %v2453
        %v2512 = vunpack.c.l.b16 %v2454
        %v2513 = vpack.c.b16 %v2498, %v2497
        %v2514 = vpack.c.b16 %v2500, %v2499
        %v2515 = vpack.c.b16 %v2502, %v2501
        %v2516 = vpack.c.b16 %v2504, %v2503
        %v2517 = vpack.c.b16 %v2506, %v2505
        %v2518 = vpack.c.b16 %v2508, %v2507
        %v2519 = vpack.c.b16 %v2510, %v2509
        %v2520 = vpack.c.b16 %v2512, %v2511
        %2529 = vmatpush.bf16.msra.mxu0 %v2520
        %2530 = vmatpush.bf16.msra.mxu0 %v2519
        %2531 = vmatpush.bf16.msra.mxu0 %v2518
        %2532 = vmatpush.bf16.msra.mxu0 %v2517
        %2533 = vmatpush.bf16.msra.mxu0 %v2516
        %2534 = vmatpush.bf16.msra.mxu0 %v2515
        %2535 = vmatpush.bf16.msra.mxu0 %v2514
        %2536 = vmatpush.bf16.msra.mxu0 %v2513
        %2537 = vmatmul.bf16.gmra.mxu0 %v2479
        %v2538 = vpop.f32.mrf.mxu0
        %v2539 = vadd.f32 0.0, %v2538
        %v2540 = vpop.f32.mrf.mxu0
        %v2541 = vadd.f32 0.0, %v2540
        %2542 = vdwg.mxu0
        %v2544 = vunpack.c.l.b16 %v2420
        %v2545 = vpack.c.b16 %v2544, %v2544
        %v2546 = vrot.slane %v2461, 3
        %v2547 = vrot.slane %v2545, 3
        %v2548 = vsel %vm611, %v2546, %v2547
        %v2566 = vunpack.c.l.b16 %v2421
        %v2567 = vunpack.c.l.b16 %v2422
        %v2568 = vunpack.c.l.b16 %v2423
        %v2569 = vunpack.c.l.b16 %v2424
        %v2570 = vunpack.c.l.b16 %v2425
        %v2571 = vunpack.c.l.b16 %v2426
        %v2572 = vunpack.c.l.b16 %v2427
        %v2573 = vunpack.c.l.b16 %v2428
        %v2574 = vunpack.c.l.b16 %v2429
        %v2575 = vunpack.c.l.b16 %v2430
        %v2576 = vunpack.c.l.b16 %v2431
        %v2577 = vunpack.c.l.b16 %v2432
        %v2578 = vunpack.c.l.b16 %v2433
        %v2579 = vunpack.c.l.b16 %v2434
        %v2580 = vunpack.c.l.b16 %v2435
        %v2581 = vunpack.c.l.b16 %v2436
        %v2582 = vpack.c.b16 %v2567, %v2566
        %v2583 = vpack.c.b16 %v2569, %v2568
        %v2584 = vpack.c.b16 %v2571, %v2570
        %v2585 = vpack.c.b16 %v2573, %v2572
        %v2586 = vpack.c.b16 %v2575, %v2574
        %v2587 = vpack.c.b16 %v2577, %v2576
        %v2588 = vpack.c.b16 %v2579, %v2578
        %v2589 = vpack.c.b16 %v2581, %v2580
        %2598 = vmatpush.bf16.msra.mxu0 %v2589
        %2599 = vmatpush.bf16.msra.mxu0 %v2588
        %2600 = vmatpush.bf16.msra.mxu0 %v2587
        %2601 = vmatpush.bf16.msra.mxu0 %v2586
        %2602 = vmatpush.bf16.msra.mxu0 %v2585
        %2603 = vmatpush.bf16.msra.mxu0 %v2584
        %2604 = vmatpush.bf16.msra.mxu0 %v2583
        %2605 = vmatpush.bf16.msra.mxu0 %v2582
        %2606 = vmatmul.bf16.gmra.mxu0 %v2548
        %v2607 = vpop.f32.mrf.mxu0
        %v2608 = vadd.f32 %v2539, %v2607
        %v2609 = vpop.f32.mrf.mxu0
        %v2610 = vadd.f32 %v2541, %v2609
        %2611 = vdwg.mxu0
        %s2612 = scalar_lea.vmem [#allocation12], 128
        %v2613 = vld [vmem:[%s2612] sm:$0xf]
        %v2614 = vld [vmem:[%s2612 + $0x4] sm:$0xf]
        %v2615 = vld [vmem:[%s2612 + $0x8] sm:$0xf]
        %v2616 = vld [vmem:[%s2612 + $0xc] sm:$0xf]
        %v2617 = vld [vmem:[%s2612 + $0x10] sm:$0xf]
        %v2618 = vld [vmem:[%s2612 + $0x14] sm:$0xf]
        %v2619 = vld [vmem:[%s2612 + $0x18] sm:$0xf]
        %v2620 = vld [vmem:[%s2612 + $0x1c] sm:$0xf]
        %v2621 = vld [vmem:[%s2612 + $0x20] sm:$0xf]
        %v2622 = vld [vmem:[%s2612 + $0x24] sm:$0xf]
        %v2623 = vld [vmem:[%s2612 + $0x28] sm:$0xf]
        %v2624 = vld [vmem:[%s2612 + $0x2c] sm:$0xf]
        %v2625 = vld [vmem:[%s2612 + $0x30] sm:$0xf]
        %v2626 = vld [vmem:[%s2612 + $0x34] sm:$0xf]
        %v2627 = vld [vmem:[%s2612 + $0x38] sm:$0xf]
        %v2628 = vld [vmem:[%s2612 + $0x3c] sm:$0xf]
        %v2629 = vpack.c.b16 %v2460, %v2459
        %v2647 = vunpack.c.l.b16 %v2613
        %v2648 = vunpack.c.l.b16 %v2614
        %v2649 = vunpack.c.l.b16 %v2615
        %v2650 = vunpack.c.l.b16 %v2616
        %v2651 = vunpack.c.l.b16 %v2617
        %v2652 = vunpack.c.l.b16 %v2618
        %v2653 = vunpack.c.l.b16 %v2619
        %v2654 = vunpack.c.l.b16 %v2620
        %v2655 = vunpack.c.l.b16 %v2621
        %v2656 = vunpack.c.l.b16 %v2622
        %v2657 = vunpack.c.l.b16 %v2623
        %v2658 = vunpack.c.l.b16 %v2624
        %v2659 = vunpack.c.l.b16 %v2625
        %v2660 = vunpack.c.l.b16 %v2626
        %v2661 = vunpack.c.l.b16 %v2627
        %v2662 = vunpack.c.l.b16 %v2628
        %v2663 = vpack.c.b16 %v2648, %v2647
        %v2664 = vpack.c.b16 %v2650, %v2649
        %v2665 = vpack.c.b16 %v2652, %v2651
        %v2666 = vpack.c.b16 %v2654, %v2653
        %v2667 = vpack.c.b16 %v2656, %v2655
        %v2668 = vpack.c.b16 %v2658, %v2657
        %v2669 = vpack.c.b16 %v2660, %v2659
        %v2670 = vpack.c.b16 %v2662, %v2661
        %2679 = vmatpush.bf16.msra.mxu0 %v2670
        %2680 = vmatpush.bf16.msra.mxu0 %v2669
        %2681 = vmatpush.bf16.msra.mxu0 %v2668
        %2682 = vmatpush.bf16.msra.mxu0 %v2667
        %2683 = vmatpush.bf16.msra.mxu0 %v2666
        %2684 = vmatpush.bf16.msra.mxu0 %v2665
        %2685 = vmatpush.bf16.msra.mxu0 %v2664
        %2686 = vmatpush.bf16.msra.mxu0 %v2663
        %2687 = vmatmul.bf16.gmra.mxu0 %v2629
        %v2688 = vpop.f32.mrf.mxu0
        %v2689 = vadd.f32 0.0, %v2688
        %v2690 = vpop.f32.mrf.mxu0
        %v2691 = vadd.f32 0.0, %v2690
        %2692 = vdwg.mxu0
        %v2693 = vadd.f32 %v2608, %v2689
        %v2694 = vadd.f32 %v2610, %v2691
        %v2695 = vld [vmem:[#allocation2 + $0x8] sm:$0xf]
        %v2696 = vld [vmem:[#allocation2 + $0xc] sm:$0xf]
        %v2697 = vld [vmem:[#allocation2 + $0x10] sm:$0x1]
        %s2698 = scalar_lea.vmem [#allocation12], 192
        %v2699 = vld [vmem:[%s2698] sm:$0xf]
        %v2700 = vld [vmem:[%s2698 + $0x4] sm:$0xf]
        %v2701 = vld [vmem:[%s2698 + $0x8] sm:$0xf]
        %v2702 = vld [vmem:[%s2698 + $0xc] sm:$0xf]
        %v2703 = vld [vmem:[%s2698 + $0x10] sm:$0xf]
        %v2704 = vld [vmem:[%s2698 + $0x14] sm:$0xf]
        %v2705 = vld [vmem:[%s2698 + $0x18] sm:$0xf]
        %v2706 = vld [vmem:[%s2698 + $0x1c] sm:$0xf]
        %v2707 = vld [vmem:[%s2698 + $0x20] sm:$0xf]
        %v2708 = vld [vmem:[%s2698 + $0x24] sm:$0xf]
        %v2709 = vld [vmem:[%s2698 + $0x28] sm:$0xf]
        %v2710 = vld [vmem:[%s2698 + $0x2c] sm:$0xf]
        %v2711 = vld [vmem:[%s2698 + $0x30] sm:$0xf]
        %v2712 = vld [vmem:[%s2698 + $0x34] sm:$0xf]
        %v2713 = vld [vmem:[%s2698 + $0x38] sm:$0xf]
        %v2714 = vld [vmem:[%s2698 + $0x3c] sm:$0xf]
        %v2718 = vunpack.c.l.b16 %v2695
        %v2719 = vunpack.c.l.b16 %v2696
        %v2720 = vunpack.c.l.b16 %v2697
        %v2721 = vpack.c.b16 %v2719, %v2718
        %v2722 = vpack.c.b16 %v2720, %v2720
        %v2724 = vshrl.u32 %v2721, 16
        %v2726 = vshll.u32 %v2721, 16
        %v2728 = vrot.slane %v2726, 1
        %v2729 = vor.u32 %v2724, %v2728
        %v2731 = vshll.u32 %v2722, 16
        %v2733 = vrot.slane %v2731, 1
        %v2734 = vsel %vm789, %v2729, %v2733
        %v2752 = vunpack.c.l.b16 %v2699
        %v2753 = vunpack.c.l.b16 %v2700
        %v2754 = vunpack.c.l.b16 %v2701
        %v2755 = vunpack.c.l.b16 %v2702
        %v2756 = vunpack.c.l.b16 %v2703
        %v2757 = vunpack.c.l.b16 %v2704
        %v2758 = vunpack.c.l.b16 %v2705
        %v2759 = vunpack.c.l.b16 %v2706
        %v2760 = vunpack.c.l.b16 %v2707
        %v2761 = vunpack.c.l.b16 %v2708
        %v2762 = vunpack.c.l.b16 %v2709
        %v2763 = vunpack.c.l.b16 %v2710
        %v2764 = vunpack.c.l.b16 %v2711
        %v2765 = vunpack.c.l.b16 %v2712
        %v2766 = vunpack.c.l.b16 %v2713
        %v2767 = vunpack.c.l.b16 %v2714
        %v2768 = vpack.c.b16 %v2753, %v2752
        %v2769 = vpack.c.b16 %v2755, %v2754
        %v2770 = vpack.c.b16 %v2757, %v2756
        %v2771 = vpack.c.b16 %v2759, %v2758
        %v2772 = vpack.c.b16 %v2761, %v2760
        %v2773 = vpack.c.b16 %v2763, %v2762
        %v2774 = vpack.c.b16 %v2765, %v2764
        %v2775 = vpack.c.b16 %v2767, %v2766
        %2784 = vmatpush.bf16.msra.mxu0 %v2775
        %2785 = vmatpush.bf16.msra.mxu0 %v2774
        %2786 = vmatpush.bf16.msra.mxu0 %v2773
        %2787 = vmatpush.bf16.msra.mxu0 %v2772
        %2788 = vmatpush.bf16.msra.mxu0 %v2771
        %2789 = vmatpush.bf16.msra.mxu0 %v2770
        %2790 = vmatpush.bf16.msra.mxu0 %v2769
        %2791 = vmatpush.bf16.msra.mxu0 %v2768
        %2792 = vmatmul.bf16.gmra.mxu0 %v2734
        %v2793 = vpop.f32.mrf.mxu0
        %v2794 = vadd.f32 0.0, %v2793
        %v2795 = vpop.f32.mrf.mxu0
        %v2796 = vadd.f32 0.0, %v2795
        %2797 = vdwg.mxu0
        %v2798 = vadd.f32 %v2693, %v2794
        %v2799 = vadd.f32 %v2694, %v2796
        %v2800 = vld [vmem:[#allocation2 + $0x8] sm:$0xe]
        %s2801 = scalar_lea.vmem [#allocation12], 256
        %v2802 = vld [vmem:[%s2801] sm:$0xf]
        %v2803 = vld [vmem:[%s2801 + $0x4] sm:$0xf]
        %v2804 = vld [vmem:[%s2801 + $0x8] sm:$0xf]
        %v2805 = vld [vmem:[%s2801 + $0xc] sm:$0xf]
        %v2806 = vld [vmem:[%s2801 + $0x10] sm:$0xf]
        %v2807 = vld [vmem:[%s2801 + $0x14] sm:$0xf]
        %v2808 = vld [vmem:[%s2801 + $0x18] sm:$0xf]
        %v2809 = vld [vmem:[%s2801 + $0x1c] sm:$0xf]
        %v2810 = vld [vmem:[%s2801 + $0x20] sm:$0xf]
        %v2811 = vld [vmem:[%s2801 + $0x24] sm:$0xf]
        %v2812 = vld [vmem:[%s2801 + $0x28] sm:$0xf]
        %v2813 = vld [vmem:[%s2801 + $0x2c] sm:$0xf]
        %v2814 = vld [vmem:[%s2801 + $0x30] sm:$0xf]
        %v2815 = vld [vmem:[%s2801 + $0x34] sm:$0xf]
        %v2816 = vld [vmem:[%s2801 + $0x38] sm:$0xf]
        %v2817 = vld [vmem:[%s2801 + $0x3c] sm:$0xf]
        %v2819 = vunpack.c.l.b16 %v2800
        %v2820 = vpack.c.b16 %v2719, %v2819
        %v2821 = vrot.slane %v2820, 1
        %v2822 = vrot.slane %v2722, 1
        %v2823 = vsel %vm888, %v2821, %v2822
        %v2841 = vunpack.c.l.b16 %v2802
        %v2842 = vunpack.c.l.b16 %v2803
        %v2843 = vunpack.c.l.b16 %v2804
        %v2844 = vunpack.c.l.b16 %v2805
        %v2845 = vunpack.c.l.b16 %v2806
        %v2846 = vunpack.c.l.b16 %v2807
        %v2847 = vunpack.c.l.b16 %v2808
        %v2848 = vunpack.c.l.b16 %v2809
        %v2849 = vunpack.c.l.b16 %v2810
        %v2850 = vunpack.c.l.b16 %v2811
        %v2851 = vunpack.c.l.b16 %v2812
        %v2852 = vunpack.c.l.b16 %v2813
        %v2853 = vunpack.c.l.b16 %v2814
        %v2854 = vunpack.c.l.b16 %v2815
        %v2855 = vunpack.c.l.b16 %v2816
        %v2856 = vunpack.c.l.b16 %v2817
        %v2857 = vpack.c.b16 %v2842, %v2841
        %v2858 = vpack.c.b16 %v2844, %v2843
        %v2859 = vpack.c.b16 %v2846, %v2845
        %v2860 = vpack.c.b16 %v2848, %v2847
        %v2861 = vpack.c.b16 %v2850, %v2849
        %v2862 = vpack.c.b16 %v2852, %v2851
        %v2863 = vpack.c.b16 %v2854, %v2853
        %v2864 = vpack.c.b16 %v2856, %v2855
        %2873 = vmatpush.bf16.msra.mxu0 %v2864
        %2874 = vmatpush.bf16.msra.mxu0 %v2863
        %2875 = vmatpush.bf16.msra.mxu0 %v2862
        %2876 = vmatpush.bf16.msra.mxu0 %v2861
        %2877 = vmatpush.bf16.msra.mxu0 %v2860
        %2878 = vmatpush.bf16.msra.mxu0 %v2859
        %2879 = vmatpush.bf16.msra.mxu0 %v2858
        %2880 = vmatpush.bf16.msra.mxu0 %v2857
        %2881 = vmatmul.bf16.gmra.mxu0 %v2823
        %v2882 = vpop.f32.mrf.mxu0
        %v2883 = vadd.f32 0.0, %v2882
        %v2884 = vpop.f32.mrf.mxu0
        %v2885 = vadd.f32 0.0, %v2884
        %2886 = vdwg.mxu0
        %v2887 = vadd.f32 %v2798, %v2883
        %v2888 = vadd.f32 %v2799, %v2885
        %v2889 = vld [vmem:[%s10] sm:$0x1]
        %v2891 = vperm.slane %v2889, 0
        %v2893 = vadd.f32 %v2887, %v2891
        %v2894 = vadd.f32 %v2888, %v2891
        %2895 = vst [vmem:[%s462] sm:$0xff] %v2893
        %2896 = vst [vmem:[%s462 + $0x8] sm:$0xff] %v2894
        %s2897 = sand.u32 %s272, 1
        %s2898 = scalar_lea.sflag [#allocation6], %s2897
        %s2899 = sand.u32 %s272, 1
        %s2900 = smul.addr %s2899, 16
        %s2901 = scalar_lea.vmem [#allocation13], %s2900
        // Predicated region
        $region85: #{tpu_custom_call.1} parent=63 // pred_check
          %p2902 = pneg %p282
        $region86: #{tpu_custom_call.1} parent=63 // pred_check_branch
          %2904 = sbr.rel (%p2902) target = $region88
        $region87: #{tpu_custom_call.1} parent=63 // pred_region
          %2906 = vsyncadd %s2898, 0
          %s2907 = smul.addr %s28, 2
          %s2908 = smul.addr %s2907, 8
          %s2909 = scalar_lea.hbm %s11, %s2908
          %s2910 = sshll.u32 %s2901, 4
          %s2911 = int_to_ptr.vmem [resolvable:$true] %s2910
          %s2912 = sshll.u32 %s2909, 4
          %s2913 = int_to_ptr.hbm [resolvable:$true] %s2912
          %2918 = dma.vmem_to_hbm [thread:$0]  %s2911, 256, %s2913, %s2898, 128, 128, 8
        $region88: #{tpu_custom_call.1} parent=63 // pred_fallthru
          _
      $region64: #{tpu_custom_call.1} parent=5 // pred_fallthru
        _
      %p2919 = scmp.le.s32.totalorder 2, %s23
      // Predicated region
      $region89: #{tpu_custom_call.1} parent=5 // pred_check
        %p2920 = pneg %p2919
      $region90: #{tpu_custom_call.1} parent=5 // pred_check_branch
        %2922 = sbr.rel (%p2920) target = $region92
      $region91: #{tpu_custom_call.1} parent=5 // pred_region
        %s2923 = ssub.s32 %s23, 2
        // Predicated region
        $region93: #{tpu_custom_call.1} parent=91 // pred_check
          %p2924 = pneg %p288
        $region94: #{tpu_custom_call.1} parent=91 // pred_check_branch
          %2926 = sbr.rel (%p2924) target = $region96
        $region95: #{tpu_custom_call.1} parent=91 // pred_region
          %s2927 = sand.u32 %s273, 1
          %s2928 = scalar_lea.sflag [#allocation6], %s2927
          %s2929 = sand.u32 %s273, 1
          %s2930 = smul.addr %s2929, 16
          %s2931 = scalar_lea.vmem [#allocation13], %s2930
          %2933 = dma.done %s2928, 256
        $region96: #{tpu_custom_call.1} parent=91 // pred_fallthru
          _
      $region92: #{tpu_custom_call.1} parent=5 // pred_fallthru
        _
    $region6: #{tpu_custom_call.1} parent=1 // loop_footer
      %s27 = sadd.s32 1, %s23
    $region7: #{tpu_custom_call.1} parent=1 // loop_footer_branch
      %22 = sbr.rel target = $region3
    $region8: #{tpu_custom_call.1} parent=1 // loop_exit
      _
    %2934 = vsyncpa [#allocation5], 1
    %s2935 = scalar_lea.sflag [#allocation5], 1
    %2936 = vsyncpa %s2935, 1
    %2937 = vsyncpa [#allocation8], 1
    %2938 = vsyncpa [#allocation11], 1
    %2939 = vsyncpa [#allocation6], 1
    %s2940 = scalar_lea.sflag [#allocation6], 1
    %2941 = vsyncpa %s2940, 1

// kernel: tpu_custom_call.1
$region0: #{tpu_custom_call.1}
  #allocation0 [shape = 'u32[]', space=smem, size = 0x4, offset = 0x4, fixed_abs, tag = 'smem constant byte address 0x4 - core index']
  #allocation1 [shape = 'u32[72,128]{1,0:T(1,128)}', space=vmem, size = 0x9000, scoped, tag = 'internal scratch']
  #allocation2 [shape = 'bf16[34,128]{1,0:T(8,128)(2,1)}', space=vmem, size = 0x2800, scoped, tag = 'scratch operand']
  #allocation3 [shape = 'bf16[34,128]{1,0:T(8,128)(2,1)}', space=vmem, size = 0x2800, scoped, tag = 'scratch operand']
  %s0 = inlined_call_operand.vmem [shape: f32[2,16,8], index: 0, kind: input, shape index: {}]
  %s1 = inlined_call_operand.hbm [shape: bf16[5,128,128], index: 1, kind: input, shape index: {}]
  %s2 = inlined_call_operand.vmem [shape: f32[1,128], index: 2, kind: input, shape index: {}]
  %s3 = inlined_call_operand.hbm [shape: bf16[5,128,128], index: 3, kind: input, shape index: {}]
  %s4 = inlined_call_operand.vmem [shape: f32[1,128], index: 4, kind: input, shape index: {}]
  %s5 = inlined_call_operand.hbm [shape: bf16[5,128,128], index: 5, kind: input, shape index: {}]
  %s6 = inlined_call_operand.vmem [shape: f32[1,128], index: 6, kind: input, shape index: {}]
  %s7 = inlined_call_operand.hbm [shape: bf16[5,128,128], index: 7, kind: input, shape index: {}]
  %s8 = inlined_call_operand.vmem [shape: f32[1,128], index: 8, kind: input, shape index: {}]
  %s9 = inlined_call_operand.hbm [shape: bf16[5,128,128], index: 9, kind: input, shape index: {}]
  %s10 = inlined_call_operand.vmem [shape: f32[1,128], index: 10, kind: input, shape index: {}]
  %s11 = inlined_call_operand.hbm [shape: f32[2,16,128], index: 11, kind: output, shape index: {}]
  %s12 = sld [smem:[#allocation0]]
  $region97: #{tpu_custom_call.1} parent=0
    _
  %s14 = ssub.s32 1, %s12
  %s15 = scalar_select 0, %s14, %s12
  $region1: #{tpu_custom_call.1} parent=0
    #allocation4 [shape = 'u8[163840]{0}', space=vmem, size = 0x28000, scoped, tag = 'input window, operand 1, single buffered']
    #allocation5 [shape = 's32[2]{0}', space=sflag, size = 0x8, scoped, tag = 'scoped memory for tpu_custom_call.1']
    #allocation6 [shape = 's32[2]{0}', space=sflag, size = 0x8, scoped, tag = 'scoped memory for tpu_custom_call.1']
    #allocation7 [shape = 'u8[163840]{0}', space=vmem, size = 0x28000, scoped, tag = 'input window, operand 3, single buffered']
    #allocation8 [shape = 's32[1]{0}', space=sflag, size = 0x4, scoped, tag = 'scoped memory for tpu_custom_call.1']
    #allocation9 [shape = 'u8[163840]{0}', space=vmem, size = 0x28000, scoped, tag = 'input window, operand 5, single buffered']
    #allocation10 [shape = 'u8[163840]{0}', space=vmem, size = 0x28000, scoped, tag = 'input window, operand 7, single buffered']
    #allocation11 [shape = 's32[1]{0}', space=sflag, size = 0x4, scoped, tag = 'scoped memory for tpu_custom_call.1']
    #allocation12 [shape = 'u8[163840]{0}', space=vmem, size = 0x28000, scoped, tag = 'input window, operand 9, single buffered']
    #allocation13 [shape = 'u8[16384]{0}', space=vmem, size = 0x4000, scoped, tag = 'output window, operand 0']
    %16 = vsyncpa [#allocation5], 0
    %17 = vsyncpa [#allocation8], 0
    %18 = vsyncpa [#allocation11], 0
    %19 = vsyncpa [#allocation6], 0
    %s20 = scalar_lea.sflag [#allocation6], 1
    %21 = vsyncpa %s20, 0
    loop: start=0, step=1, limit=4
    $region2: #{tpu_custom_call.1} parent=1 // loop_pre_header
      _
    $region3: #{tpu_custom_call.1} parent=1 // loop_header
      %s23 = sphi 0, %s27
      %p24 = scmp.ge.s32.totalorder %s23, 4
      %s33 = sphi 0, %s35
      %s36 = sphi 0, %s33
      %s37 = sphi 0, %s36
      %s53 = sphi 0, %s37
      %s57 = sphi 0, %s57
      %s59 = sphi 0, %s57
      %s60 = sphi 0, %s59
      %s74 = sphi 0, %s60
      %s78 = sphi 0, %s78
      %s80 = sphi 0, %s78
      %s81 = sphi 0, %s80
      %s95 = sphi 0, %s81
      %s99 = sphi 0, %s99
      %s101 = sphi 0, %s99
      %s102 = sphi 0, %s101
      %s116 = sphi 0, %s102
      %s120 = sphi 0, %s120
      %s122 = sphi 0, %s120
      %s123 = sphi 0, %s122
      %s137 = sphi 0, %s123
      %s141 = sphi 0, %s141
      %s143 = sphi 0, %s141
      %s144 = sphi 0, %s143
      %s158 = sphi 0, %s144
      %s162 = sphi 0, %s162
      %s164 = sphi 0, %s162
      %s165 = sphi 0, %s164
      %s179 = sphi 0, %s165
      %s183 = sphi 0, %s183
      %s185 = sphi 0, %s183
      %s186 = sphi 0, %s185
      %s200 = sphi 0, %s186
      %s204 = sphi 0, %s204
      %s206 = sphi 0, %s204
      %s207 = sphi 0, %s206
      %s221 = sphi 0, %s207
      %s225 = sphi 0, %s225
      %s227 = sphi 0, %s225
      %s228 = sphi 0, %s227
      %s242 = sphi 0, %s228
      %s246 = sphi 0, %s246
      %s248 = sphi 0, %s246
      %s249 = sphi 0, %s248
      %s263 = sphi 0, %s249
      %s269 = sphi 0, %s271
      %s272 = sphi 0, %s269
      %s273 = sphi 0, %s272
      %s289 = sphi 0, %s273
    $region4: #{tpu_custom_call.1} parent=1 // loop_header_branch
      %26 = sbr.rel (%p24) target = $region8
    $region5: #{tpu_custom_call.1} parent=1 // loop_body
      %s28 = ssub.s32 %s23, 1
      %s29 = ssub.s32 %s23, 2
      %s30 = sadd.s32 %s23, 1
      %s31 = ssub.s32 %s23, %s30
      %p32 = scmp.eq.s32.totalorder %s31, 0
      %s34 = sadd.s32 %s33, 1
      %s35 = scalar_select %p32, %s33, %s34
      %p38 = pneg %p32
      %p39 = scmp.eq.s32.totalorder %s23, 1
      %p40 = por %p38, %p39
      %p41 = scmp.ne.s32.totalorder %s33, %s36
      %p42 = scmp.eq.s32.totalorder %s23, 0
      %p43 = por %p41, %p42
      %p44 = scmp.ne.s32.totalorder %s33, %s36
      %p45 = scmp.eq.s32.totalorder %s28, 1
      %p46 = por %p44, %p45
      %p47 = scmp.ne.s32.totalorder %s36, %s37
      %p48 = scmp.eq.s32.totalorder %s28, 0
      %p49 = por %p47, %p48
      %p50 = scmp.ne.s32.totalorder %s36, %s37
      %p51 = scmp.eq.s32.totalorder %s29, 1
      %p52 = por %p50, %p51
      %p54 = scmp.ne.s32.totalorder %s37, %s53
      %p55 = scmp.eq.s32.totalorder %s29, 0
      %p56 = por %p54, %p55
      %s58 = sadd.s32 %s57, 1
      %p61 = scmp.eq.s32.totalorder %s23, 1
      %p62 = scmp.ne.s32.totalorder %s57, %s59
      %p63 = scmp.eq.s32.totalorder %s23, 0
      %p64 = por %p62, %p63
      %p65 = scmp.ne.s32.totalorder %s57, %s59
      %p66 = scmp.eq.s32.totalorder %s28, 1
      %p67 = por %p65, %p66
      %p68 = scmp.ne.s32.totalorder %s59, %s60
      %p69 = scmp.eq.s32.totalorder %s28, 0
      %p70 = por %p68, %p69
      %p71 = scmp.ne.s32.totalorder %s59, %s60
      %p72 = scmp.eq.s32.totalorder %s29, 1
      %p73 = por %p71, %p72
      %p75 = scmp.ne.s32.totalorder %s60, %s74
      %p76 = scmp.eq.s32.totalorder %s29, 0
      %p77 = por %p75, %p76
      %s79 = sadd.s32 %s78, 1
      %p82 = scmp.eq.s32.totalorder %s23, 1
      %p83 = scmp.ne.s32.totalorder %s78, %s80
      %p84 = scmp.eq.s32.totalorder %s23, 0
      %p85 = por %p83, %p84
      %p86 = scmp.ne.s32.totalorder %s78, %s80
      %p87 = scmp.eq.s32.totalorder %s28, 1
      %p88 = por %p86, %p87
      %p89 = scmp.ne.s32.totalorder %s80, %s81
      %p90 = scmp.eq.s32.totalorder %s28, 0
      %p91 = por %p89, %p90
      %p92 = scmp.ne.s32.totalorder %s80, %s81
      %p93 = scmp.eq.s32.totalorder %s29, 1
      %p94 = por %p92, %p93
      %p96 = scmp.ne.s32.totalorder %s81, %s95
      %p97 = scmp.eq.s32.totalorder %s29, 0
      %p98 = por %p96, %p97
      %s100 = sadd.s32 %s99, 1
      %p103 = scmp.eq.s32.totalorder %s23, 1
      %p104 = scmp.ne.s32.totalorder %s99, %s101
      %p105 = scmp.eq.s32.totalorder %s23, 0
      %p106 = por %p104, %p105
      %p107 = scmp.ne.s32.totalorder %s99, %s101
      %p108 = scmp.eq.s32.totalorder %s28, 1
      %p109 = por %p107, %p108
      %p110 = scmp.ne.s32.totalorder %s101, %s102
      %p111 = scmp.eq.s32.totalorder %s28, 0
      %p112 = por %p110, %p111
      %p113 = scmp.ne.s32.totalorder %s101, %s102
      %p114 = scmp.eq.s32.totalorder %s29, 1
      %p115 = por %p113, %p114
      %p117 = scmp.ne.s32.totalorder %s102, %s116
      %p118 = scmp.eq.s32.totalorder %s29, 0
      %p119 = por %p117, %p118
      %s121 = sadd.s32 %s120, 1
      %p124 = scmp.eq.s32.totalorder %s23, 1
      %p125 = scmp.ne.s32.totalorder %s120, %s122
      %p126 = scmp.eq.s32.totalorder %s23, 0
      %p127 = por %p125, %p126
      %p128 = scmp.ne.s32.totalorder %s120, %s122
      %p129 = scmp.eq.s32.totalorder %s28, 1
      %p130 = por %p128, %p129
      %p131 = scmp.ne.s32.totalorder %s122, %s123
      %p132 = scmp.eq.s32.totalorder %s28, 0
      %p133 = por %p131, %p132
      %p134 = scmp.ne.s32.totalorder %s122, %s123
      %p135 = scmp.eq.s32.totalorder %s29, 1
      %p136 = por %p134, %p135
      %p138 = scmp.ne.s32.totalorder %s123, %s137
      %p139 = scmp.eq.s32.totalorder %s29, 0
      %p140 = por %p138, %p139
      %s142 = sadd.s32 %s141, 1
      %p145 = scmp.eq.s32.totalorder %s23, 1
      %p146 = scmp.ne.s32.totalorder %s141, %s143
      %p147 = scmp.eq.s32.totalorder %s23, 0
      %p148 = por %p146, %p147
      %p149 = scmp.ne.s32.totalorder %s141, %s143
      %p150 = scmp.eq.s32.totalorder %s28, 1
      %p151 = por %p149, %p150
      %p152 = scmp.ne.s32.totalorder %s143, %s144
      %p153 = scmp.eq.s32.totalorder %s28, 0
      %p154 = por %p152, %p153
      %p155 = scmp.ne.s32.totalorder %s143, %s144
      %p156 = scmp.eq.s32.totalorder %s29, 1
      %p157 = por %p155, %p156
      %p159 = scmp.ne.s32.totalorder %s144, %s158
      %p160 = scmp.eq.s32.totalorder %s29, 0
      %p161 = por %p159, %p160
      %s163 = sadd.s32 %s162, 1
      %p166 = scmp.eq.s32.totalorder %s23, 1
      %p167 = scmp.ne.s32.totalorder %s162, %s164
      %p168 = scmp.eq.s32.totalorder %s23, 0
      %p169 = por %p167, %p168
      %p170 = scmp.ne.s32.totalorder %s162, %s164
      %p171 = scmp.eq.s32.totalorder %s28, 1
      %p172 = por %p170, %p171
      %p173 = scmp.ne.s32.totalorder %s164, %s165
      %p174 = scmp.eq.s32.totalorder %s28, 0
      %p175 = por %p173, %p174
      %p176 = scmp.ne.s32.totalorder %s164, %s165
      %p177 = scmp.eq.s32.totalorder %s29, 1
      %p178 = por %p176, %p177
      %p180 = scmp.ne.s32.totalorder %s165, %s179
      %p181 = scmp.eq.s32.totalorder %s29, 0
      %p182 = por %p180, %p181
      %s184 = sadd.s32 %s183, 1
      %p187 = scmp.eq.s32.totalorder %s23, 1
      %p188 = scmp.ne.s32.totalorder %s183, %s185
      %p189 = scmp.eq.s32.totalorder %s23, 0
      %p190 = por %p188, %p189
      %p191 = scmp.ne.s32.totalorder %s183, %s185
      %p192 = scmp.eq.s32.totalorder %s28, 1
      %p193 = por %p191, %p192
      %p194 = scmp.ne.s32.totalorder %s185, %s186
      %p195 = scmp.eq.s32.totalorder %s28, 0
      %p196 = por %p194, %p195
      %p197 = scmp.ne.s32.totalorder %s185, %s186
      %p198 = scmp.eq.s32.totalorder %s29, 1
      %p199 = por %p197, %p198
      %p201 = scmp.ne.s32.totalorder %s186, %s200
      %p202 = scmp.eq.s32.totalorder %s29, 0
      %p203 = por %p201, %p202
      %s205 = sadd.s32 %s204, 1
      %p208 = scmp.eq.s32.totalorder %s23, 1
      %p209 = scmp.ne.s32.totalorder %s204, %s206
      %p210 = scmp.eq.s32.totalorder %s23, 0
      %p211 = por %p209, %p210
      %p212 = scmp.ne.s32.totalorder %s204, %s206
      %p213 = scmp.eq.s32.totalorder %s28, 1
      %p214 = por %p212, %p213
      %p215 = scmp.ne.s32.totalorder %s206, %s207
      %p216 = scmp.eq.s32.totalorder %s28, 0
      %p217 = por %p215, %p216
      %p218 = scmp.ne.s32.totalorder %s206, %s207
      %p219 = scmp.eq.s32.totalorder %s29, 1
      %p220 = por %p218, %p219
      %p222 = scmp.ne.s32.totalorder %s207, %s221
      %p223 = scmp.eq.s32.totalorder %s29, 0
      %p224 = por %p222, %p223
      %s226 = sadd.s32 %s225, 1
      %p229 = scmp.eq.s32.totalorder %s23, 1
      %p230 = scmp.ne.s32.totalorder %s225, %s227
      %p231 = scmp.eq.s32.totalorder %s23, 0
      %p232 = por %p230, %p231
      %p233 = scmp.ne.s32.totalorder %s225, %s227
      %p234 = scmp.eq.s32.totalorder %s28, 1
      %p235 = por %p233, %p234
      %p236 = scmp.ne.s32.totalorder %s227, %s228
      %p237 = scmp.eq.s32.totalorder %s28, 0
      %p238 = por %p236, %p237
      %p239 = scmp.ne.s32.totalorder %s227, %s228
      %p240 = scmp.eq.s32.totalorder %s29, 1
      %p241 = por %p239, %p240
      %p243 = scmp.ne.s32.totalorder %s228, %s242
      %p244 = scmp.eq.s32.totalorder %s29, 0
      %p245 = por %p243, %p244
      %s247 = sadd.s32 %s246, 1
      %p250 = scmp.eq.s32.totalorder %s23, 1
      %p251 = scmp.ne.s32.totalorder %s246, %s248
      %p252 = scmp.eq.s32.totalorder %s23, 0
      %p253 = por %p251, %p252
      %p254 = scmp.ne.s32.totalorder %s246, %s248
      %p255 = scmp.eq.s32.totalorder %s28, 1
      %p256 = por %p254, %p255
      %p257 = scmp.ne.s32.totalorder %s248, %s249
      %p258 = scmp.eq.s32.totalorder %s28, 0
      %p259 = por %p257, %p258
      %p260 = scmp.ne.s32.totalorder %s248, %s249
      %p261 = scmp.eq.s32.totalorder %s29, 1
      %p262 = por %p260, %p261
      %p264 = scmp.ne.s32.totalorder %s249, %s263
      %p265 = scmp.eq.s32.totalorder %s29, 0
      %p266 = por %p264, %p265
      %s267 = ssub.s32 %s23, %s30
      %p268 = scmp.eq.s32.totalorder %s267, 0
      %s270 = sadd.s32 %s269, 1
      %s271 = scalar_select %p268, %s269, %s270
      %p274 = pneg %p268
      %p275 = scmp.eq.s32.totalorder %s23, 1
      %p276 = por %p274, %p275
      %p277 = scmp.ne.s32.totalorder %s269, %s272
      %p278 = scmp.eq.s32.totalorder %s23, 0
      %p279 = por %p277, %p278
      %p280 = scmp.ne.s32.totalorder %s269, %s272
      %p281 = scmp.eq.s32.totalorder %s28, 1
      %p282 = por %p280, %p281
      %p283 = scmp.ne.s32.totalorder %s272, %s273
      %p284 = scmp.eq.s32.totalorder %s28, 0
      %p285 = por %p283, %p284
      %p286 = scmp.ne.s32.totalorder %s272, %s273
      %p287 = scmp.eq.s32.totalorder %s29, 1
      %p288 = por %p286, %p287
      %p290 = scmp.ne.s32.totalorder %s273, %s289
      %p291 = scmp.eq.s32.totalorder %s29, 0
      %p292 = por %p290, %p291
      %p293 = scmp.le.s32.totalorder 1, %s23
      %p294 = scmp.lt.s32.totalorder %s23, 3
      %p295 = pnand %p293, %p294
      %p296 = pneg %p295
      // Predicated region
      $region9: #{tpu_custom_call.1} parent=5 // pred_check
        _
      $region10: #{tpu_custom_call.1} parent=5 // pred_check_branch
        %298 = sbr.rel (%p295) target = $region12
      $region11: #{tpu_custom_call.1} parent=5 // pred_region
        %s299 = ssub.s32 %s23, 1
        // Predicated region
        $region13: #{tpu_custom_call.1} parent=11 // pred_check
          %p300 = pneg %p70
        $region14: #{tpu_custom_call.1} parent=11 // pred_check_branch
          %302 = sbr.rel (%p300) target = $region16
        $region15: #{tpu_custom_call.1} parent=11 // pred_region
          %304 = vsyncadd [#allocation5], 0
          %s305 = sshll.u32 %s1, 4
          %s306 = int_to_ptr.hbm [resolvable:$true] %s305
          %s307 = sshll.u32 [#allocation4], 4
          %s308 = int_to_ptr.vmem [resolvable:$true] %s307
          %313 = dma.hbm_to_vmem [thread:$0]  %s306, 5120, %s308, [#allocation5], 64, 64, 4
        $region16: #{tpu_custom_call.1} parent=11 // pred_fallthru
          _
        // Predicated region
        $region17: #{tpu_custom_call.1} parent=11 // pred_check
          %p314 = pneg %p91
        $region18: #{tpu_custom_call.1} parent=11 // pred_check_branch
          %316 = sbr.rel (%p314) target = $region20
        $region19: #{tpu_custom_call.1} parent=11 // pred_region
          _
        $region20: #{tpu_custom_call.1} parent=11 // pred_fallthru
          _
        // Predicated region
        $region21: #{tpu_custom_call.1} parent=11 // pred_check
          %p317 = pneg %p112
        $region22: #{tpu_custom_call.1} parent=11 // pred_check_branch
          %319 = sbr.rel (%p317) target = $region24
        $region23: #{tpu_custom_call.1} parent=11 // pred_region
          %321 = vsyncadd [#allocation8], 0
          %s322 = sshll.u32 %s3, 4
          %s323 = int_to_ptr.hbm [resolvable:$true] %s322
          %s324 = sshll.u32 [#allocation7], 4
          %s325 = int_to_ptr.vmem [resolvable:$true] %s324
          %330 = dma.hbm_to_vmem [thread:$0]  %s323, 5120, %s325, [#allocation8], 64, 64, 4
        $region24: #{tpu_custom_call.1} parent=11 // pred_fallthru
          _
        // Predicated region
        $region25: #{tpu_custom_call.1} parent=11 // pred_check
          %p331 = pneg %p133
        $region26: #{tpu_custom_call.1} parent=11 // pred_check_branch
          %333 = sbr.rel (%p331) target = $region28
        $region27: #{tpu_custom_call.1} parent=11 // pred_region
          _
        $region28: #{tpu_custom_call.1} parent=11 // pred_fallthru
          _
        // Predicated region
        $region29: #{tpu_custom_call.1} parent=11 // pred_check
          %p334 = pneg %p154
        $region30: #{tpu_custom_call.1} parent=11 // pred_check_branch
          %336 = sbr.rel (%p334) target = $region32
        $region31: #{tpu_custom_call.1} parent=11 // pred_region
          %338 = vsyncadd [#allocation8], 0
          %s339 = sshll.u32 %s5, 4
          %s340 = int_to_ptr.hbm [resolvable:$true] %s339
          %s341 = sshll.u32 [#allocation9], 4
          %s342 = int_to_ptr.vmem [resolvable:$true] %s341
          %347 = dma.hbm_to_vmem [thread:$0]  %s340, 5120, %s342, [#allocation8], 64, 64, 4
        $region32: #{tpu_custom_call.1} parent=11 // pred_fallthru
          _
        // Predicated region
        $region33: #{tpu_custom_call.1} parent=11 // pred_check
          %p348 = pneg %p175
        $region34: #{tpu_custom_call.1} parent=11 // pred_check_branch
          %350 = sbr.rel (%p348) target = $region36
        $region35: #{tpu_custom_call.1} parent=11 // pred_region
          _
        $region36: #{tpu_custom_call.1} parent=11 // pred_fallthru
          _
        // Predicated region
        $region37: #{tpu_custom_call.1} parent=11 // pred_check
          %p351 = pneg %p196
        $region38: #{tpu_custom_call.1} parent=11 // pred_check_branch
          %353 = sbr.rel (%p351) target = $region40
        $region39: #{tpu_custom_call.1} parent=11 // pred_region
          %355 = vsyncadd [#allocation11], 0
          %s356 = sshll.u32 %s7, 4
          %s357 = int_to_ptr.hbm [resolvable:$true] %s356
          %s358 = sshll.u32 [#allocation10], 4
          %s359 = int_to_ptr.vmem [resolvable:$true] %s358
          %364 = dma.hbm_to_vmem [thread:$0]  %s357, 5120, %s359, [#allocation11], 64, 64, 4
        $region40: #{tpu_custom_call.1} parent=11 // pred_fallthru
          _
        // Predicated region
        $region41: #{tpu_custom_call.1} parent=11 // pred_check
          %p365 = pneg %p217
        $region42: #{tpu_custom_call.1} parent=11 // pred_check_branch
          %367 = sbr.rel (%p365) target = $region44
        $region43: #{tpu_custom_call.1} parent=11 // pred_region
          _
        $region44: #{tpu_custom_call.1} parent=11 // pred_fallthru
          _
        // Predicated region
        $region45: #{tpu_custom_call.1} parent=11 // pred_check
          %p368 = pneg %p238
        $region46: #{tpu_custom_call.1} parent=11 // pred_check_branch
          %370 = sbr.rel (%p368) target = $region48
        $region47: #{tpu_custom_call.1} parent=11 // pred_region
          %372 = vsyncadd [#allocation11], 0
          %s373 = sshll.u32 %s9, 4
          %s374 = int_to_ptr.hbm [resolvable:$true] %s373
          %s375 = sshll.u32 [#allocation12], 4
          %s376 = int_to_ptr.vmem [resolvable:$true] %s375
          %381 = dma.hbm_to_vmem [thread:$0]  %s374, 5120, %s376, [#allocation11], 64, 64, 4
        $region48: #{tpu_custom_call.1} parent=11 // pred_fallthru
          _
        // Predicated region
        $region49: #{tpu_custom_call.1} parent=11 // pred_check
          %p382 = pneg %p259
        $region50: #{tpu_custom_call.1} parent=11 // pred_check_branch
          %384 = sbr.rel (%p382) target = $region52
        $region51: #{tpu_custom_call.1} parent=11 // pred_region
          _
        $region52: #{tpu_custom_call.1} parent=11 // pred_fallthru
          _
      $region12: #{tpu_custom_call.1} parent=5 // pred_fallthru
        _
      %p385 = scmp.lt.s32.totalorder %s23, 2
      // Predicated region
      $region53: #{tpu_custom_call.1} parent=5 // pred_check
        %p386 = pneg %p385
      $region54: #{tpu_custom_call.1} parent=5 // pred_check_branch
        %388 = sbr.rel (%p386) target = $region56
      $region55: #{tpu_custom_call.1} parent=5 // pred_region
        // Predicated region
        $region57: #{tpu_custom_call.1} parent=55 // pred_check
          %p389 = pneg %p43
        $region58: #{tpu_custom_call.1} parent=55 // pred_check_branch
          %391 = sbr.rel (%p389) target = $region60
        $region59: #{tpu_custom_call.1} parent=55 // pred_region
          %p392 = scmp.lt.s32.totalorder %s23, 1
          %s393 = scalar_select %p392, %s23, 1
          %s394 = smul.addr %s393, 2
          %s395 = smul.addr %s394, 8
          %s396 = scalar_lea.vmem %s0, %s395
        $region60: #{tpu_custom_call.1} parent=55 // pred_fallthru
          _
      $region56: #{tpu_custom_call.1} parent=5 // pred_fallthru
        _
      %p397 = scmp.le.s32.totalorder 1, %s23
      %p398 = scmp.lt.s32.totalorder %s23, 3
      %p399 = pnand %p397, %p398
      %p400 = pneg %p399
      // Predicated region
      $region61: #{tpu_custom_call.1} parent=5 // pred_check
        _
      $region62: #{tpu_custom_call.1} parent=5 // pred_check_branch
        %402 = sbr.rel (%p399) target = $region64
      $region63: #{tpu_custom_call.1} parent=5 // pred_region
        %s403 = ssub.s32 %s23, 1
        // Predicated region
        $region65: #{tpu_custom_call.1} parent=63 // pred_check
          %p404 = pneg %p70
        $region66: #{tpu_custom_call.1} parent=63 // pred_check_branch
          %406 = sbr.rel (%p404) target = $region68
        $region67: #{tpu_custom_call.1} parent=63 // pred_region
          %408 = dma.done [#allocation5], 5120
        $region68: #{tpu_custom_call.1} parent=63 // pred_fallthru
          _
        // Predicated region
        $region69: #{tpu_custom_call.1} parent=63 // pred_check
          %p409 = pneg %p112
        $region70: #{tpu_custom_call.1} parent=63 // pred_check_branch
          %411 = sbr.rel (%p409) target = $region72
        $region71: #{tpu_custom_call.1} parent=63 // pred_region
          %413 = dma.done [#allocation8], 5120
        $region72: #{tpu_custom_call.1} parent=63 // pred_fallthru
          _
        // Predicated region
        $region73: #{tpu_custom_call.1} parent=63 // pred_check
          %p414 = pneg %p154
        $region74: #{tpu_custom_call.1} parent=63 // pred_check_branch
          %416 = sbr.rel (%p414) target = $region76
        $region75: #{tpu_custom_call.1} parent=63 // pred_region
          %418 = dma.done [#allocation8], 5120
        $region76: #{tpu_custom_call.1} parent=63 // pred_fallthru
          _
        // Predicated region
        $region77: #{tpu_custom_call.1} parent=63 // pred_check
          %p419 = pneg %p196
        $region78: #{tpu_custom_call.1} parent=63 // pred_check_branch
          %421 = sbr.rel (%p419) target = $region80
        $region79: #{tpu_custom_call.1} parent=63 // pred_region
          %423 = dma.done [#allocation11], 5120
        $region80: #{tpu_custom_call.1} parent=63 // pred_fallthru
          _
        // Predicated region
        $region81: #{tpu_custom_call.1} parent=63 // pred_check
          %p424 = pneg %p238
        $region82: #{tpu_custom_call.1} parent=63 // pred_check_branch
          %426 = sbr.rel (%p424) target = $region84
        $region83: #{tpu_custom_call.1} parent=63 // pred_region
          %428 = dma.done [#allocation11], 5120
        $region84: #{tpu_custom_call.1} parent=63 // pred_fallthru
          _
        %p429 = scmp.lt.s32.totalorder %s28, 1
        %s430 = scalar_select %p429, %s28, 1
        %s431 = smul.addr %s430, 2
        %s432 = smul.addr %s431, 8
        %s433 = scalar_lea.vmem %s0, %s432
        %p434 = pneg %p49
        %p435 = pneg %p46
        %p436 = pneg %p70
        %p437 = pneg %p67
        %p438 = pneg %p91
        %p439 = pneg %p88
        %p440 = pneg %p112
        %p441 = pneg %p109
        %p442 = pneg %p133
        %p443 = pneg %p130
        %p444 = pneg %p154
        %p445 = pneg %p151
        %p446 = pneg %p175
        %p447 = pneg %p172
        %p448 = pneg %p196
        %p449 = pneg %p193
        %p450 = pneg %p217
        %p451 = pneg %p214
        %p452 = pneg %p238
        %p453 = pneg %p235
        %p454 = pneg %p259
        %p455 = pneg %p256
        %p456 = pneg %p285
        %p457 = pneg %p282
        %s458 = sand.u32 %s272, 1
        %s459 = scalar_lea.sflag [#allocation6], %s458
        %s460 = sand.u32 %s272, 1
        %s461 = smul.addr %s460, 16
        %s462 = scalar_lea.vmem [#allocation13], %s461
        %p463 = scmp.lt.s32.totalorder %s28, 1
        %s464 = scalar_select %p463, %s28, 1
        %s465 = smul.addr %s464, 2
        %s466 = smul.addr %s465, 8
        %s467 = scalar_lea.vmem %s0, %s466
        %469 = vst [vmem:[#allocation2 + $0x4] sm:$0x8] 0
        %470 = vst [vmem:[#allocation2 + $0x10] sm:$0x1] 0
        %471 = vst [vmem:[#allocation3 + $0x4] sm:$0x8] 0
        %472 = vst [vmem:[#allocation3 + $0x10] sm:$0x1] 0
        %473 = vst [vmem:[#allocation2 + $0x8] sm:$0xf] 0
        %474 = vst [vmem:[#allocation2 + $0xc] sm:$0xf] 0
        %v475 = vld [vmem:[%s467] sm:$0xff]
        %v476 = vld [vmem:[%s467 + $0x8] sm:$0xff]
        %v477 = vpack.c.bf16 %v475, %v475
        %v478 = vpack.c.bf16 %v476, %v476
        %vm479 = vcmask 60416
        %480 = vst.msk [vmem:[#allocation2 + $0x8] sm:$0xf] %vm479, %v477
        %481 = vst.msk [vmem:[#allocation2 + $0xc] sm:$0xf] %vm479, %v478
        %v482 = vld [vmem:[#allocation2 + $0x4] sm:$0x8]
        %v483 = vld [vmem:[#allocation2 + $0x8] sm:$0xf]
        %v484 = vld [vmem:[#allocation2 + $0xc] sm:$0x7]
        %v485 = vld [vmem:[#allocation4] sm:$0xf]
        %v486 = vld [vmem:[#allocation4 + $0x4] sm:$0xf]
        %v487 = vld [vmem:[#allocation4 + $0x8] sm:$0xf]
        %v488 = vld [vmem:[#allocation4 + $0xc] sm:$0xf]
        %v489 = vld [vmem:[#allocation4 + $0x10] sm:$0xf]
        %v490 = vld [vmem:[#allocation4 + $0x14] sm:$0xf]
        %v491 = vld [vmem:[#allocation4 + $0x18] sm:$0xf]
        %v492 = vld [vmem:[#allocation4 + $0x1c] sm:$0xf]
        %v493 = vld [vmem:[#allocation4 + $0x20] sm:$0xf]
        %v494 = vld [vmem:[#allocation4 + $0x24] sm:$0xf]
        %v495 = vld [vmem:[#allocation4 + $0x28] sm:$0xf]
        %v496 = vld [vmem:[#allocation4 + $0x2c] sm:$0xf]
        %v497 = vld [vmem:[#allocation4 + $0x30] sm:$0xf]
        %v498 = vld [vmem:[#allocation4 + $0x34] sm:$0xf]
        %v499 = vld [vmem:[#allocation4 + $0x38] sm:$0xf]
        %v500 = vld [vmem:[#allocation4 + $0x3c] sm:$0xf]
        %v501 = vld [vmem:[#allocation2 + $0xc] sm:$0xf]
        %s502 = scalar_lea.vmem [#allocation4], 64
        %v503 = vld [vmem:[%s502] sm:$0xf]
        %v504 = vld [vmem:[%s502 + $0x4] sm:$0xf]
        %v505 = vld [vmem:[%s502 + $0x8] sm:$0xf]
        %v506 = vld [vmem:[%s502 + $0xc] sm:$0xf]
        %v507 = vld [vmem:[%s502 + $0x10] sm:$0xf]
        %v508 = vld [vmem:[%s502 + $0x14] sm:$0xf]
        %v509 = vld [vmem:[%s502 + $0x18] sm:$0xf]
        %v510 = vld [vmem:[%s502 + $0x1c] sm:$0xf]
        %v511 = vld [vmem:[%s502 + $0x20] sm:$0xf]
        %v512 = vld [vmem:[%s502 + $0x24] sm:$0xf]
        %v513 = vld [vmem:[%s502 + $0x28] sm:$0xf]
        %v514 = vld [vmem:[%s502 + $0x2c] sm:$0xf]
        %v515 = vld [vmem:[%s502 + $0x30] sm:$0xf]
        %v516 = vld [vmem:[%s502 + $0x34] sm:$0xf]
        %v517 = vld [vmem:[%s502 + $0x38] sm:$0xf]
        %v518 = vld [vmem:[%s502 + $0x3c] sm:$0xf]
        %v522 = vunpack.c.l.b16 %v482
        %v523 = vunpack.c.l.b16 %v483
        %v524 = vunpack.c.l.b16 %v501
        %v525 = vpack.c.b16 %v523, %v522
        %v526 = vpack.c.b16 %v524, %v524
        %vm527 = vsmask.f32 4352
        %v529 = vshrl.u32 %v525, 16
        %v531 = vrot.slane %v529, 3
        %v532 = vshll.u32 %v525, 16
        %v534 = vrot.slane %v532, 4
        %v535 = vor.u32 %v531, %v534
        %v537 = vshrl.u32 %v526, 16
        %v539 = vrot.slane %v537, 3
        %v540 = vshll.u32 %v526, 16
        %v542 = vrot.slane %v540, 4
        %v543 = vor.u32 %v539, %v542
        %v544 = vsel %vm527, %v535, %v543
        %v562 = vunpack.c.l.b16 %v503
        %v563 = vunpack.c.l.b16 %v504
        %v564 = vunpack.c.l.b16 %v505
        %v565 = vunpack.c.l.b16 %v506
        %v566 = vunpack.c.l.b16 %v507
        %v567 = vunpack.c.l.b16 %v508
        %v568 = vunpack.c.l.b16 %v509
        %v569 = vunpack.c.l.b16 %v510
        %v570 = vunpack.c.l.b16 %v511
        %v571 = vunpack.c.l.b16 %v512
        %v572 = vunpack.c.l.b16 %v513
        %v573 = vunpack.c.l.b16 %v514
        %v574 = vunpack.c.l.b16 %v515
        %v575 = vunpack.c.l.b16 %v516
        %v576 = vunpack.c.l.b16 %v517
        %v577 = vunpack.c.l.b16 %v518
        %v578 = vpack.c.b16 %v563, %v562
        %v579 = vpack.c.b16 %v565, %v564
        %v580 = vpack.c.b16 %v567, %v566
        %v581 = vpack.c.b16 %v569, %v568
        %v582 = vpack.c.b16 %v571, %v570
        %v583 = vpack.c.b16 %v573, %v572
        %v584 = vpack.c.b16 %v575, %v574
        %v585 = vpack.c.b16 %v577, %v576
        %594 = vmatpush.bf16.msra.mxu0 %v585
        %595 = vmatpush.bf16.msra.mxu0 %v584
        %596 = vmatpush.bf16.msra.mxu0 %v583
        %597 = vmatpush.bf16.msra.mxu0 %v582
        %598 = vmatpush.bf16.msra.mxu0 %v581
        %599 = vmatpush.bf16.msra.mxu0 %v580
        %600 = vmatpush.bf16.msra.mxu0 %v579
        %601 = vmatpush.bf16.msra.mxu0 %v578
        %602 = vmatmul.bf16.gmra.mxu0 %v544
        %v603 = vpop.f32.mrf.mxu0
        %v604 = vadd.f32 0.0, %v603
        %v605 = vpop.f32.mrf.mxu0
        %v606 = vadd.f32 0.0, %v605
        %607 = vdwg.mxu0
        %v609 = vunpack.c.l.b16 %v484
        %v610 = vpack.c.b16 %v609, %v609
        %vm611 = vcmask 1044480
        %v612 = vrot.slane %v525, 3
        %v613 = vrot.slane %v610, 3
        %v614 = vsel %vm611, %v612, %v613
        %v632 = vunpack.c.l.b16 %v485
        %v633 = vunpack.c.l.b16 %v486
        %v634 = vunpack.c.l.b16 %v487
        %v635 = vunpack.c.l.b16 %v488
        %v636 = vunpack.c.l.b16 %v489
        %v637 = vunpack.c.l.b16 %v490
        %v638 = vunpack.c.l.b16 %v491
        %v639 = vunpack.c.l.b16 %v492
        %v640 = vunpack.c.l.b16 %v493
        %v641 = vunpack.c.l.b16 %v494
        %v642 = vunpack.c.l.b16 %v495
        %v643 = vunpack.c.l.b16 %v496
        %v644 = vunpack.c.l.b16 %v497
        %v645 = vunpack.c.l.b16 %v498
        %v646 = vunpack.c.l.b16 %v499
        %v647 = vunpack.c.l.b16 %v500
        %v648 = vpack.c.b16 %v633, %v632
        %v649 = vpack.c.b16 %v635, %v634
        %v650 = vpack.c.b16 %v637, %v636
        %v651 = vpack.c.b16 %v639, %v638
        %v652 = vpack.c.b16 %v641, %v640
        %v653 = vpack.c.b16 %v643, %v642
        %v654 = vpack.c.b16 %v645, %v644
        %v655 = vpack.c.b16 %v647, %v646
        %664 = vmatpush.bf16.msra.mxu0 %v655
        %665 = vmatpush.bf16.msra.mxu0 %v654
        %666 = vmatpush.bf16.msra.mxu0 %v653
        %667 = vmatpush.bf16.msra.mxu0 %v652
        %668 = vmatpush.bf16.msra.mxu0 %v651
        %669 = vmatpush.bf16.msra.mxu0 %v650
        %670 = vmatpush.bf16.msra.mxu0 %v649
        %671 = vmatpush.bf16.msra.mxu0 %v648
        %672 = vmatmul.bf16.gmra.mxu0 %v614
        %v673 = vpop.f32.mrf.mxu0
        %v674 = vadd.f32 %v604, %v673
        %v675 = vpop.f32.mrf.mxu0
        %v676 = vadd.f32 %v606, %v675
        %677 = vdwg.mxu0
        %s678 = scalar_lea.vmem [#allocation4], 128
        %v679 = vld [vmem:[%s678] sm:$0xf]
        %v680 = vld [vmem:[%s678 + $0x4] sm:$0xf]
        %v681 = vld [vmem:[%s678 + $0x8] sm:$0xf]
        %v682 = vld [vmem:[%s678 + $0xc] sm:$0xf]
        %v683 = vld [vmem:[%s678 + $0x10] sm:$0xf]
        %v684 = vld [vmem:[%s678 + $0x14] sm:$0xf]
        %v685 = vld [vmem:[%s678 + $0x18] sm:$0xf]
        %v686 = vld [vmem:[%s678 + $0x1c] sm:$0xf]
        %v687 = vld [vmem:[%s678 + $0x20] sm:$0xf]
        %v688 = vld [vmem:[%s678 + $0x24] sm:$0xf]
        %v689 = vld [vmem:[%s678 + $0x28] sm:$0xf]
        %v690 = vld [vmem:[%s678 + $0x2c] sm:$0xf]
        %v691 = vld [vmem:[%s678 + $0x30] sm:$0xf]
        %v692 = vld [vmem:[%s678 + $0x34] sm:$0xf]
        %v693 = vld [vmem:[%s678 + $0x38] sm:$0xf]
        %v694 = vld [vmem:[%s678 + $0x3c] sm:$0xf]
        %v695 = vpack.c.b16 %v524, %v523
        %v713 = vunpack.c.l.b16 %v679
        %v714 = vunpack.c.l.b16 %v680
        %v715 = vunpack.c.l.b16 %v681
        %v716 = vunpack.c.l.b16 %v682
        %v717 = vunpack.c.l.b16 %v683
        %v718 = vunpack.c.l.b16 %v684
        %v719 = vunpack.c.l.b16 %v685
        %v720 = vunpack.c.l.b16 %v686
        %v721 = vunpack.c.l.b16 %v687
        %v722 = vunpack.c.l.b16 %v688
        %v723 = vunpack.c.l.b16 %v689
        %v724 = vunpack.c.l.b16 %v690
        %v725 = vunpack.c.l.b16 %v691
        %v726 = vunpack.c.l.b16 %v692
        %v727 = vunpack.c.l.b16 %v693
        %v728 = vunpack.c.l.b16 %v694
        %v729 = vpack.c.b16 %v714, %v713
        %v730 = vpack.c.b16 %v716, %v715
        %v731 = vpack.c.b16 %v718, %v717
        %v732 = vpack.c.b16 %v720, %v719
        %v733 = vpack.c.b16 %v722, %v721
        %v734 = vpack.c.b16 %v724, %v723
        %v735 = vpack.c.b16 %v726, %v725
        %v736 = vpack.c.b16 %v728, %v727
        %745 = vmatpush.bf16.msra.mxu0 %v736
        %746 = vmatpush.bf16.msra.mxu0 %v735
        %747 = vmatpush.bf16.msra.mxu0 %v734
        %748 = vmatpush.bf16.msra.mxu0 %v733
        %749 = vmatpush.bf16.msra.mxu0 %v732
        %750 = vmatpush.bf16.msra.mxu0 %v731
        %751 = vmatpush.bf16.msra.mxu0 %v730
        %752 = vmatpush.bf16.msra.mxu0 %v729
        %753 = vmatmul.bf16.gmra.mxu0 %v695
        %v754 = vpop.f32.mrf.mxu0
        %v755 = vadd.f32 0.0, %v754
        %v756 = vpop.f32.mrf.mxu0
        %v757 = vadd.f32 0.0, %v756
        %758 = vdwg.mxu0
        %v759 = vadd.f32 %v674, %v755
        %v760 = vadd.f32 %v676, %v757
        %v761 = vld [vmem:[#allocation2 + $0x8] sm:$0xf]
        %v762 = vld [vmem:[#allocation2 + $0xc] sm:$0xf]
        %v763 = vld [vmem:[#allocation2 + $0x10] sm:$0x1]
        %s764 = scalar_lea.vmem [#allocation4], 192
        %v765 = vld [vmem:[%s764] sm:$0xf]
        %v766 = vld [vmem:[%s764 + $0x4] sm:$0xf]
        %v767 = vld [vmem:[%s764 + $0x8] sm:$0xf]
        %v768 = vld [vmem:[%s764 + $0xc] sm:$0xf]
        %v769 = vld [vmem:[%s764 + $0x10] sm:$0xf]
        %v770 = vld [vmem:[%s764 + $0x14] sm:$0xf]
        %v771 = vld [vmem:[%s764 + $0x18] sm:$0xf]
        %v772 = vld [vmem:[%s764 + $0x1c] sm:$0xf]
        %v773 = vld [vmem:[%s764 + $0x20] sm:$0xf]
        %v774 = vld [vmem:[%s764 + $0x24] sm:$0xf]
        %v775 = vld [vmem:[%s764 + $0x28] sm:$0xf]
        %v776 = vld [vmem:[%s764 + $0x2c] sm:$0xf]
        %v777 = vld [vmem:[%s764 + $0x30] sm:$0xf]
        %v778 = vld [vmem:[%s764 + $0x34] sm:$0xf]
        %v779 = vld [vmem:[%s764 + $0x38] sm:$0xf]
        %v780 = vld [vmem:[%s764 + $0x3c] sm:$0xf]
        %v784 = vunpack.c.l.b16 %v761
        %v785 = vunpack.c.l.b16 %v762
        %v786 = vunpack.c.l.b16 %v763
        %v787 = vpack.c.b16 %v785, %v784
        %v788 = vpack.c.b16 %v786, %v786
        %vm789 = vsmask.f32 7424
        %v791 = vshrl.u32 %v787, 16
        %v793 = vshll.u32 %v787, 16
        %v795 = vrot.slane %v793, 1
        %v796 = vor.u32 %v791, %v795
        %v798 = vshll.u32 %v788, 16
        %v800 = vrot.slane %v798, 1
        %v801 = vsel %vm789, %v796, %v800
        %v819 = vunpack.c.l.b16 %v765
        %v820 = vunpack.c.l.b16 %v766
        %v821 = vunpack.c.l.b16 %v767
        %v822 = vunpack.c.l.b16 %v768
        %v823 = vunpack.c.l.b16 %v769
        %v824 = vunpack.c.l.b16 %v770
        %v825 = vunpack.c.l.b16 %v771
        %v826 = vunpack.c.l.b16 %v772
        %v827 = vunpack.c.l.b16 %v773
        %v828 = vunpack.c.l.b16 %v774
        %v829 = vunpack.c.l.b16 %v775
        %v830 = vunpack.c.l.b16 %v776
        %v831 = vunpack.c.l.b16 %v777
        %v832 = vunpack.c.l.b16 %v778
        %v833 = vunpack.c.l.b16 %v779
        %v834 = vunpack.c.l.b16 %v780
        %v835 = vpack.c.b16 %v820, %v819
        %v836 = vpack.c.b16 %v822, %v821
        %v837 = vpack.c.b16 %v824, %v823
        %v838 = vpack.c.b16 %v826, %v825
        %v839 = vpack.c.b16 %v828, %v827
        %v840 = vpack.c.b16 %v830, %v829
        %v841 = vpack.c.b16 %v832, %v831
        %v842 = vpack.c.b16 %v834, %v833
        %851 = vmatpush.bf16.msra.mxu0 %v842
        %852 = vmatpush.bf16.msra.mxu0 %v841
        %853 = vmatpush.bf16.msra.mxu0 %v840
        %854 = vmatpush.bf16.msra.mxu0 %v839
        %855 = vmatpush.bf16.msra.mxu0 %v838
        %856 = vmatpush.bf16.msra.mxu0 %v837
        %857 = vmatpush.bf16.msra.mxu0 %v836
        %858 = vmatpush.bf16.msra.mxu0 %v835
        %859 = vmatmul.bf16.gmra.mxu0 %v801
        %v860 = vpop.f32.mrf.mxu0
        %v861 = vadd.f32 0.0, %v860
        %v862 = vpop.f32.mrf.mxu0
        %v863 = vadd.f32 0.0, %v862
        %864 = vdwg.mxu0
        %v865 = vadd.f32 %v759, %v861
        %v866 = vadd.f32 %v760, %v863
        %v867 = vld [vmem:[#allocation2 + $0x8] sm:$0xe]
        %s868 = scalar_lea.vmem [#allocation4], 256
        %v869 = vld [vmem:[%s868] sm:$0xf]
        %v870 = vld [vmem:[%s868 + $0x4] sm:$0xf]
        %v871 = vld [vmem:[%s868 + $0x8] sm:$0xf]
        %v872 = vld [vmem:[%s868 + $0xc] sm:$0xf]
        %v873 = vld [vmem:[%s868 + $0x10] sm:$0xf]
        %v874 = vld [vmem:[%s868 + $0x14] sm:$0xf]
        %v875 = vld [vmem:[%s868 + $0x18] sm:$0xf]
        %v876 = vld [vmem:[%s868 + $0x1c] sm:$0xf]
        %v877 = vld [vmem:[%s868 + $0x20] sm:$0xf]
        %v878 = vld [vmem:[%s868 + $0x24] sm:$0xf]
        %v879 = vld [vmem:[%s868 + $0x28] sm:$0xf]
        %v880 = vld [vmem:[%s868 + $0x2c] sm:$0xf]
        %v881 = vld [vmem:[%s868 + $0x30] sm:$0xf]
        %v882 = vld [vmem:[%s868 + $0x34] sm:$0xf]
        %v883 = vld [vmem:[%s868 + $0x38] sm:$0xf]
        %v884 = vld [vmem:[%s868 + $0x3c] sm:$0xf]
        %v886 = vunpack.c.l.b16 %v867
        %v887 = vpack.c.b16 %v785, %v886
        %vm888 = vcmask 1046528
        %v889 = vrot.slane %v887, 1
        %v890 = vrot.slane %v788, 1
        %v891 = vsel %vm888, %v889, %v890
        %v909 = vunpack.c.l.b16 %v869
        %v910 = vunpack.c.l.b16 %v870
        %v911 = vunpack.c.l.b16 %v871
        %v912 = vunpack.c.l.b16 %v872
        %v913 = vunpack.c.l.b16 %v873
        %v914 = vunpack.c.l.b16 %v874
        %v915 = vunpack.c.l.b16 %v875
        %v916 = vunpack.c.l.b16 %v876
        %v917 = vunpack.c.l.b16 %v877
        %v918 = vunpack.c.l.b16 %v878
        %v919 = vunpack.c.l.b16 %v879
        %v920 = vunpack.c.l.b16 %v880
        %v921 = vunpack.c.l.b16 %v881
        %v922 = vunpack.c.l.b16 %v882
        %v923 = vunpack.c.l.b16 %v883
        %v924 = vunpack.c.l.b16 %v884
        %v925 = vpack.c.b16 %v910, %v909
        %v926 = vpack.c.b16 %v912, %v911
        %v927 = vpack.c.b16 %v914, %v913
        %v928 = vpack.c.b16 %v916, %v915
        %v929 = vpack.c.b16 %v918, %v917
        %v930 = vpack.c.b16 %v920, %v919
        %v931 = vpack.c.b16 %v922, %v921
        %v932 = vpack.c.b16 %v924, %v923
        %941 = vmatpush.bf16.msra.mxu0 %v932
        %942 = vmatpush.bf16.msra.mxu0 %v931
        %943 = vmatpush.bf16.msra.mxu0 %v930
        %944 = vmatpush.bf16.msra.mxu0 %v929
        %945 = vmatpush.bf16.msra.mxu0 %v928
        %946 = vmatpush.bf16.msra.mxu0 %v927
        %947 = vmatpush.bf16.msra.mxu0 %v926
        %948 = vmatpush.bf16.msra.mxu0 %v925
        %949 = vmatmul.bf16.gmra.mxu0 %v891
        %v950 = vpop.f32.mrf.mxu0
        %v951 = vadd.f32 0.0, %v950
        %v952 = vpop.f32.mrf.mxu0
        %v953 = vadd.f32 0.0, %v952
        %954 = vdwg.mxu0
        %v955 = vadd.f32 %v865, %v951
        %v956 = vadd.f32 %v866, %v953
        %v957 = vld [vmem:[%s2] sm:$0x1]
        %v959 = vperm.slane %v957, 0
        %v961 = vadd.f32 %v955, %v959
        %v962 = vadd.f32 %v956, %v959
        %v963 = vtanh.pop %v961
        %v964 = vtanh.pop %v962
        %v965 = vpack.c.bf16 %v963, %v963
        %v966 = vpack.c.bf16 %v964, %v964
        %967 = vst [vmem:[#allocation3 + $0x8] sm:$0xf] %v965
        %968 = vst [vmem:[#allocation3 + $0xc] sm:$0xf] %v966
        %v969 = vld [vmem:[#allocation3 + $0x4] sm:$0x8]
        %v970 = vld [vmem:[#allocation3 + $0x8] sm:$0xf]
        %v971 = vld [vmem:[#allocation3 + $0xc] sm:$0x7]
        %v972 = vld [vmem:[#allocation7] sm:$0xf]
        %v973 = vld [vmem:[#allocation7 + $0x4] sm:$0xf]
        %v974 = vld [vmem:[#allocation7 + $0x8] sm:$0xf]
        %v975 = vld [vmem:[#allocation7 + $0xc] sm:$0xf]
        %v976 = vld [vmem:[#allocation7 + $0x10] sm:$0xf]
        %v977 = vld [vmem:[#allocation7 + $0x14] sm:$0xf]
        %v978 = vld [vmem:[#allocation7 + $0x18] sm:$0xf]
        %v979 = vld [vmem:[#allocation7 + $0x1c] sm:$0xf]
        %v980 = vld [vmem:[#allocation7 + $0x20] sm:$0xf]
        %v981 = vld [vmem:[#allocation7 + $0x24] sm:$0xf]
        %v982 = vld [vmem:[#allocation7 + $0x28] sm:$0xf]
        %v983 = vld [vmem:[#allocation7 + $0x2c] sm:$0xf]
        %v984 = vld [vmem:[#allocation7 + $0x30] sm:$0xf]
        %v985 = vld [vmem:[#allocation7 + $0x34] sm:$0xf]
        %v986 = vld [vmem:[#allocation7 + $0x38] sm:$0xf]
        %v987 = vld [vmem:[#allocation7 + $0x3c] sm:$0xf]
        %v988 = vld [vmem:[#allocation3 + $0xc] sm:$0xf]
        %s989 = scalar_lea.vmem [#allocation7], 64
        %v990 = vld [vmem:[%s989] sm:$0xf]
        %v991 = vld [vmem:[%s989 + $0x4] sm:$0xf]
        %v992 = vld [vmem:[%s989 + $0x8] sm:$0xf]
        %v993 = vld [vmem:[%s989 + $0xc] sm:$0xf]
        %v994 = vld [vmem:[%s989 + $0x10] sm:$0xf]
        %v995 = vld [vmem:[%s989 + $0x14] sm:$0xf]
        %v996 = vld [vmem:[%s989 + $0x18] sm:$0xf]
        %v997 = vld [vmem:[%s989 + $0x1c] sm:$0xf]
        %v998 = vld [vmem:[%s989 + $0x20] sm:$0xf]
        %v999 = vld [vmem:[%s989 + $0x24] sm:$0xf]
        %v1000 = vld [vmem:[%s989 + $0x28] sm:$0xf]
        %v1001 = vld [vmem:[%s989 + $0x2c] sm:$0xf]
        %v1002 = vld [vmem:[%s989 + $0x30] sm:$0xf]
        %v1003 = vld [vmem:[%s989 + $0x34] sm:$0xf]
        %v1004 = vld [vmem:[%s989 + $0x38] sm:$0xf]
        %v1005 = vld [vmem:[%s989 + $0x3c] sm:$0xf]
        %v1009 = vunpack.c.l.b16 %v969
        %v1010 = vunpack.c.l.b16 %v970
        %v1011 = vunpack.c.l.b16 %v988
        %v1012 = vpack.c.b16 %v1010, %v1009
        %v1013 = vpack.c.b16 %v1011, %v1011
        %v1015 = vshrl.u32 %v1012, 16
        %v1017 = vrot.slane %v1015, 3
        %v1018 = vshll.u32 %v1012, 16
        %v1020 = vrot.slane %v1018, 4
        %v1021 = vor.u32 %v1017, %v1020
        %v1023 = vshrl.u32 %v1013, 16
        %v1025 = vrot.slane %v1023, 3
        %v1026 = vshll.u32 %v1013, 16
        %v1028 = vrot.slane %v1026, 4
        %v1029 = vor.u32 %v1025, %v1028
        %v1030 = vsel %vm527, %v1021, %v1029
        %v1048 = vunpack.c.l.b16 %v990
        %v1049 = vunpack.c.l.b16 %v991
        %v1050 = vunpack.c.l.b16 %v992
        %v1051 = vunpack.c.l.b16 %v993
        %v1052 = vunpack.c.l.b16 %v994
        %v1053 = vunpack.c.l.b16 %v995
        %v1054 = vunpack.c.l.b16 %v996
        %v1055 = vunpack.c.l.b16 %v997
        %v1056 = vunpack.c.l.b16 %v998
        %v1057 = vunpack.c.l.b16 %v999
        %v1058 = vunpack.c.l.b16 %v1000
        %v1059 = vunpack.c.l.b16 %v1001
        %v1060 = vunpack.c.l.b16 %v1002
        %v1061 = vunpack.c.l.b16 %v1003
        %v1062 = vunpack.c.l.b16 %v1004
        %v1063 = vunpack.c.l.b16 %v1005
        %v1064 = vpack.c.b16 %v1049, %v1048
        %v1065 = vpack.c.b16 %v1051, %v1050
        %v1066 = vpack.c.b16 %v1053, %v1052
        %v1067 = vpack.c.b16 %v1055, %v1054
        %v1068 = vpack.c.b16 %v1057, %v1056
        %v1069 = vpack.c.b16 %v1059, %v1058
        %v1070 = vpack.c.b16 %v1061, %v1060
        %v1071 = vpack.c.b16 %v1063, %v1062
        %1080 = vmatpush.bf16.msra.mxu0 %v1071
        %1081 = vmatpush.bf16.msra.mxu0 %v1070
        %1082 = vmatpush.bf16.msra.mxu0 %v1069
        %1083 = vmatpush.bf16.msra.mxu0 %v1068
        %1084 = vmatpush.bf16.msra.mxu0 %v1067
        %1085 = vmatpush.bf16.msra.mxu0 %v1066
        %1086 = vmatpush.bf16.msra.mxu0 %v1065
        %1087 = vmatpush.bf16.msra.mxu0 %v1064
        %1088 = vmatmul.bf16.gmra.mxu0 %v1030
        %v1089 = vpop.f32.mrf.mxu0
        %v1090 = vadd.f32 0.0, %v1089
        %v1091 = vpop.f32.mrf.mxu0
        %v1092 = vadd.f32 0.0, %v1091
        %1093 = vdwg.mxu0
        %v1095 = vunpack.c.l.b16 %v971
        %v1096 = vpack.c.b16 %v1095, %v1095
        %v1097 = vrot.slane %v1012, 3
        %v1098 = vrot.slane %v1096, 3
        %v1099 = vsel %vm611, %v1097, %v1098
        %v1117 = vunpack.c.l.b16 %v972
        %v1118 = vunpack.c.l.b16 %v973
        %v1119 = vunpack.c.l.b16 %v974
        %v1120 = vunpack.c.l.b16 %v975
        %v1121 = vunpack.c.l.b16 %v976
        %v1122 = vunpack.c.l.b16 %v977
        %v1123 = vunpack.c.l.b16 %v978
        %v1124 = vunpack.c.l.b16 %v979
        %v1125 = vunpack.c.l.b16 %v980
        %v1126 = vunpack.c.l.b16 %v981
        %v1127 = vunpack.c.l.b16 %v982
        %v1128 = vunpack.c.l.b16 %v983
        %v1129 = vunpack.c.l.b16 %v984
        %v1130 = vunpack.c.l.b16 %v985
        %v1131 = vunpack.c.l.b16 %v986
        %v1132 = vunpack.c.l.b16 %v987
        %v1133 = vpack.c.b16 %v1118, %v1117
        %v1134 = vpack.c.b16 %v1120, %v1119
        %v1135 = vpack.c.b16 %v1122, %v1121
        %v1136 = vpack.c.b16 %v1124, %v1123
        %v1137 = vpack.c.b16 %v1126, %v1125
        %v1138 = vpack.c.b16 %v1128, %v1127
        %v1139 = vpack.c.b16 %v1130, %v1129
        %v1140 = vpack.c.b16 %v1132, %v1131
        %1149 = vmatpush.bf16.msra.mxu0 %v1140
        %1150 = vmatpush.bf16.msra.mxu0 %v1139
        %1151 = vmatpush.bf16.msra.mxu0 %v1138
        %1152 = vmatpush.bf16.msra.mxu0 %v1137
        %1153 = vmatpush.bf16.msra.mxu0 %v1136
        %1154 = vmatpush.bf16.msra.mxu0 %v1135
        %1155 = vmatpush.bf16.msra.mxu0 %v1134
        %1156 = vmatpush.bf16.msra.mxu0 %v1133
        %1157 = vmatmul.bf16.gmra.mxu0 %v1099
        %v1158 = vpop.f32.mrf.mxu0
        %v1159 = vadd.f32 %v1090, %v1158
        %v1160 = vpop.f32.mrf.mxu0
        %v1161 = vadd.f32 %v1092, %v1160
        %1162 = vdwg.mxu0
        %s1163 = scalar_lea.vmem [#allocation7], 128
        %v1164 = vld [vmem:[%s1163] sm:$0xf]
        %v1165 = vld [vmem:[%s1163 + $0x4] sm:$0xf]
        %v1166 = vld [vmem:[%s1163 + $0x8] sm:$0xf]
        %v1167 = vld [vmem:[%s1163 + $0xc] sm:$0xf]
        %v1168 = vld [vmem:[%s1163 + $0x10] sm:$0xf]
        %v1169 = vld [vmem:[%s1163 + $0x14] sm:$0xf]
        %v1170 = vld [vmem:[%s1163 + $0x18] sm:$0xf]
        %v1171 = vld [vmem:[%s1163 + $0x1c] sm:$0xf]
        %v1172 = vld [vmem:[%s1163 + $0x20] sm:$0xf]
        %v1173 = vld [vmem:[%s1163 + $0x24] sm:$0xf]
        %v1174 = vld [vmem:[%s1163 + $0x28] sm:$0xf]
        %v1175 = vld [vmem:[%s1163 + $0x2c] sm:$0xf]
        %v1176 = vld [vmem:[%s1163 + $0x30] sm:$0xf]
        %v1177 = vld [vmem:[%s1163 + $0x34] sm:$0xf]
        %v1178 = vld [vmem:[%s1163 + $0x38] sm:$0xf]
        %v1179 = vld [vmem:[%s1163 + $0x3c] sm:$0xf]
        %v1180 = vpack.c.b16 %v1011, %v1010
        %v1198 = vunpack.c.l.b16 %v1164
        %v1199 = vunpack.c.l.b16 %v1165
        %v1200 = vunpack.c.l.b16 %v1166
        %v1201 = vunpack.c.l.b16 %v1167
        %v1202 = vunpack.c.l.b16 %v1168
        %v1203 = vunpack.c.l.b16 %v1169
        %v1204 = vunpack.c.l.b16 %v1170
        %v1205 = vunpack.c.l.b16 %v1171
        %v1206 = vunpack.c.l.b16 %v1172
        %v1207 = vunpack.c.l.b16 %v1173
        %v1208 = vunpack.c.l.b16 %v1174
        %v1209 = vunpack.c.l.b16 %v1175
        %v1210 = vunpack.c.l.b16 %v1176
        %v1211 = vunpack.c.l.b16 %v1177
        %v1212 = vunpack.c.l.b16 %v1178
        %v1213 = vunpack.c.l.b16 %v1179
        %v1214 = vpack.c.b16 %v1199, %v1198
        %v1215 = vpack.c.b16 %v1201, %v1200
        %v1216 = vpack.c.b16 %v1203, %v1202
        %v1217 = vpack.c.b16 %v1205, %v1204
        %v1218 = vpack.c.b16 %v1207, %v1206
        %v1219 = vpack.c.b16 %v1209, %v1208
        %v1220 = vpack.c.b16 %v1211, %v1210
        %v1221 = vpack.c.b16 %v1213, %v1212
        %1230 = vmatpush.bf16.msra.mxu0 %v1221
        %1231 = vmatpush.bf16.msra.mxu0 %v1220
        %1232 = vmatpush.bf16.msra.mxu0 %v1219
        %1233 = vmatpush.bf16.msra.mxu0 %v1218
        %1234 = vmatpush.bf16.msra.mxu0 %v1217
        %1235 = vmatpush.bf16.msra.mxu0 %v1216
        %1236 = vmatpush.bf16.msra.mxu0 %v1215
        %1237 = vmatpush.bf16.msra.mxu0 %v1214
        %1238 = vmatmul.bf16.gmra.mxu0 %v1180
        %v1239 = vpop.f32.mrf.mxu0
        %v1240 = vadd.f32 0.0, %v1239
        %v1241 = vpop.f32.mrf.mxu0
        %v1242 = vadd.f32 0.0, %v1241
        %1243 = vdwg.mxu0
        %v1244 = vadd.f32 %v1159, %v1240
        %v1245 = vadd.f32 %v1161, %v1242
        %v1246 = vld [vmem:[#allocation3 + $0x8] sm:$0xf]
        %v1247 = vld [vmem:[#allocation3 + $0xc] sm:$0xf]
        %v1248 = vld [vmem:[#allocation3 + $0x10] sm:$0x1]
        %s1249 = scalar_lea.vmem [#allocation7], 192
        %v1250 = vld [vmem:[%s1249] sm:$0xf]
        %v1251 = vld [vmem:[%s1249 + $0x4] sm:$0xf]
        %v1252 = vld [vmem:[%s1249 + $0x8] sm:$0xf]
        %v1253 = vld [vmem:[%s1249 + $0xc] sm:$0xf]
        %v1254 = vld [vmem:[%s1249 + $0x10] sm:$0xf]
        %v1255 = vld [vmem:[%s1249 + $0x14] sm:$0xf]
        %v1256 = vld [vmem:[%s1249 + $0x18] sm:$0xf]
        %v1257 = vld [vmem:[%s1249 + $0x1c] sm:$0xf]
        %v1258 = vld [vmem:[%s1249 + $0x20] sm:$0xf]
        %v1259 = vld [vmem:[%s1249 + $0x24] sm:$0xf]
        %v1260 = vld [vmem:[%s1249 + $0x28] sm:$0xf]
        %v1261 = vld [vmem:[%s1249 + $0x2c] sm:$0xf]
        %v1262 = vld [vmem:[%s1249 + $0x30] sm:$0xf]
        %v1263 = vld [vmem:[%s1249 + $0x34] sm:$0xf]
        %v1264 = vld [vmem:[%s1249 + $0x38] sm:$0xf]
        %v1265 = vld [vmem:[%s1249 + $0x3c] sm:$0xf]
        %v1269 = vunpack.c.l.b16 %v1246
        %v1270 = vunpack.c.l.b16 %v1247
        %v1271 = vunpack.c.l.b16 %v1248
        %v1272 = vpack.c.b16 %v1270, %v1269
        %v1273 = vpack.c.b16 %v1271, %v1271
        %v1275 = vshrl.u32 %v1272, 16
        %v1277 = vshll.u32 %v1272, 16
        %v1279 = vrot.slane %v1277, 1
        %v1280 = vor.u32 %v1275, %v1279
        %v1282 = vshll.u32 %v1273, 16
        %v1284 = vrot.slane %v1282, 1
        %v1285 = vsel %vm789, %v1280, %v1284
        %v1303 = vunpack.c.l.b16 %v1250
        %v1304 = vunpack.c.l.b16 %v1251
        %v1305 = vunpack.c.l.b16 %v1252
        %v1306 = vunpack.c.l.b16 %v1253
        %v1307 = vunpack.c.l.b16 %v1254
        %v1308 = vunpack.c.l.b16 %v1255
        %v1309 = vunpack.c.l.b16 %v1256
        %v1310 = vunpack.c.l.b16 %v1257
        %v1311 = vunpack.c.l.b16 %v1258
        %v1312 = vunpack.c.l.b16 %v1259
        %v1313 = vunpack.c.l.b16 %v1260
        %v1314 = vunpack.c.l.b16 %v1261
        %v1315 = vunpack.c.l.b16 %v1262
        %v1316 = vunpack.c.l.b16 %v1263
        %v1317 = vunpack.c.l.b16 %v1264
        %v1318 = vunpack.c.l.b16 %v1265
        %v1319 = vpack.c.b16 %v1304, %v1303
        %v1320 = vpack.c.b16 %v1306, %v1305
        %v1321 = vpack.c.b16 %v1308, %v1307
        %v1322 = vpack.c.b16 %v1310, %v1309
        %v1323 = vpack.c.b16 %v1312, %v1311
        %v1324 = vpack.c.b16 %v1314, %v1313
        %v1325 = vpack.c.b16 %v1316, %v1315
        %v1326 = vpack.c.b16 %v1318, %v1317
        %1335 = vmatpush.bf16.msra.mxu0 %v1326
        %1336 = vmatpush.bf16.msra.mxu0 %v1325
        %1337 = vmatpush.bf16.msra.mxu0 %v1324
        %1338 = vmatpush.bf16.msra.mxu0 %v1323
        %1339 = vmatpush.bf16.msra.mxu0 %v1322
        %1340 = vmatpush.bf16.msra.mxu0 %v1321
        %1341 = vmatpush.bf16.msra.mxu0 %v1320
        %1342 = vmatpush.bf16.msra.mxu0 %v1319
        %1343 = vmatmul.bf16.gmra.mxu0 %v1285
        %v1344 = vpop.f32.mrf.mxu0
        %v1345 = vadd.f32 0.0, %v1344
        %v1346 = vpop.f32.mrf.mxu0
        %v1347 = vadd.f32 0.0, %v1346
        %1348 = vdwg.mxu0
        %v1349 = vadd.f32 %v1244, %v1345
        %v1350 = vadd.f32 %v1245, %v1347
        %v1351 = vld [vmem:[#allocation3 + $0x8] sm:$0xe]
        %s1352 = scalar_lea.vmem [#allocation7], 256
        %v1353 = vld [vmem:[%s1352] sm:$0xf]
        %v1354 = vld [vmem:[%s1352 + $0x4] sm:$0xf]
        %v1355 = vld [vmem:[%s1352 + $0x8] sm:$0xf]
        %v1356 = vld [vmem:[%s1352 + $0xc] sm:$0xf]
        %v1357 = vld [vmem:[%s1352 + $0x10] sm:$0xf]
        %v1358 = vld [vmem:[%s1352 + $0x14] sm:$0xf]
        %v1359 = vld [vmem:[%s1352 + $0x18] sm:$0xf]
        %v1360 = vld [vmem:[%s1352 + $0x1c] sm:$0xf]
        %v1361 = vld [vmem:[%s1352 + $0x20] sm:$0xf]
        %v1362 = vld [vmem:[%s1352 + $0x24] sm:$0xf]
        %v1363 = vld [vmem:[%s1352 + $0x28] sm:$0xf]
        %v1364 = vld [vmem:[%s1352 + $0x2c] sm:$0xf]
        %v1365 = vld [vmem:[%s1352 + $0x30] sm:$0xf]
        %v1366 = vld [vmem:[%s1352 + $0x34] sm:$0xf]
        %v1367 = vld [vmem:[%s1352 + $0x38] sm:$0xf]
        %v1368 = vld [vmem:[%s1352 + $0x3c] sm:$0xf]
        %v1370 = vunpack.c.l.b16 %v1351
        %v1371 = vpack.c.b16 %v1270, %v1370
        %v1372 = vrot.slane %v1371, 1
        %v1373 = vrot.slane %v1273, 1
        %v1374 = vsel %vm888, %v1372, %v1373
        %v1392 = vunpack.c.l.b16 %v1353
        %v1393 = vunpack.c.l.b16 %v1354
        %v1394 = vunpack.c.l.b16 %v1355
        %v1395 = vunpack.c.l.b16 %v1356
        %v1396 = vunpack.c.l.b16 %v1357
        %v1397 = vunpack.c.l.b16 %v1358
        %v1398 = vunpack.c.l.b16 %v1359
        %v1399 = vunpack.c.l.b16 %v1360
        %v1400 = vunpack.c.l.b16 %v1361
        %v1401 = vunpack.c.l.b16 %v1362
        %v1402 = vunpack.c.l.b16 %v1363
        %v1403 = vunpack.c.l.b16 %v1364
        %v1404 = vunpack.c.l.b16 %v1365
        %v1405 = vunpack.c.l.b16 %v1366
        %v1406 = vunpack.c.l.b16 %v1367
        %v1407 = vunpack.c.l.b16 %v1368
        %v1408 = vpack.c.b16 %v1393, %v1392
        %v1409 = vpack.c.b16 %v1395, %v1394
        %v1410 = vpack.c.b16 %v1397, %v1396
        %v1411 = vpack.c.b16 %v1399, %v1398
        %v1412 = vpack.c.b16 %v1401, %v1400
        %v1413 = vpack.c.b16 %v1403, %v1402
        %v1414 = vpack.c.b16 %v1405, %v1404
        %v1415 = vpack.c.b16 %v1407, %v1406
        %1424 = vmatpush.bf16.msra.mxu0 %v1415
        %1425 = vmatpush.bf16.msra.mxu0 %v1414
        %1426 = vmatpush.bf16.msra.mxu0 %v1413
        %1427 = vmatpush.bf16.msra.mxu0 %v1412
        %1428 = vmatpush.bf16.msra.mxu0 %v1411
        %1429 = vmatpush.bf16.msra.mxu0 %v1410
        %1430 = vmatpush.bf16.msra.mxu0 %v1409
        %1431 = vmatpush.bf16.msra.mxu0 %v1408
        %1432 = vmatmul.bf16.gmra.mxu0 %v1374
        %v1433 = vpop.f32.mrf.mxu0
        %v1434 = vadd.f32 0.0, %v1433
        %v1435 = vpop.f32.mrf.mxu0
        %v1436 = vadd.f32 0.0, %v1435
        %1437 = vdwg.mxu0
        %v1438 = vadd.f32 %v1349, %v1434
        %v1439 = vadd.f32 %v1350, %v1436
        %v1440 = vld [vmem:[%s4] sm:$0x1]
        %v1442 = vperm.slane %v1440, 0
        %v1444 = vadd.f32 %v1438, %v1442
        %v1445 = vadd.f32 %v1439, %v1442
        %v1446 = vtanh.pop %v1444
        %v1447 = vtanh.pop %v1445
        %v1448 = vpack.c.bf16 %v1446, %v1446
        %v1449 = vpack.c.bf16 %v1447, %v1447
        %1450 = vst [vmem:[#allocation2 + $0x8] sm:$0xf] %v1448
        %1451 = vst [vmem:[#allocation2 + $0xc] sm:$0xf] %v1449
        %v1452 = vld [vmem:[#allocation2 + $0x4] sm:$0x8]
        %v1453 = vld [vmem:[#allocation2 + $0x8] sm:$0xf]
        %v1454 = vld [vmem:[#allocation2 + $0xc] sm:$0x7]
        %v1455 = vld [vmem:[#allocation9] sm:$0xf]
        %v1456 = vld [vmem:[#allocation9 + $0x4] sm:$0xf]
        %v1457 = vld [vmem:[#allocation9 + $0x8] sm:$0xf]
        %v1458 = vld [vmem:[#allocation9 + $0xc] sm:$0xf]
        %v1459 = vld [vmem:[#allocation9 + $0x10] sm:$0xf]
        %v1460 = vld [vmem:[#allocation9 + $0x14] sm:$0xf]
        %v1461 = vld [vmem:[#allocation9 + $0x18] sm:$0xf]
        %v1462 = vld [vmem:[#allocation9 + $0x1c] sm:$0xf]
        %v1463 = vld [vmem:[#allocation9 + $0x20] sm:$0xf]
        %v1464 = vld [vmem:[#allocation9 + $0x24] sm:$0xf]
        %v1465 = vld [vmem:[#allocation9 + $0x28] sm:$0xf]
        %v1466 = vld [vmem:[#allocation9 + $0x2c] sm:$0xf]
        %v1467 = vld [vmem:[#allocation9 + $0x30] sm:$0xf]
        %v1468 = vld [vmem:[#allocation9 + $0x34] sm:$0xf]
        %v1469 = vld [vmem:[#allocation9 + $0x38] sm:$0xf]
        %v1470 = vld [vmem:[#allocation9 + $0x3c] sm:$0xf]
        %v1471 = vld [vmem:[#allocation2 + $0xc] sm:$0xf]
        %s1472 = scalar_lea.vmem [#allocation9], 64
        %v1473 = vld [vmem:[%s1472] sm:$0xf]
        %v1474 = vld [vmem:[%s1472 + $0x4] sm:$0xf]
        %v1475 = vld [vmem:[%s1472 + $0x8] sm:$0xf]
        %v1476 = vld [vmem:[%s1472 + $0xc] sm:$0xf]
        %v1477 = vld [vmem:[%s1472 + $0x10] sm:$0xf]
        %v1478 = vld [vmem:[%s1472 + $0x14] sm:$0xf]
        %v1479 = vld [vmem:[%s1472 + $0x18] sm:$0xf]
        %v1480 = vld [vmem:[%s1472 + $0x1c] sm:$0xf]
        %v1481 = vld [vmem:[%s1472 + $0x20] sm:$0xf]
        %v1482 = vld [vmem:[%s1472 + $0x24] sm:$0xf]
        %v1483 = vld [vmem:[%s1472 + $0x28] sm:$0xf]
        %v1484 = vld [vmem:[%s1472 + $0x2c] sm:$0xf]
        %v1485 = vld [vmem:[%s1472 + $0x30] sm:$0xf]
        %v1486 = vld [vmem:[%s1472 + $0x34] sm:$0xf]
        %v1487 = vld [vmem:[%s1472 + $0x38] sm:$0xf]
        %v1488 = vld [vmem:[%s1472 + $0x3c] sm:$0xf]
        %v1492 = vunpack.c.l.b16 %v1452
        %v1493 = vunpack.c.l.b16 %v1453
        %v1494 = vunpack.c.l.b16 %v1471
        %v1495 = vpack.c.b16 %v1493, %v1492
        %v1496 = vpack.c.b16 %v1494, %v1494
        %v1498 = vshrl.u32 %v1495, 16
        %v1500 = vrot.slane %v1498, 3
        %v1501 = vshll.u32 %v1495, 16
        %v1503 = vrot.slane %v1501, 4
        %v1504 = vor.u32 %v1500, %v1503
        %v1506 = vshrl.u32 %v1496, 16
        %v1508 = vrot.slane %v1506, 3
        %v1509 = vshll.u32 %v1496, 16
        %v1511 = vrot.slane %v1509, 4
        %v1512 = vor.u32 %v1508, %v1511
        %v1513 = vsel %vm527, %v1504, %v1512
        %v1531 = vunpack.c.l.b16 %v1473
        %v1532 = vunpack.c.l.b16 %v1474
        %v1533 = vunpack.c.l.b16 %v1475
        %v1534 = vunpack.c.l.b16 %v1476
        %v1535 = vunpack.c.l.b16 %v1477
        %v1536 = vunpack.c.l.b16 %v1478
        %v1537 = vunpack.c.l.b16 %v1479
        %v1538 = vunpack.c.l.b16 %v1480
        %v1539 = vunpack.c.l.b16 %v1481
        %v1540 = vunpack.c.l.b16 %v1482
        %v1541 = vunpack.c.l.b16 %v1483
        %v1542 = vunpack.c.l.b16 %v1484
        %v1543 = vunpack.c.l.b16 %v1485
        %v1544 = vunpack.c.l.b16 %v1486
        %v1545 = vunpack.c.l.b16 %v1487
        %v1546 = vunpack.c.l.b16 %v1488
        %v1547 = vpack.c.b16 %v1532, %v1531
        %v1548 = vpack.c.b16 %v1534, %v1533
        %v1549 = vpack.c.b16 %v1536, %v1535
        %v1550 = vpack.c.b16 %v1538, %v1537
        %v1551 = vpack.c.b16 %v1540, %v1539
        %v1552 = vpack.c.b16 %v1542, %v1541
        %v1553 = vpack.c.b16 %v1544, %v1543
        %v1554 = vpack.c.b16 %v1546, %v1545
        %1563 = vmatpush.bf16.msra.mxu0 %v1554
        %1564 = vmatpush.bf16.msra.mxu0 %v1553
        %1565 = vmatpush.bf16.msra.mxu0 %v1552
        %1566 = vmatpush.bf16.msra.mxu0 %v1551
        %1567 = vmatpush.bf16.msra.mxu0 %v1550
        %1568 = vmatpush.bf16.msra.mxu0 %v1549
        %1569 = vmatpush.bf16.msra.mxu0 %v1548
        %1570 = vmatpush.bf16.msra.mxu0 %v1547
        %1571 = vmatmul.bf16.gmra.mxu0 %v1513
        %v1572 = vpop.f32.mrf.mxu0
        %v1573 = vadd.f32 0.0, %v1572
        %v1574 = vpop.f32.mrf.mxu0
        %v1575 = vadd.f32 0.0, %v1574
        %1576 = vdwg.mxu0
        %v1578 = vunpack.c.l.b16 %v1454
        %v1579 = vpack.c.b16 %v1578, %v1578
        %v1580 = vrot.slane %v1495, 3
        %v1581 = vrot.slane %v1579, 3
        %v1582 = vsel %vm611, %v1580, %v1581
        %v1600 = vunpack.c.l.b16 %v1455
        %v1601 = vunpack.c.l.b16 %v1456
        %v1602 = vunpack.c.l.b16 %v1457
        %v1603 = vunpack.c.l.b16 %v1458
        %v1604 = vunpack.c.l.b16 %v1459
        %v1605 = vunpack.c.l.b16 %v1460
        %v1606 = vunpack.c.l.b16 %v1461
        %v1607 = vunpack.c.l.b16 %v1462
        %v1608 = vunpack.c.l.b16 %v1463
        %v1609 = vunpack.c.l.b16 %v1464
        %v1610 = vunpack.c.l.b16 %v1465
        %v1611 = vunpack.c.l.b16 %v1466
        %v1612 = vunpack.c.l.b16 %v1467
        %v1613 = vunpack.c.l.b16 %v1468
        %v1614 = vunpack.c.l.b16 %v1469
        %v1615 = vunpack.c.l.b16 %v1470
        %v1616 = vpack.c.b16 %v1601, %v1600
        %v1617 = vpack.c.b16 %v1603, %v1602
        %v1618 = vpack.c.b16 %v1605, %v1604
        %v1619 = vpack.c.b16 %v1607, %v1606
        %v1620 = vpack.c.b16 %v1609, %v1608
        %v1621 = vpack.c.b16 %v1611, %v1610
        %v1622 = vpack.c.b16 %v1613, %v1612
        %v1623 = vpack.c.b16 %v1615, %v1614
        %1632 = vmatpush.bf16.msra.mxu0 %v1623
        %1633 = vmatpush.bf16.msra.mxu0 %v1622
        %1634 = vmatpush.bf16.msra.mxu0 %v1621
        %1635 = vmatpush.bf16.msra.mxu0 %v1620
        %1636 = vmatpush.bf16.msra.mxu0 %v1619
        %1637 = vmatpush.bf16.msra.mxu0 %v1618
        %1638 = vmatpush.bf16.msra.mxu0 %v1617
        %1639 = vmatpush.bf16.msra.mxu0 %v1616
        %1640 = vmatmul.bf16.gmra.mxu0 %v1582
        %v1641 = vpop.f32.mrf.mxu0
        %v1642 = vadd.f32 %v1573, %v1641
        %v1643 = vpop.f32.mrf.mxu0
        %v1644 = vadd.f32 %v1575, %v1643
        %1645 = vdwg.mxu0
        %s1646 = scalar_lea.vmem [#allocation9], 128
        %v1647 = vld [vmem:[%s1646] sm:$0xf]
        %v1648 = vld [vmem:[%s1646 + $0x4] sm:$0xf]
        %v1649 = vld [vmem:[%s1646 + $0x8] sm:$0xf]
        %v1650 = vld [vmem:[%s1646 + $0xc] sm:$0xf]
        %v1651 = vld [vmem:[%s1646 + $0x10] sm:$0xf]
        %v1652 = vld [vmem:[%s1646 + $0x14] sm:$0xf]
        %v1653 = vld [vmem:[%s1646 + $0x18] sm:$0xf]
        %v1654 = vld [vmem:[%s1646 + $0x1c] sm:$0xf]
        %v1655 = vld [vmem:[%s1646 + $0x20] sm:$0xf]
        %v1656 = vld [vmem:[%s1646 + $0x24] sm:$0xf]
        %v1657 = vld [vmem:[%s1646 + $0x28] sm:$0xf]
        %v1658 = vld [vmem:[%s1646 + $0x2c] sm:$0xf]
        %v1659 = vld [vmem:[%s1646 + $0x30] sm:$0xf]
        %v1660 = vld [vmem:[%s1646 + $0x34] sm:$0xf]
        %v1661 = vld [vmem:[%s1646 + $0x38] sm:$0xf]
        %v1662 = vld [vmem:[%s1646 + $0x3c] sm:$0xf]
        %v1663 = vpack.c.b16 %v1494, %v1493
        %v1681 = vunpack.c.l.b16 %v1647
        %v1682 = vunpack.c.l.b16 %v1648
        %v1683 = vunpack.c.l.b16 %v1649
        %v1684 = vunpack.c.l.b16 %v1650
        %v1685 = vunpack.c.l.b16 %v1651
        %v1686 = vunpack.c.l.b16 %v1652
        %v1687 = vunpack.c.l.b16 %v1653
        %v1688 = vunpack.c.l.b16 %v1654
        %v1689 = vunpack.c.l.b16 %v1655
        %v1690 = vunpack.c.l.b16 %v1656
        %v1691 = vunpack.c.l.b16 %v1657
        %v1692 = vunpack.c.l.b16 %v1658
        %v1693 = vunpack.c.l.b16 %v1659
        %v1694 = vunpack.c.l.b16 %v1660
        %v1695 = vunpack.c.l.b16 %v1661
        %v1696 = vunpack.c.l.b16 %v1662
        %v1697 = vpack.c.b16 %v1682, %v1681
        %v1698 = vpack.c.b16 %v1684, %v1683
        %v1699 = vpack.c.b16 %v1686, %v1685
        %v1700 = vpack.c.b16 %v1688, %v1687
        %v1701 = vpack.c.b16 %v1690, %v1689
        %v1702 = vpack.c.b16 %v1692, %v1691
        %v1703 = vpack.c.b16 %v1694, %v1693
        %v1704 = vpack.c.b16 %v1696, %v1695
        %1713 = vmatpush.bf16.msra.mxu0 %v1704
        %1714 = vmatpush.bf16.msra.mxu0 %v1703
        %1715 = vmatpush.bf16.msra.mxu0 %v1702
        %1716 = vmatpush.bf16.msra.mxu0 %v1701
        %1717 = vmatpush.bf16.msra.mxu0 %v1700
        %1718 = vmatpush.bf16.msra.mxu0 %v1699
        %1719 = vmatpush.bf16.msra.mxu0 %v1698
        %1720 = vmatpush.bf16.msra.mxu0 %v1697
        %1721 = vmatmul.bf16.gmra.mxu0 %v1663
        %v1722 = vpop.f32.mrf.mxu0
        %v1723 = vadd.f32 0.0, %v1722
        %v1724 = vpop.f32.mrf.mxu0
        %v1725 = vadd.f32 0.0, %v1724
        %1726 = vdwg.mxu0
        %v1727 = vadd.f32 %v1642, %v1723
        %v1728 = vadd.f32 %v1644, %v1725
        %v1729 = vld [vmem:[#allocation2 + $0x8] sm:$0xf]
        %v1730 = vld [vmem:[#allocation2 + $0xc] sm:$0xf]
        %v1731 = vld [vmem:[#allocation2 + $0x10] sm:$0x1]
        %s1732 = scalar_lea.vmem [#allocation9], 192
        %v1733 = vld [vmem:[%s1732] sm:$0xf]
        %v1734 = vld [vmem:[%s1732 + $0x4] sm:$0xf]
        %v1735 = vld [vmem:[%s1732 + $0x8] sm:$0xf]
        %v1736 = vld [vmem:[%s1732 + $0xc] sm:$0xf]
        %v1737 = vld [vmem:[%s1732 + $0x10] sm:$0xf]
        %v1738 = vld [vmem:[%s1732 + $0x14] sm:$0xf]
        %v1739 = vld [vmem:[%s1732 + $0x18] sm:$0xf]
        %v1740 = vld [vmem:[%s1732 + $0x1c] sm:$0xf]
        %v1741 = vld [vmem:[%s1732 + $0x20] sm:$0xf]
        %v1742 = vld [vmem:[%s1732 + $0x24] sm:$0xf]
        %v1743 = vld [vmem:[%s1732 + $0x28] sm:$0xf]
        %v1744 = vld [vmem:[%s1732 + $0x2c] sm:$0xf]
        %v1745 = vld [vmem:[%s1732 + $0x30] sm:$0xf]
        %v1746 = vld [vmem:[%s1732 + $0x34] sm:$0xf]
        %v1747 = vld [vmem:[%s1732 + $0x38] sm:$0xf]
        %v1748 = vld [vmem:[%s1732 + $0x3c] sm:$0xf]
        %v1752 = vunpack.c.l.b16 %v1729
        %v1753 = vunpack.c.l.b16 %v1730
        %v1754 = vunpack.c.l.b16 %v1731
        %v1755 = vpack.c.b16 %v1753, %v1752
        %v1756 = vpack.c.b16 %v1754, %v1754
        %v1758 = vshrl.u32 %v1755, 16
        %v1760 = vshll.u32 %v1755, 16
        %v1762 = vrot.slane %v1760, 1
        %v1763 = vor.u32 %v1758, %v1762
        %v1765 = vshll.u32 %v1756, 16
        %v1767 = vrot.slane %v1765, 1
        %v1768 = vsel %vm789, %v1763, %v1767
        %v1786 = vunpack.c.l.b16 %v1733
        %v1787 = vunpack.c.l.b16 %v1734
        %v1788 = vunpack.c.l.b16 %v1735
        %v1789 = vunpack.c.l.b16 %v1736
        %v1790 = vunpack.c.l.b16 %v1737
        %v1791 = vunpack.c.l.b16 %v1738
        %v1792 = vunpack.c.l.b16 %v1739
        %v1793 = vunpack.c.l.b16 %v1740
        %v1794 = vunpack.c.l.b16 %v1741
        %v1795 = vunpack.c.l.b16 %v1742
        %v1796 = vunpack.c.l.b16 %v1743
        %v1797 = vunpack.c.l.b16 %v1744
        %v1798 = vunpack.c.l.b16 %v1745
        %v1799 = vunpack.c.l.b16 %v1746
        %v1800 = vunpack.c.l.b16 %v1747
        %v1801 = vunpack.c.l.b16 %v1748
        %v1802 = vpack.c.b16 %v1787, %v1786
        %v1803 = vpack.c.b16 %v1789, %v1788
        %v1804 = vpack.c.b16 %v1791, %v1790
        %v1805 = vpack.c.b16 %v1793, %v1792
        %v1806 = vpack.c.b16 %v1795, %v1794
        %v1807 = vpack.c.b16 %v1797, %v1796
        %v1808 = vpack.c.b16 %v1799, %v1798
        %v1809 = vpack.c.b16 %v1801, %v1800
        %1818 = vmatpush.bf16.msra.mxu0 %v1809
        %1819 = vmatpush.bf16.msra.mxu0 %v1808
        %1820 = vmatpush.bf16.msra.mxu0 %v1807
        %1821 = vmatpush.bf16.msra.mxu0 %v1806
        %1822 = vmatpush.bf16.msra.mxu0 %v1805
        %1823 = vmatpush.bf16.msra.mxu0 %v1804
        %1824 = vmatpush.bf16.msra.mxu0 %v1803
        %1825 = vmatpush.bf16.msra.mxu0 %v1802
        %1826 = vmatmul.bf16.gmra.mxu0 %v1768
        %v1827 = vpop.f32.mrf.mxu0
        %v1828 = vadd.f32 0.0, %v1827
        %v1829 = vpop.f32.mrf.mxu0
        %v1830 = vadd.f32 0.0, %v1829
        %1831 = vdwg.mxu0
        %v1832 = vadd.f32 %v1727, %v1828
        %v1833 = vadd.f32 %v1728, %v1830
        %v1834 = vld [vmem:[#allocation2 + $0x8] sm:$0xe]
        %s1835 = scalar_lea.vmem [#allocation9], 256
        %v1836 = vld [vmem:[%s1835] sm:$0xf]
        %v1837 = vld [vmem:[%s1835 + $0x4] sm:$0xf]
        %v1838 = vld [vmem:[%s1835 + $0x8] sm:$0xf]
        %v1839 = vld [vmem:[%s1835 + $0xc] sm:$0xf]
        %v1840 = vld [vmem:[%s1835 + $0x10] sm:$0xf]
        %v1841 = vld [vmem:[%s1835 + $0x14] sm:$0xf]
        %v1842 = vld [vmem:[%s1835 + $0x18] sm:$0xf]
        %v1843 = vld [vmem:[%s1835 + $0x1c] sm:$0xf]
        %v1844 = vld [vmem:[%s1835 + $0x20] sm:$0xf]
        %v1845 = vld [vmem:[%s1835 + $0x24] sm:$0xf]
        %v1846 = vld [vmem:[%s1835 + $0x28] sm:$0xf]
        %v1847 = vld [vmem:[%s1835 + $0x2c] sm:$0xf]
        %v1848 = vld [vmem:[%s1835 + $0x30] sm:$0xf]
        %v1849 = vld [vmem:[%s1835 + $0x34] sm:$0xf]
        %v1850 = vld [vmem:[%s1835 + $0x38] sm:$0xf]
        %v1851 = vld [vmem:[%s1835 + $0x3c] sm:$0xf]
        %v1853 = vunpack.c.l.b16 %v1834
        %v1854 = vpack.c.b16 %v1753, %v1853
        %v1855 = vrot.slane %v1854, 1
        %v1856 = vrot.slane %v1756, 1
        %v1857 = vsel %vm888, %v1855, %v1856
        %v1875 = vunpack.c.l.b16 %v1836
        %v1876 = vunpack.c.l.b16 %v1837
        %v1877 = vunpack.c.l.b16 %v1838
        %v1878 = vunpack.c.l.b16 %v1839
        %v1879 = vunpack.c.l.b16 %v1840
        %v1880 = vunpack.c.l.b16 %v1841
        %v1881 = vunpack.c.l.b16 %v1842
        %v1882 = vunpack.c.l.b16 %v1843
        %v1883 = vunpack.c.l.b16 %v1844
        %v1884 = vunpack.c.l.b16 %v1845
        %v1885 = vunpack.c.l.b16 %v1846
        %v1886 = vunpack.c.l.b16 %v1847
        %v1887 = vunpack.c.l.b16 %v1848
        %v1888 = vunpack.c.l.b16 %v1849
        %v1889 = vunpack.c.l.b16 %v1850
        %v1890 = vunpack.c.l.b16 %v1851
        %v1891 = vpack.c.b16 %v1876, %v1875
        %v1892 = vpack.c.b16 %v1878, %v1877
        %v1893 = vpack.c.b16 %v1880, %v1879
        %v1894 = vpack.c.b16 %v1882, %v1881
        %v1895 = vpack.c.b16 %v1884, %v1883
        %v1896 = vpack.c.b16 %v1886, %v1885
        %v1897 = vpack.c.b16 %v1888, %v1887
        %v1898 = vpack.c.b16 %v1890, %v1889
        %1907 = vmatpush.bf16.msra.mxu0 %v1898
        %1908 = vmatpush.bf16.msra.mxu0 %v1897
        %1909 = vmatpush.bf16.msra.mxu0 %v1896
        %1910 = vmatpush.bf16.msra.mxu0 %v1895
        %1911 = vmatpush.bf16.msra.mxu0 %v1894
        %1912 = vmatpush.bf16.msra.mxu0 %v1893
        %1913 = vmatpush.bf16.msra.mxu0 %v1892
        %1914 = vmatpush.bf16.msra.mxu0 %v1891
        %1915 = vmatmul.bf16.gmra.mxu0 %v1857
        %v1916 = vpop.f32.mrf.mxu0
        %v1917 = vadd.f32 0.0, %v1916
        %v1918 = vpop.f32.mrf.mxu0
        %v1919 = vadd.f32 0.0, %v1918
        %1920 = vdwg.mxu0
        %v1921 = vadd.f32 %v1832, %v1917
        %v1922 = vadd.f32 %v1833, %v1919
        %v1923 = vld [vmem:[%s6] sm:$0x1]
        %v1925 = vperm.slane %v1923, 0
        %v1927 = vadd.f32 %v1921, %v1925
        %v1928 = vadd.f32 %v1922, %v1925
        %v1929 = vtanh.pop %v1927
        %v1930 = vtanh.pop %v1928
        %v1931 = vpack.c.bf16 %v1929, %v1929
        %v1932 = vpack.c.bf16 %v1930, %v1930
        %1933 = vst [vmem:[#allocation3 + $0x8] sm:$0xf] %v1931
        %1934 = vst [vmem:[#allocation3 + $0xc] sm:$0xf] %v1932
        %v1935 = vld [vmem:[#allocation3 + $0x4] sm:$0x8]
        %v1936 = vld [vmem:[#allocation3 + $0x8] sm:$0xf]
        %v1937 = vld [vmem:[#allocation3 + $0xc] sm:$0x7]
        %v1938 = vld [vmem:[#allocation10] sm:$0xf]
        %v1939 = vld [vmem:[#allocation10 + $0x4] sm:$0xf]
        %v1940 = vld [vmem:[#allocation10 + $0x8] sm:$0xf]
        %v1941 = vld [vmem:[#allocation10 + $0xc] sm:$0xf]
        %v1942 = vld [vmem:[#allocation10 + $0x10] sm:$0xf]
        %v1943 = vld [vmem:[#allocation10 + $0x14] sm:$0xf]
        %v1944 = vld [vmem:[#allocation10 + $0x18] sm:$0xf]
        %v1945 = vld [vmem:[#allocation10 + $0x1c] sm:$0xf]
        %v1946 = vld [vmem:[#allocation10 + $0x20] sm:$0xf]
        %v1947 = vld [vmem:[#allocation10 + $0x24] sm:$0xf]
        %v1948 = vld [vmem:[#allocation10 + $0x28] sm:$0xf]
        %v1949 = vld [vmem:[#allocation10 + $0x2c] sm:$0xf]
        %v1950 = vld [vmem:[#allocation10 + $0x30] sm:$0xf]
        %v1951 = vld [vmem:[#allocation10 + $0x34] sm:$0xf]
        %v1952 = vld [vmem:[#allocation10 + $0x38] sm:$0xf]
        %v1953 = vld [vmem:[#allocation10 + $0x3c] sm:$0xf]
        %v1954 = vld [vmem:[#allocation3 + $0xc] sm:$0xf]
        %s1955 = scalar_lea.vmem [#allocation10], 64
        %v1956 = vld [vmem:[%s1955] sm:$0xf]
        %v1957 = vld [vmem:[%s1955 + $0x4] sm:$0xf]
        %v1958 = vld [vmem:[%s1955 + $0x8] sm:$0xf]
        %v1959 = vld [vmem:[%s1955 + $0xc] sm:$0xf]
        %v1960 = vld [vmem:[%s1955 + $0x10] sm:$0xf]
        %v1961 = vld [vmem:[%s1955 + $0x14] sm:$0xf]
        %v1962 = vld [vmem:[%s1955 + $0x18] sm:$0xf]
        %v1963 = vld [vmem:[%s1955 + $0x1c] sm:$0xf]
        %v1964 = vld [vmem:[%s1955 + $0x20] sm:$0xf]
        %v1965 = vld [vmem:[%s1955 + $0x24] sm:$0xf]
        %v1966 = vld [vmem:[%s1955 + $0x28] sm:$0xf]
        %v1967 = vld [vmem:[%s1955 + $0x2c] sm:$0xf]
        %v1968 = vld [vmem:[%s1955 + $0x30] sm:$0xf]
        %v1969 = vld [vmem:[%s1955 + $0x34] sm:$0xf]
        %v1970 = vld [vmem:[%s1955 + $0x38] sm:$0xf]
        %v1971 = vld [vmem:[%s1955 + $0x3c] sm:$0xf]
        %v1975 = vunpack.c.l.b16 %v1935
        %v1976 = vunpack.c.l.b16 %v1936
        %v1977 = vunpack.c.l.b16 %v1954
        %v1978 = vpack.c.b16 %v1976, %v1975
        %v1979 = vpack.c.b16 %v1977, %v1977
        %v1981 = vshrl.u32 %v1978, 16
        %v1983 = vrot.slane %v1981, 3
        %v1984 = vshll.u32 %v1978, 16
        %v1986 = vrot.slane %v1984, 4
        %v1987 = vor.u32 %v1983, %v1986
        %v1989 = vshrl.u32 %v1979, 16
        %v1991 = vrot.slane %v1989, 3
        %v1992 = vshll.u32 %v1979, 16
        %v1994 = vrot.slane %v1992, 4
        %v1995 = vor.u32 %v1991, %v1994
        %v1996 = vsel %vm527, %v1987, %v1995
        %v2014 = vunpack.c.l.b16 %v1956
        %v2015 = vunpack.c.l.b16 %v1957
        %v2016 = vunpack.c.l.b16 %v1958
        %v2017 = vunpack.c.l.b16 %v1959
        %v2018 = vunpack.c.l.b16 %v1960
        %v2019 = vunpack.c.l.b16 %v1961
        %v2020 = vunpack.c.l.b16 %v1962
        %v2021 = vunpack.c.l.b16 %v1963
        %v2022 = vunpack.c.l.b16 %v1964
        %v2023 = vunpack.c.l.b16 %v1965
        %v2024 = vunpack.c.l.b16 %v1966
        %v2025 = vunpack.c.l.b16 %v1967
        %v2026 = vunpack.c.l.b16 %v1968
        %v2027 = vunpack.c.l.b16 %v1969
        %v2028 = vunpack.c.l.b16 %v1970
        %v2029 = vunpack.c.l.b16 %v1971
        %v2030 = vpack.c.b16 %v2015, %v2014
        %v2031 = vpack.c.b16 %v2017, %v2016
        %v2032 = vpack.c.b16 %v2019, %v2018
        %v2033 = vpack.c.b16 %v2021, %v2020
        %v2034 = vpack.c.b16 %v2023, %v2022
        %v2035 = vpack.c.b16 %v2025, %v2024
        %v2036 = vpack.c.b16 %v2027, %v2026
        %v2037 = vpack.c.b16 %v2029, %v2028
        %2046 = vmatpush.bf16.msra.mxu0 %v2037
        %2047 = vmatpush.bf16.msra.mxu0 %v2036
        %2048 = vmatpush.bf16.msra.mxu0 %v2035
        %2049 = vmatpush.bf16.msra.mxu0 %v2034
        %2050 = vmatpush.bf16.msra.mxu0 %v2033
        %2051 = vmatpush.bf16.msra.mxu0 %v2032
        %2052 = vmatpush.bf16.msra.mxu0 %v2031
        %2053 = vmatpush.bf16.msra.mxu0 %v2030
        %2054 = vmatmul.bf16.gmra.mxu0 %v1996
        %v2055 = vpop.f32.mrf.mxu0
        %v2056 = vadd.f32 0.0, %v2055
        %v2057 = vpop.f32.mrf.mxu0
        %v2058 = vadd.f32 0.0, %v2057
        %2059 = vdwg.mxu0
        %v2061 = vunpack.c.l.b16 %v1937
        %v2062 = vpack.c.b16 %v2061, %v2061
        %v2063 = vrot.slane %v1978, 3
        %v2064 = vrot.slane %v2062, 3
        %v2065 = vsel %vm611, %v2063, %v2064
        %v2083 = vunpack.c.l.b16 %v1938
        %v2084 = vunpack.c.l.b16 %v1939
        %v2085 = vunpack.c.l.b16 %v1940
        %v2086 = vunpack.c.l.b16 %v1941
        %v2087 = vunpack.c.l.b16 %v1942
        %v2088 = vunpack.c.l.b16 %v1943
        %v2089 = vunpack.c.l.b16 %v1944
        %v2090 = vunpack.c.l.b16 %v1945
        %v2091 = vunpack.c.l.b16 %v1946
        %v2092 = vunpack.c.l.b16 %v1947
        %v2093 = vunpack.c.l.b16 %v1948
        %v2094 = vunpack.c.l.b16 %v1949
        %v2095 = vunpack.c.l.b16 %v1950
        %v2096 = vunpack.c.l.b16 %v1951
        %v2097 = vunpack.c.l.b16 %v1952
        %v2098 = vunpack.c.l.b16 %v1953
        %v2099 = vpack.c.b16 %v2084, %v2083
        %v2100 = vpack.c.b16 %v2086, %v2085
        %v2101 = vpack.c.b16 %v2088, %v2087
        %v2102 = vpack.c.b16 %v2090, %v2089
        %v2103 = vpack.c.b16 %v2092, %v2091
        %v2104 = vpack.c.b16 %v2094, %v2093
        %v2105 = vpack.c.b16 %v2096, %v2095
        %v2106 = vpack.c.b16 %v2098, %v2097
        %2115 = vmatpush.bf16.msra.mxu0 %v2106
        %2116 = vmatpush.bf16.msra.mxu0 %v2105
        %2117 = vmatpush.bf16.msra.mxu0 %v2104
        %2118 = vmatpush.bf16.msra.mxu0 %v2103
        %2119 = vmatpush.bf16.msra.mxu0 %v2102
        %2120 = vmatpush.bf16.msra.mxu0 %v2101
        %2121 = vmatpush.bf16.msra.mxu0 %v2100
        %2122 = vmatpush.bf16.msra.mxu0 %v2099
        %2123 = vmatmul.bf16.gmra.mxu0 %v2065
        %v2124 = vpop.f32.mrf.mxu0
        %v2125 = vadd.f32 %v2056, %v2124
        %v2126 = vpop.f32.mrf.mxu0
        %v2127 = vadd.f32 %v2058, %v2126
        %2128 = vdwg.mxu0
        %s2129 = scalar_lea.vmem [#allocation10], 128
        %v2130 = vld [vmem:[%s2129] sm:$0xf]
        %v2131 = vld [vmem:[%s2129 + $0x4] sm:$0xf]
        %v2132 = vld [vmem:[%s2129 + $0x8] sm:$0xf]
        %v2133 = vld [vmem:[%s2129 + $0xc] sm:$0xf]
        %v2134 = vld [vmem:[%s2129 + $0x10] sm:$0xf]
        %v2135 = vld [vmem:[%s2129 + $0x14] sm:$0xf]
        %v2136 = vld [vmem:[%s2129 + $0x18] sm:$0xf]
        %v2137 = vld [vmem:[%s2129 + $0x1c] sm:$0xf]
        %v2138 = vld [vmem:[%s2129 + $0x20] sm:$0xf]
        %v2139 = vld [vmem:[%s2129 + $0x24] sm:$0xf]
        %v2140 = vld [vmem:[%s2129 + $0x28] sm:$0xf]
        %v2141 = vld [vmem:[%s2129 + $0x2c] sm:$0xf]
        %v2142 = vld [vmem:[%s2129 + $0x30] sm:$0xf]
        %v2143 = vld [vmem:[%s2129 + $0x34] sm:$0xf]
        %v2144 = vld [vmem:[%s2129 + $0x38] sm:$0xf]
        %v2145 = vld [vmem:[%s2129 + $0x3c] sm:$0xf]
        %v2146 = vpack.c.b16 %v1977, %v1976
        %v2164 = vunpack.c.l.b16 %v2130
        %v2165 = vunpack.c.l.b16 %v2131
        %v2166 = vunpack.c.l.b16 %v2132
        %v2167 = vunpack.c.l.b16 %v2133
        %v2168 = vunpack.c.l.b16 %v2134
        %v2169 = vunpack.c.l.b16 %v2135
        %v2170 = vunpack.c.l.b16 %v2136
        %v2171 = vunpack.c.l.b16 %v2137
        %v2172 = vunpack.c.l.b16 %v2138
        %v2173 = vunpack.c.l.b16 %v2139
        %v2174 = vunpack.c.l.b16 %v2140
        %v2175 = vunpack.c.l.b16 %v2141
        %v2176 = vunpack.c.l.b16 %v2142
        %v2177 = vunpack.c.l.b16 %v2143
        %v2178 = vunpack.c.l.b16 %v2144
        %v2179 = vunpack.c.l.b16 %v2145
        %v2180 = vpack.c.b16 %v2165, %v2164
        %v2181 = vpack.c.b16 %v2167, %v2166
        %v2182 = vpack.c.b16 %v2169, %v2168
        %v2183 = vpack.c.b16 %v2171, %v2170
        %v2184 = vpack.c.b16 %v2173, %v2172
        %v2185 = vpack.c.b16 %v2175, %v2174
        %v2186 = vpack.c.b16 %v2177, %v2176
        %v2187 = vpack.c.b16 %v2179, %v2178
        %2196 = vmatpush.bf16.msra.mxu0 %v2187
        %2197 = vmatpush.bf16.msra.mxu0 %v2186
        %2198 = vmatpush.bf16.msra.mxu0 %v2185
        %2199 = vmatpush.bf16.msra.mxu0 %v2184
        %2200 = vmatpush.bf16.msra.mxu0 %v2183
        %2201 = vmatpush.bf16.msra.mxu0 %v2182
        %2202 = vmatpush.bf16.msra.mxu0 %v2181
        %2203 = vmatpush.bf16.msra.mxu0 %v2180
        %2204 = vmatmul.bf16.gmra.mxu0 %v2146
        %v2205 = vpop.f32.mrf.mxu0
        %v2206 = vadd.f32 0.0, %v2205
        %v2207 = vpop.f32.mrf.mxu0
        %v2208 = vadd.f32 0.0, %v2207
        %2209 = vdwg.mxu0
        %v2210 = vadd.f32 %v2125, %v2206
        %v2211 = vadd.f32 %v2127, %v2208
        %v2212 = vld [vmem:[#allocation3 + $0x8] sm:$0xf]
        %v2213 = vld [vmem:[#allocation3 + $0xc] sm:$0xf]
        %v2214 = vld [vmem:[#allocation3 + $0x10] sm:$0x1]
        %s2215 = scalar_lea.vmem [#allocation10], 192
        %v2216 = vld [vmem:[%s2215] sm:$0xf]
        %v2217 = vld [vmem:[%s2215 + $0x4] sm:$0xf]
        %v2218 = vld [vmem:[%s2215 + $0x8] sm:$0xf]
        %v2219 = vld [vmem:[%s2215 + $0xc] sm:$0xf]
        %v2220 = vld [vmem:[%s2215 + $0x10] sm:$0xf]
        %v2221 = vld [vmem:[%s2215 + $0x14] sm:$0xf]
        %v2222 = vld [vmem:[%s2215 + $0x18] sm:$0xf]
        %v2223 = vld [vmem:[%s2215 + $0x1c] sm:$0xf]
        %v2224 = vld [vmem:[%s2215 + $0x20] sm:$0xf]
        %v2225 = vld [vmem:[%s2215 + $0x24] sm:$0xf]
        %v2226 = vld [vmem:[%s2215 + $0x28] sm:$0xf]
        %v2227 = vld [vmem:[%s2215 + $0x2c] sm:$0xf]
        %v2228 = vld [vmem:[%s2215 + $0x30] sm:$0xf]
        %v2229 = vld [vmem:[%s2215 + $0x34] sm:$0xf]
        %v2230 = vld [vmem:[%s2215 + $0x38] sm:$0xf]
        %v2231 = vld [vmem:[%s2215 + $0x3c] sm:$0xf]
        %v2235 = vunpack.c.l.b16 %v2212
        %v2236 = vunpack.c.l.b16 %v2213
        %v2237 = vunpack.c.l.b16 %v2214
        %v2238 = vpack.c.b16 %v2236, %v2235
        %v2239 = vpack.c.b16 %v2237, %v2237
        %v2241 = vshrl.u32 %v2238, 16
        %v2243 = vshll.u32 %v2238, 16
        %v2245 = vrot.slane %v2243, 1
        %v2246 = vor.u32 %v2241, %v2245
        %v2248 = vshll.u32 %v2239, 16
        %v2250 = vrot.slane %v2248, 1
        %v2251 = vsel %vm789, %v2246, %v2250
        %v2269 = vunpack.c.l.b16 %v2216
        %v2270 = vunpack.c.l.b16 %v2217
        %v2271 = vunpack.c.l.b16 %v2218
        %v2272 = vunpack.c.l.b16 %v2219
        %v2273 = vunpack.c.l.b16 %v2220
        %v2274 = vunpack.c.l.b16 %v2221
        %v2275 = vunpack.c.l.b16 %v2222
        %v2276 = vunpack.c.l.b16 %v2223
        %v2277 = vunpack.c.l.b16 %v2224
        %v2278 = vunpack.c.l.b16 %v2225
        %v2279 = vunpack.c.l.b16 %v2226
        %v2280 = vunpack.c.l.b16 %v2227
        %v2281 = vunpack.c.l.b16 %v2228
        %v2282 = vunpack.c.l.b16 %v2229
        %v2283 = vunpack.c.l.b16 %v2230
        %v2284 = vunpack.c.l.b16 %v2231
        %v2285 = vpack.c.b16 %v2270, %v2269
        %v2286 = vpack.c.b16 %v2272, %v2271
        %v2287 = vpack.c.b16 %v2274, %v2273
        %v2288 = vpack.c.b16 %v2276, %v2275
        %v2289 = vpack.c.b16 %v2278, %v2277
        %v2290 = vpack.c.b16 %v2280, %v2279
        %v2291 = vpack.c.b16 %v2282, %v2281
        %v2292 = vpack.c.b16 %v2284, %v2283
        %2301 = vmatpush.bf16.msra.mxu0 %v2292
        %2302 = vmatpush.bf16.msra.mxu0 %v2291
        %2303 = vmatpush.bf16.msra.mxu0 %v2290
        %2304 = vmatpush.bf16.msra.mxu0 %v2289
        %2305 = vmatpush.bf16.msra.mxu0 %v2288
        %2306 = vmatpush.bf16.msra.mxu0 %v2287
        %2307 = vmatpush.bf16.msra.mxu0 %v2286
        %2308 = vmatpush.bf16.msra.mxu0 %v2285
        %2309 = vmatmul.bf16.gmra.mxu0 %v2251
        %v2310 = vpop.f32.mrf.mxu0
        %v2311 = vadd.f32 0.0, %v2310
        %v2312 = vpop.f32.mrf.mxu0
        %v2313 = vadd.f32 0.0, %v2312
        %2314 = vdwg.mxu0
        %v2315 = vadd.f32 %v2210, %v2311
        %v2316 = vadd.f32 %v2211, %v2313
        %v2317 = vld [vmem:[#allocation3 + $0x8] sm:$0xe]
        %s2318 = scalar_lea.vmem [#allocation10], 256
        %v2319 = vld [vmem:[%s2318] sm:$0xf]
        %v2320 = vld [vmem:[%s2318 + $0x4] sm:$0xf]
        %v2321 = vld [vmem:[%s2318 + $0x8] sm:$0xf]
        %v2322 = vld [vmem:[%s2318 + $0xc] sm:$0xf]
        %v2323 = vld [vmem:[%s2318 + $0x10] sm:$0xf]
        %v2324 = vld [vmem:[%s2318 + $0x14] sm:$0xf]
        %v2325 = vld [vmem:[%s2318 + $0x18] sm:$0xf]
        %v2326 = vld [vmem:[%s2318 + $0x1c] sm:$0xf]
        %v2327 = vld [vmem:[%s2318 + $0x20] sm:$0xf]
        %v2328 = vld [vmem:[%s2318 + $0x24] sm:$0xf]
        %v2329 = vld [vmem:[%s2318 + $0x28] sm:$0xf]
        %v2330 = vld [vmem:[%s2318 + $0x2c] sm:$0xf]
        %v2331 = vld [vmem:[%s2318 + $0x30] sm:$0xf]
        %v2332 = vld [vmem:[%s2318 + $0x34] sm:$0xf]
        %v2333 = vld [vmem:[%s2318 + $0x38] sm:$0xf]
        %v2334 = vld [vmem:[%s2318 + $0x3c] sm:$0xf]
        %v2336 = vunpack.c.l.b16 %v2317
        %v2337 = vpack.c.b16 %v2236, %v2336
        %v2338 = vrot.slane %v2337, 1
        %v2339 = vrot.slane %v2239, 1
        %v2340 = vsel %vm888, %v2338, %v2339
        %v2358 = vunpack.c.l.b16 %v2319
        %v2359 = vunpack.c.l.b16 %v2320
        %v2360 = vunpack.c.l.b16 %v2321
        %v2361 = vunpack.c.l.b16 %v2322
        %v2362 = vunpack.c.l.b16 %v2323
        %v2363 = vunpack.c.l.b16 %v2324
        %v2364 = vunpack.c.l.b16 %v2325
        %v2365 = vunpack.c.l.b16 %v2326
        %v2366 = vunpack.c.l.b16 %v2327
        %v2367 = vunpack.c.l.b16 %v2328
        %v2368 = vunpack.c.l.b16 %v2329
        %v2369 = vunpack.c.l.b16 %v2330
        %v2370 = vunpack.c.l.b16 %v2331
        %v2371 = vunpack.c.l.b16 %v2332
        %v2372 = vunpack.c.l.b16 %v2333
        %v2373 = vunpack.c.l.b16 %v2334
        %v2374 = vpack.c.b16 %v2359, %v2358
        %v2375 = vpack.c.b16 %v2361, %v2360
        %v2376 = vpack.c.b16 %v2363, %v2362
        %v2377 = vpack.c.b16 %v2365, %v2364
        %v2378 = vpack.c.b16 %v2367, %v2366
        %v2379 = vpack.c.b16 %v2369, %v2368
        %v2380 = vpack.c.b16 %v2371, %v2370
        %v2381 = vpack.c.b16 %v2373, %v2372
        %2390 = vmatpush.bf16.msra.mxu0 %v2381
        %2391 = vmatpush.bf16.msra.mxu0 %v2380
        %2392 = vmatpush.bf16.msra.mxu0 %v2379
        %2393 = vmatpush.bf16.msra.mxu0 %v2378
        %2394 = vmatpush.bf16.msra.mxu0 %v2377
        %2395 = vmatpush.bf16.msra.mxu0 %v2376
        %2396 = vmatpush.bf16.msra.mxu0 %v2375
        %2397 = vmatpush.bf16.msra.mxu0 %v2374
        %2398 = vmatmul.bf16.gmra.mxu0 %v2340
        %v2399 = vpop.f32.mrf.mxu0
        %v2400 = vadd.f32 0.0, %v2399
        %v2401 = vpop.f32.mrf.mxu0
        %v2402 = vadd.f32 0.0, %v2401
        %2403 = vdwg.mxu0
        %v2404 = vadd.f32 %v2315, %v2400
        %v2405 = vadd.f32 %v2316, %v2402
        %v2406 = vld [vmem:[%s8] sm:$0x1]
        %v2408 = vperm.slane %v2406, 0
        %v2410 = vadd.f32 %v2404, %v2408
        %v2411 = vadd.f32 %v2405, %v2408
        %v2412 = vtanh.pop %v2410
        %v2413 = vtanh.pop %v2411
        %v2414 = vpack.c.bf16 %v2412, %v2412
        %v2415 = vpack.c.bf16 %v2413, %v2413
        %2416 = vst [vmem:[#allocation2 + $0x8] sm:$0xf] %v2414
        %2417 = vst [vmem:[#allocation2 + $0xc] sm:$0xf] %v2415
        %v2418 = vld [vmem:[#allocation2 + $0x4] sm:$0x8]
        %v2419 = vld [vmem:[#allocation2 + $0x8] sm:$0xf]
        %v2420 = vld [vmem:[#allocation2 + $0xc] sm:$0x7]
        %v2421 = vld [vmem:[#allocation12] sm:$0xf]
        %v2422 = vld [vmem:[#allocation12 + $0x4] sm:$0xf]
        %v2423 = vld [vmem:[#allocation12 + $0x8] sm:$0xf]
        %v2424 = vld [vmem:[#allocation12 + $0xc] sm:$0xf]
        %v2425 = vld [vmem:[#allocation12 + $0x10] sm:$0xf]
        %v2426 = vld [vmem:[#allocation12 + $0x14] sm:$0xf]
        %v2427 = vld [vmem:[#allocation12 + $0x18] sm:$0xf]
        %v2428 = vld [vmem:[#allocation12 + $0x1c] sm:$0xf]
        %v2429 = vld [vmem:[#allocation12 + $0x20] sm:$0xf]
        %v2430 = vld [vmem:[#allocation12 + $0x24] sm:$0xf]
        %v2431 = vld [vmem:[#allocation12 + $0x28] sm:$0xf]
        %v2432 = vld [vmem:[#allocation12 + $0x2c] sm:$0xf]
        %v2433 = vld [vmem:[#allocation12 + $0x30] sm:$0xf]
        %v2434 = vld [vmem:[#allocation12 + $0x34] sm:$0xf]
        %v2435 = vld [vmem:[#allocation12 + $0x38] sm:$0xf]
        %v2436 = vld [vmem:[#allocation12 + $0x3c] sm:$0xf]
        %v2437 = vld [vmem:[#allocation2 + $0xc] sm:$0xf]
        %s2438 = scalar_lea.vmem [#allocation12], 64
        %v2439 = vld [vmem:[%s2438] sm:$0xf]
        %v2440 = vld [vmem:[%s2438 + $0x4] sm:$0xf]
        %v2441 = vld [vmem:[%s2438 + $0x8] sm:$0xf]
        %v2442 = vld [vmem:[%s2438 + $0xc] sm:$0xf]
        %v2443 = vld [vmem:[%s2438 + $0x10] sm:$0xf]
        %v2444 = vld [vmem:[%s2438 + $0x14] sm:$0xf]
        %v2445 = vld [vmem:[%s2438 + $0x18] sm:$0xf]
        %v2446 = vld [vmem:[%s2438 + $0x1c] sm:$0xf]
        %v2447 = vld [vmem:[%s2438 + $0x20] sm:$0xf]
        %v2448 = vld [vmem:[%s2438 + $0x24] sm:$0xf]
        %v2449 = vld [vmem:[%s2438 + $0x28] sm:$0xf]
        %v2450 = vld [vmem:[%s2438 + $0x2c] sm:$0xf]
        %v2451 = vld [vmem:[%s2438 + $0x30] sm:$0xf]
        %v2452 = vld [vmem:[%s2438 + $0x34] sm:$0xf]
        %v2453 = vld [vmem:[%s2438 + $0x38] sm:$0xf]
        %v2454 = vld [vmem:[%s2438 + $0x3c] sm:$0xf]
        %v2458 = vunpack.c.l.b16 %v2418
        %v2459 = vunpack.c.l.b16 %v2419
        %v2460 = vunpack.c.l.b16 %v2437
        %v2461 = vpack.c.b16 %v2459, %v2458
        %v2462 = vpack.c.b16 %v2460, %v2460
        %v2464 = vshrl.u32 %v2461, 16
        %v2466 = vrot.slane %v2464, 3
        %v2467 = vshll.u32 %v2461, 16
        %v2469 = vrot.slane %v2467, 4
        %v2470 = vor.u32 %v2466, %v2469
        %v2472 = vshrl.u32 %v2462, 16
        %v2474 = vrot.slane %v2472, 3
        %v2475 = vshll.u32 %v2462, 16
        %v2477 = vrot.slane %v2475, 4
        %v2478 = vor.u32 %v2474, %v2477
        %v2479 = vsel %vm527, %v2470, %v2478
        %v2497 = vunpack.c.l.b16 %v2439
        %v2498 = vunpack.c.l.b16 %v2440
        %v2499 = vunpack.c.l.b16 %v2441
        %v2500 = vunpack.c.l.b16 %v2442
        %v2501 = vunpack.c.l.b16 %v2443
        %v2502 = vunpack.c.l.b16 %v2444
        %v2503 = vunpack.c.l.b16 %v2445
        %v2504 = vunpack.c.l.b16 %v2446
        %v2505 = vunpack.c.l.b16 %v2447
        %v2506 = vunpack.c.l.b16 %v2448
        %v2507 = vunpack.c.l.b16 %v2449
        %v2508 = vunpack.c.l.b16 %v2450
        %v2509 = vunpack.c.l.b16 %v2451
        %v2510 = vunpack.c.l.b16 %v2452
        %v2511 = vunpack.c.l.b16 %v2453
        %v2512 = vunpack.c.l.b16 %v2454
        %v2513 = vpack.c.b16 %v2498, %v2497
        %v2514 = vpack.c.b16 %v2500, %v2499
        %v2515 = vpack.c.b16 %v2502, %v2501
        %v2516 = vpack.c.b16 %v2504, %v2503
        %v2517 = vpack.c.b16 %v2506, %v2505
        %v2518 = vpack.c.b16 %v2508, %v2507
        %v2519 = vpack.c.b16 %v2510, %v2509
        %v2520 = vpack.c.b16 %v2512, %v2511
        %2529 = vmatpush.bf16.msra.mxu0 %v2520
        %2530 = vmatpush.bf16.msra.mxu0 %v2519
        %2531 = vmatpush.bf16.msra.mxu0 %v2518
        %2532 = vmatpush.bf16.msra.mxu0 %v2517
        %2533 = vmatpush.bf16.msra.mxu0 %v2516
        %2534 = vmatpush.bf16.msra.mxu0 %v2515
        %2535 = vmatpush.bf16.msra.mxu0 %v2514
        %2536 = vmatpush.bf16.msra.mxu0 %v2513
        %2537 = vmatmul.bf16.gmra.mxu0 %v2479
        %v2538 = vpop.f32.mrf.mxu0
        %v2539 = vadd.f32 0.0, %v2538
        %v2540 = vpop.f32.mrf.mxu0
        %v2541 = vadd.f32 0.0, %v2540
        %2542 = vdwg.mxu0
        %v2544 = vunpack.c.l.b16 %v2420
        %v2545 = vpack.c.b16 %v2544, %v2544
        %v2546 = vrot.slane %v2461, 3
        %v2547 = vrot.slane %v2545, 3
        %v2548 = vsel %vm611, %v2546, %v2547
        %v2566 = vunpack.c.l.b16 %v2421
        %v2567 = vunpack.c.l.b16 %v2422
        %v2568 = vunpack.c.l.b16 %v2423
        %v2569 = vunpack.c.l.b16 %v2424
        %v2570 = vunpack.c.l.b16 %v2425
        %v2571 = vunpack.c.l.b16 %v2426
        %v2572 = vunpack.c.l.b16 %v2427
        %v2573 = vunpack.c.l.b16 %v2428
        %v2574 = vunpack.c.l.b16 %v2429
        %v2575 = vunpack.c.l.b16 %v2430
        %v2576 = vunpack.c.l.b16 %v2431
        %v2577 = vunpack.c.l.b16 %v2432
        %v2578 = vunpack.c.l.b16 %v2433
        %v2579 = vunpack.c.l.b16 %v2434
        %v2580 = vunpack.c.l.b16 %v2435
        %v2581 = vunpack.c.l.b16 %v2436
        %v2582 = vpack.c.b16 %v2567, %v2566
        %v2583 = vpack.c.b16 %v2569, %v2568
        %v2584 = vpack.c.b16 %v2571, %v2570
        %v2585 = vpack.c.b16 %v2573, %v2572
        %v2586 = vpack.c.b16 %v2575, %v2574
        %v2587 = vpack.c.b16 %v2577, %v2576
        %v2588 = vpack.c.b16 %v2579, %v2578
        %v2589 = vpack.c.b16 %v2581, %v2580
        %2598 = vmatpush.bf16.msra.mxu0 %v2589
        %2599 = vmatpush.bf16.msra.mxu0 %v2588
        %2600 = vmatpush.bf16.msra.mxu0 %v2587
        %2601 = vmatpush.bf16.msra.mxu0 %v2586
        %2602 = vmatpush.bf16.msra.mxu0 %v2585
        %2603 = vmatpush.bf16.msra.mxu0 %v2584
        %2604 = vmatpush.bf16.msra.mxu0 %v2583
        %2605 = vmatpush.bf16.msra.mxu0 %v2582
        %2606 = vmatmul.bf16.gmra.mxu0 %v2548
        %v2607 = vpop.f32.mrf.mxu0
        %v2608 = vadd.f32 %v2539, %v2607
        %v2609 = vpop.f32.mrf.mxu0
        %v2610 = vadd.f32 %v2541, %v2609
        %2611 = vdwg.mxu0
        %s2612 = scalar_lea.vmem [#allocation12], 128
        %v2613 = vld [vmem:[%s2612] sm:$0xf]
        %v2614 = vld [vmem:[%s2612 + $0x4] sm:$0xf]
        %v2615 = vld [vmem:[%s2612 + $0x8] sm:$0xf]
        %v2616 = vld [vmem:[%s2612 + $0xc] sm:$0xf]
        %v2617 = vld [vmem:[%s2612 + $0x10] sm:$0xf]
        %v2618 = vld [vmem:[%s2612 + $0x14] sm:$0xf]
        %v2619 = vld [vmem:[%s2612 + $0x18] sm:$0xf]
        %v2620 = vld [vmem:[%s2612 + $0x1c] sm:$0xf]
        %v2621 = vld [vmem:[%s2612 + $0x20] sm:$0xf]
        %v2622 = vld [vmem:[%s2612 + $0x24] sm:$0xf]
        %v2623 = vld [vmem:[%s2612 + $0x28] sm:$0xf]
        %v2624 = vld [vmem:[%s2612 + $0x2c] sm:$0xf]
        %v2625 = vld [vmem:[%s2612 + $0x30] sm:$0xf]
        %v2626 = vld [vmem:[%s2612 + $0x34] sm:$0xf]
        %v2627 = vld [vmem:[%s2612 + $0x38] sm:$0xf]
        %v2628 = vld [vmem:[%s2612 + $0x3c] sm:$0xf]
        %v2629 = vpack.c.b16 %v2460, %v2459
        %v2647 = vunpack.c.l.b16 %v2613
        %v2648 = vunpack.c.l.b16 %v2614
        %v2649 = vunpack.c.l.b16 %v2615
        %v2650 = vunpack.c.l.b16 %v2616
        %v2651 = vunpack.c.l.b16 %v2617
        %v2652 = vunpack.c.l.b16 %v2618
        %v2653 = vunpack.c.l.b16 %v2619
        %v2654 = vunpack.c.l.b16 %v2620
        %v2655 = vunpack.c.l.b16 %v2621
        %v2656 = vunpack.c.l.b16 %v2622
        %v2657 = vunpack.c.l.b16 %v2623
        %v2658 = vunpack.c.l.b16 %v2624
        %v2659 = vunpack.c.l.b16 %v2625
        %v2660 = vunpack.c.l.b16 %v2626
        %v2661 = vunpack.c.l.b16 %v2627
        %v2662 = vunpack.c.l.b16 %v2628
        %v2663 = vpack.c.b16 %v2648, %v2647
        %v2664 = vpack.c.b16 %v2650, %v2649
        %v2665 = vpack.c.b16 %v2652, %v2651
        %v2666 = vpack.c.b16 %v2654, %v2653
        %v2667 = vpack.c.b16 %v2656, %v2655
        %v2668 = vpack.c.b16 %v2658, %v2657
        %v2669 = vpack.c.b16 %v2660, %v2659
        %v2670 = vpack.c.b16 %v2662, %v2661
        %2679 = vmatpush.bf16.msra.mxu0 %v2670
        %2680 = vmatpush.bf16.msra.mxu0 %v2669
        %2681 = vmatpush.bf16.msra.mxu0 %v2668
        %2682 = vmatpush.bf16.msra.mxu0 %v2667
        %2683 = vmatpush.bf16.msra.mxu0 %v2666
        %2684 = vmatpush.bf16.msra.mxu0 %v2665
        %2685 = vmatpush.bf16.msra.mxu0 %v2664
        %2686 = vmatpush.bf16.msra.mxu0 %v2663
        %2687 = vmatmul.bf16.gmra.mxu0 %v2629
        %v2688 = vpop.f32.mrf.mxu0
        %v2689 = vadd.f32 0.0, %v2688
        %v2690 = vpop.f32.mrf.mxu0
        %v2691 = vadd.f32 0.0, %v2690
        %2692 = vdwg.mxu0
        %v2693 = vadd.f32 %v2608, %v2689
        %v2694 = vadd.f32 %v2610, %v2691
        %v2695 = vld [vmem:[#allocation2 + $0x8] sm:$0xf]
        %v2696 = vld [vmem:[#allocation2 + $0xc] sm:$0xf]
        %v2697 = vld [vmem:[#allocation2 + $0x10] sm:$0x1]
        %s2698 = scalar_lea.vmem [#allocation12], 192
        %v2699 = vld [vmem:[%s2698] sm:$0xf]
        %v2700 = vld [vmem:[%s2698 + $0x4] sm:$0xf]
        %v2701 = vld [vmem:[%s2698 + $0x8] sm:$0xf]
        %v2702 = vld [vmem:[%s2698 + $0xc] sm:$0xf]
        %v2703 = vld [vmem:[%s2698 + $0x10] sm:$0xf]
        %v2704 = vld [vmem:[%s2698 + $0x14] sm:$0xf]
        %v2705 = vld [vmem:[%s2698 + $0x18] sm:$0xf]
        %v2706 = vld [vmem:[%s2698 + $0x1c] sm:$0xf]
        %v2707 = vld [vmem:[%s2698 + $0x20] sm:$0xf]
        %v2708 = vld [vmem:[%s2698 + $0x24] sm:$0xf]
        %v2709 = vld [vmem:[%s2698 + $0x28] sm:$0xf]
        %v2710 = vld [vmem:[%s2698 + $0x2c] sm:$0xf]
        %v2711 = vld [vmem:[%s2698 + $0x30] sm:$0xf]
        %v2712 = vld [vmem:[%s2698 + $0x34] sm:$0xf]
        %v2713 = vld [vmem:[%s2698 + $0x38] sm:$0xf]
        %v2714 = vld [vmem:[%s2698 + $0x3c] sm:$0xf]
        %v2718 = vunpack.c.l.b16 %v2695
        %v2719 = vunpack.c.l.b16 %v2696
        %v2720 = vunpack.c.l.b16 %v2697
        %v2721 = vpack.c.b16 %v2719, %v2718
        %v2722 = vpack.c.b16 %v2720, %v2720
        %v2724 = vshrl.u32 %v2721, 16
        %v2726 = vshll.u32 %v2721, 16
        %v2728 = vrot.slane %v2726, 1
        %v2729 = vor.u32 %v2724, %v2728
        %v2731 = vshll.u32 %v2722, 16
        %v2733 = vrot.slane %v2731, 1
        %v2734 = vsel %vm789, %v2729, %v2733
        %v2752 = vunpack.c.l.b16 %v2699
        %v2753 = vunpack.c.l.b16 %v2700
        %v2754 = vunpack.c.l.b16 %v2701
        %v2755 = vunpack.c.l.b16 %v2702
        %v2756 = vunpack.c.l.b16 %v2703
        %v2757 = vunpack.c.l.b16 %v2704
        %v2758 = vunpack.c.l.b16 %v2705
        %v2759 = vunpack.c.l.b16 %v2706
        %v2760 = vunpack.c.l.b16 %v2707
        %v2761 = vunpack.c.l.b16 %v2708
        %v2762 = vunpack.c.l.b16 %v2709
        %v2763 = vunpack.c.l.b16 %v2710
        %v2764 = vunpack.c.l.b16 %v2711
        %v2765 = vunpack.c.l.b16 %v2712
        %v2766 = vunpack.c.l.b16 %v2713
        %v2767 = vunpack.c.l.b16 %v2714
        %v2768 = vpack.c.b16 %v2753, %v2752
        %v2769 = vpack.c.b16 %v2755, %v2754
        %v2770 = vpack.c.b16 %v2757, %v2756
        %v2771 = vpack.c.b16 %v2759, %v2758
        %v2772 = vpack.c.b16 %v2761, %v2760
        %v2773 = vpack.c.b16 %v2763, %v2762
        %v2774 = vpack.c.b16 %v2765, %v2764
        %v2775 = vpack.c.b16 %v2767, %v2766
        %2784 = vmatpush.bf16.msra.mxu0 %v2775
        %2785 = vmatpush.bf16.msra.mxu0 %v2774
        %2786 = vmatpush.bf16.msra.mxu0 %v2773
        %2787 = vmatpush.bf16.msra.mxu0 %v2772
        %2788 = vmatpush.bf16.msra.mxu0 %v2771
        %2789 = vmatpush.bf16.msra.mxu0 %v2770
        %2790 = vmatpush.bf16.msra.mxu0 %v2769
        %2791 = vmatpush.bf16.msra.mxu0 %v2768
        %2792 = vmatmul.bf16.gmra.mxu0 %v2734
        %v2793 = vpop.f32.mrf.mxu0
        %v2794 = vadd.f32 0.0, %v2793
        %v2795 = vpop.f32.mrf.mxu0
        %v2796 = vadd.f32 0.0, %v2795
        %2797 = vdwg.mxu0
        %v2798 = vadd.f32 %v2693, %v2794
        %v2799 = vadd.f32 %v2694, %v2796
        %v2800 = vld [vmem:[#allocation2 + $0x8] sm:$0xe]
        %s2801 = scalar_lea.vmem [#allocation12], 256
        %v2802 = vld [vmem:[%s2801] sm:$0xf]
        %v2803 = vld [vmem:[%s2801 + $0x4] sm:$0xf]
        %v2804 = vld [vmem:[%s2801 + $0x8] sm:$0xf]
        %v2805 = vld [vmem:[%s2801 + $0xc] sm:$0xf]
        %v2806 = vld [vmem:[%s2801 + $0x10] sm:$0xf]
        %v2807 = vld [vmem:[%s2801 + $0x14] sm:$0xf]
        %v2808 = vld [vmem:[%s2801 + $0x18] sm:$0xf]
        %v2809 = vld [vmem:[%s2801 + $0x1c] sm:$0xf]
        %v2810 = vld [vmem:[%s2801 + $0x20] sm:$0xf]
        %v2811 = vld [vmem:[%s2801 + $0x24] sm:$0xf]
        %v2812 = vld [vmem:[%s2801 + $0x28] sm:$0xf]
        %v2813 = vld [vmem:[%s2801 + $0x2c] sm:$0xf]
        %v2814 = vld [vmem:[%s2801 + $0x30] sm:$0xf]
        %v2815 = vld [vmem:[%s2801 + $0x34] sm:$0xf]
        %v2816 = vld [vmem:[%s2801 + $0x38] sm:$0xf]
        %v2817 = vld [vmem:[%s2801 + $0x3c] sm:$0xf]
        %v2819 = vunpack.c.l.b16 %v2800
        %v2820 = vpack.c.b16 %v2719, %v2819
        %v2821 = vrot.slane %v2820, 1
        %v2822 = vrot.slane %v2722, 1
        %v2823 = vsel %vm888, %v2821, %v2822
        %v2841 = vunpack.c.l.b16 %v2802
        %v2842 = vunpack.c.l.b16 %v2803
        %v2843 = vunpack.c.l.b16 %v2804
        %v2844 = vunpack.c.l.b16 %v2805
        %v2845 = vunpack.c.l.b16 %v2806
        %v2846 = vunpack.c.l.b16 %v2807
        %v2847 = vunpack.c.l.b16 %v2808
        %v2848 = vunpack.c.l.b16 %v2809
        %v2849 = vunpack.c.l.b16 %v2810
        %v2850 = vunpack.c.l.b16 %v2811
        %v2851 = vunpack.c.l.b16 %v2812
        %v2852 = vunpack.c.l.b16 %v2813
        %v2853 = vunpack.c.l.b16 %v2814
        %v2854 = vunpack.c.l.b16 %v2815
        %v2855 = vunpack.c.l.b16 %v2816
        %v2856 = vunpack.c.l.b16 %v2817
        %v2857 = vpack.c.b16 %v2842, %v2841
        %v2858 = vpack.c.b16 %v2844, %v2843
        %v2859 = vpack.c.b16 %v2846, %v2845
        %v2860 = vpack.c.b16 %v2848, %v2847
        %v2861 = vpack.c.b16 %v2850, %v2849
        %v2862 = vpack.c.b16 %v2852, %v2851
        %v2863 = vpack.c.b16 %v2854, %v2853
        %v2864 = vpack.c.b16 %v2856, %v2855
        %2873 = vmatpush.bf16.msra.mxu0 %v2864
        %2874 = vmatpush.bf16.msra.mxu0 %v2863
        %2875 = vmatpush.bf16.msra.mxu0 %v2862
        %2876 = vmatpush.bf16.msra.mxu0 %v2861
        %2877 = vmatpush.bf16.msra.mxu0 %v2860
        %2878 = vmatpush.bf16.msra.mxu0 %v2859
        %2879 = vmatpush.bf16.msra.mxu0 %v2858
        %2880 = vmatpush.bf16.msra.mxu0 %v2857
        %2881 = vmatmul.bf16.gmra.mxu0 %v2823
        %v2882 = vpop.f32.mrf.mxu0
        %v2883 = vadd.f32 0.0, %v2882
        %v2884 = vpop.f32.mrf.mxu0
        %v2885 = vadd.f32 0.0, %v2884
        %2886 = vdwg.mxu0
        %v2887 = vadd.f32 %v2798, %v2883
        %v2888 = vadd.f32 %v2799, %v2885
        %v2889 = vld [vmem:[%s10] sm:$0x1]
        %v2891 = vperm.slane %v2889, 0
        %v2893 = vadd.f32 %v2887, %v2891
        %v2894 = vadd.f32 %v2888, %v2891
        %2895 = vst [vmem:[%s462] sm:$0xff] %v2893
        %2896 = vst [vmem:[%s462 + $0x8] sm:$0xff] %v2894
        %s2897 = sand.u32 %s272, 1
        %s2898 = scalar_lea.sflag [#allocation6], %s2897
        %s2899 = sand.u32 %s272, 1
        %s2900 = smul.addr %s2899, 16
        %s2901 = scalar_lea.vmem [#allocation13], %s2900
        // Predicated region
        $region85: #{tpu_custom_call.1} parent=63 // pred_check
          %p2902 = pneg %p282
        $region86: #{tpu_custom_call.1} parent=63 // pred_check_branch
          %2904 = sbr.rel (%p2902) target = $region88
        $region87: #{tpu_custom_call.1} parent=63 // pred_region
          %2906 = vsyncadd %s2898, 0
          %s2907 = smul.addr %s28, 2
          %s2908 = smul.addr %s2907, 8
          %s2909 = scalar_lea.hbm %s11, %s2908
          %s2910 = sshll.u32 %s2901, 4
          %s2911 = int_to_ptr.vmem [resolvable:$true] %s2910
          %s2912 = sshll.u32 %s2909, 4
          %s2913 = int_to_ptr.hbm [resolvable:$true] %s2912
          %2918 = dma.vmem_to_hbm [thread:$0]  %s2911, 256, %s2913, %s2898, 128, 128, 8
        $region88: #{tpu_custom_call.1} parent=63 // pred_fallthru
          _
      $region64: #{tpu_custom_call.1} parent=5 // pred_fallthru
        _
      %p2919 = scmp.le.s32.totalorder 2, %s23
      // Predicated region
      $region89: #{tpu_custom_call.1} parent=5 // pred_check
        %p2920 = pneg %p2919
      $region90: #{tpu_custom_call.1} parent=5 // pred_check_branch
        %2922 = sbr.rel (%p2920) target = $region92
      $region91: #{tpu_custom_call.1} parent=5 // pred_region
        %s2923 = ssub.s32 %s23, 2
        // Predicated region
        $region93: #{tpu_custom_call.1} parent=91 // pred_check
          %p2924 = pneg %p288
        $region94: #{tpu_custom_call.1} parent=91 // pred_check_branch
          %2926 = sbr.rel (%p2924) target = $region96
        $region95: #{tpu_custom_call.1} parent=91 // pred_region
          %s2927 = sand.u32 %s273, 1
          %s2928 = scalar_lea.sflag [#allocation6], %s2927
          %s2929 = sand.u32 %s273, 1
          %s2930 = smul.addr %s2929, 16
          %s2931 = scalar_lea.vmem [#allocation13], %s2930
          %2933 = dma.done %s2928, 256
        $region96: #{tpu_custom_call.1} parent=91 // pred_fallthru
          _
      $region92: #{tpu_custom_call.1} parent=5 // pred_fallthru
        _
    $region6: #{tpu_custom_call.1} parent=1 // loop_footer
      %s27 = sadd.s32 1, %s23
    $region7: #{tpu_custom_call.1} parent=1 // loop_footer_branch
      %22 = sbr.rel target = $region3
    $region8: #{tpu_custom_call.1} parent=1 // loop_exit
      _
    %2934 = vsyncpa [#allocation5], 1
    %s2935 = scalar_lea.sflag [#allocation5], 1
    %2936 = vsyncpa %s2935, 1
    %2937 = vsyncpa [#allocation8], 1
    %2938 = vsyncpa [#allocation11], 1
    %2939 = vsyncpa [#allocation6], 1
    %s2940 = scalar_lea.sflag [#allocation6], 1
    %2941 = vsyncpa %s2940, 1

</llo_original>
